<compile_context>
chip_gen: v7x
topology: tpu7x:2x2x1
jax: 0.10.0
libtpu: 0.0.40
codegen_flags: <defaults>
</compile_context>

<pallas_src>
import functools
import math

import jax
import jax.numpy as jnp
from jax.experimental import pallas as pl
from jax.experimental.pallas import tpu as pltpu


# ------------------------- in-kernel helper functions -------------------------

def _layernorm(z, g, b, eps=1e-5):
    mean = jnp.mean(z, axis=-1, keepdims=True)
    var = jnp.mean(jnp.square(z - mean), axis=-1, keepdims=True)
    return (z - mean) * jax.lax.rsqrt(var + eps) * g + b


def _mha(q3, k3, v3, bias2, heads):
    """q3: (B,Sq,D)  k3/v3: (B,Sk,D)  bias2: (Sq,Sk) additive (0 = attend, -1e9 = masked)."""
    d = q3.shape[-1]
    dh = d // heads
    scale = 1.0 / math.sqrt(dh)
    bias = bias2[None, :, :]
    outs = []
    for h in range(heads):                       # static unroll over heads
        sl = slice(h * dh, (h + 1) * dh)
        qh, kh, vh = q3[..., sl], k3[..., sl], v3[..., sl]
        s = jnp.einsum("bqd,bkd->bqk", qh, kh, preferred_element_type=jnp.float32)
        s = s * scale + bias
        s = s - jnp.max(s, axis=-1, keepdims=True)
        p = jnp.exp(s)
        p = p * pl.reciprocal(jnp.sum(p, axis=-1, keepdims=True), approx=True)
        outs.append(jnp.einsum("bqk,bkd->bqd", p, vh, preferred_element_type=jnp.float32))
    return jnp.concatenate(outs, axis=-1)


# --------------------------------- the kernel ---------------------------------

def _decoder_kernel(
    x0_ref, enc_ref, tgt_bias_ref, src_bias_ref,
    wqkv_ref, bqkv_ref, wo1_ref, bo1_ref, ln1g_ref, ln1b_ref,
    wq2_ref, bq2_ref, wkv2_ref, bkv2_ref, wo2_ref, bo2_ref, ln2g_ref, ln2b_ref,
    w1_ref, b1_ref, w2_ref, b2_ref, ln3g_ref, ln3b_ref,
    fcw_ref, fcb_ref,
    out_ref,
    x_vmem,
    *, batch, s_tgt, s_src, heads,
):
    l = pl.program_id(0)
    d = x_vmem.shape[-1]

    # Residual stream lives in VMEM scratch across all layers; seed it on layer 0.
    @pl.when(l == 0)
    def _():
        x_vmem[...] = x0_ref[...]

    x = x_vmem[...]                                               # (B*S_tgt, D)

    # ---- masked self-attention (fused QKV projection) ----
    qkv = jnp.dot(x, wqkv_ref[...], preferred_element_type=jnp.float32) + bqkv_ref[...]
    q3 = qkv[:, 0 * d:1 * d].reshape(batch, s_tgt, d)
    k3 = qkv[:, 1 * d:2 * d].reshape(batch, s_tgt, d)
    v3 = qkv[:, 2 * d:3 * d].reshape(batch, s_tgt, d)
    att = _mha(q3, k3, v3, tgt_bias_ref[...], heads).reshape(batch * s_tgt, d)
    att = jnp.dot(att, wo1_ref[...], preferred_element_type=jnp.float32) + bo1_ref[...]
    x = _layernorm(x + att, ln1g_ref[...], ln1b_ref[...])

    # ---- encoder-decoder cross-attention (fused KV projection) ----
    enc = enc_ref[...]                                            # (B*S_src, D)
    q3 = (jnp.dot(x, wq2_ref[...], preferred_element_type=jnp.float32)
          + bq2_ref[...]).reshape(batch, s_tgt, d)
    kv = jnp.dot(enc, wkv2_ref[...], preferred_element_type=jnp.float32) + bkv2_ref[...]
    k3 = kv[:, 0 * d:1 * d].reshape(batch, s_src, d)
    v3 = kv[:, 1 * d:2 * d].reshape(batch, s_src, d)
    att = _mha(q3, k3, v3, src_bias_ref[...], heads).reshape(batch * s_tgt, d)
    att = jnp.dot(att, wo2_ref[...], preferred_element_type=jnp.float32) + bo2_ref[...]
    x = _layernorm(x + att, ln2g_ref[...], ln2b_ref[...])

    # ---- position-wise feed-forward ----
    h = jnp.dot(x, w1_ref[...], preferred_element_type=jnp.float32) + b1_ref[...]
    h = jnp.maximum(h, 0.0)
    f = jnp.dot(h, w2_ref[...], preferred_element_type=jnp.float32) + b2_ref[...]
    x = _layernorm(x + f, ln3g_ref[...], ln3b_ref[...])

    x_vmem[...] = x

    # ---- final vocab projection, only on the last layer (lane-dense padded output) ----
    @pl.when(l == pl.num_programs(0) - 1)
    def _():
        out_ref[...] = (
            jnp.dot(x, fcw_ref[...], preferred_element_type=jnp.float32) + fcb_ref[...]
        ).astype(out_ref.dtype)


# ------------------------------- JAX wrapper ----------------------------------

def decoder_forward(params, x_ids, enc_out, src_mask, tgt_mask, *, heads):
    b, s_tgt = x_ids.shape
    s_src = enc_out.shape[1]
    d = params["embedding"].shape[1]
    vocab = params["fc_w"].shape[1]
    num_layers = params["wqkv"].shape[0]
    ffn = params["w1"].shape[-1]

    # Embedding lookup + sinusoidal positional encoding (plain-JAX glue: gather).
    x = jnp.take(params["embedding"], x_ids, axis=0) + params["pe"][None, :s_tgt, :]
    # TODO(synk): dropout omitted (module instantiated with dropout=None / eval mode).

    x0 = x.reshape(b * s_tgt, d).astype(jnp.float32)
    enc2 = enc_out.reshape(b * s_src, d).astype(jnp.float32)

    # Additive attention biases: 0 where attend, -1e9 where masked.
    tgt_bias = (tgt_mask.astype(jnp.float32) - 1.0) * 1e9
    src_bias = (src_mask.astype(jnp.float32) - 1.0) * 1e9

    # Pad the vocab projection to a multiple of 128 lanes -> unmasked output stores.
    v_pad = ((vocab + 127) // 128) * 128
    fc_w = jnp.pad(params["fc_w"], ((0, 0), (0, v_pad - vocab)))
    fc_b = jnp.pad(params["fc_b"], ((0, 0), (0, v_pad - vocab)))

    def fixed(shape):
        return pl.BlockSpec(shape, lambda l, _s=shape: (0,) * len(_s))

    def per_layer(shape):
        return pl.BlockSpec((None,) + shape, lambda l, _s=shape: (l,) + (0,) * len(_s))

    in_specs = [
        fixed((b * s_tgt, d)),                            # x0
        fixed((b * s_src, d)),                            # enc
        fixed((s_tgt, s_tgt)),                            # tgt additive bias
        fixed((s_tgt, s_src)),                            # src additive bias
        per_layer((d, 3 * d)), per_layer((1, 3 * d)),     # wqkv, bqkv
        per_layer((d, d)), per_layer((1, d)),             # wo1, bo1
        per_layer((1, d)), per_layer((1, d)),             # ln1 gamma/beta
        per_layer((d, d)), per_layer((1, d)),             # wq2, bq2
        per_layer((d, 2 * d)), per_layer((1, 2 * d)),     # wkv2, bkv2
        per_layer((d, d)), per_layer((1, d)),             # wo2, bo2
        per_layer((1, d)), per_layer((1, d)),             # ln2 gamma/beta
        per_layer((d, ffn)), per_layer((1, ffn)),         # ffn w1, b1
        per_layer((ffn, d)), per_layer((1, d)),           # ffn w2, b2
        per_layer((1, d)), per_layer((1, d)),             # ln3 gamma/beta
        fixed((d, v_pad)), fixed((1, v_pad)),             # fc_out w, b (padded)
    ]

    kernel = functools.partial(
        _decoder_kernel, batch=b, s_tgt=s_tgt, s_src=s_src, heads=heads)

    logits = pl.pallas_call(
        kernel,
        out_shape=jax.ShapeDtypeStruct((b * s_tgt, v_pad), jnp.float32),
        grid_spec=pltpu.PrefetchScalarGridSpec(
            num_scalar_prefetch=0,
            grid=(num_layers,),
            in_specs=in_specs,
            out_specs=fixed((b * s_tgt, v_pad)),
            scratch_shapes=[pltpu.VMEM((b * s_tgt, d), jnp.float32)],
        ),
        compiler_params=pltpu.CompilerParams(
            dimension_semantics=("arbitrary",)),   # residual stream carried across layers
    )(
        x0, enc2, tgt_bias, src_bias,
        params["wqkv"], params["bqkv"], params["wo1"], params["bo1"],
        params["ln1g"], params["ln1b"],
        params["wq2"], params["bq2"], params["wkv2"], params["bkv2"],
        params["wo2"], params["bo2"], params["ln2g"], params["ln2b"],
        params["w1"], params["b1"], params["w2"], params["b2"],
        params["ln3g"], params["ln3b"],
        fc_w, fc_b,
    )

    return logits[:, :vocab].reshape(b, s_tgt, vocab)


# ----------------------------- parameter setup --------------------------------

def _dense_init(key, fan_in, fan_out):
    kw, kb = jax.random.split(key)
    lim = 1.0 / math.sqrt(fan_in)
    w = jax.random.uniform(kw, (fan_in, fan_out), jnp.float32, -lim, lim)
    b = jax.random.uniform(kb, (1, fan_out), jnp.float32, -lim, lim)
    return w, b


def _positional_encoding(max_len, d_model):
    pos = jnp.arange(max_len, dtype=jnp.float32)[:, None]
    div = jnp.exp(jnp.arange(0, d_model, 2, dtype=jnp.float32) * (-math.log(10000.0) / d_model))
    pe = jnp.zeros((max_len, d_model), jnp.float32)
    pe = pe.at[:, 0::2].set(jnp.sin(pos * div))
    pe = pe.at[:, 1::2].set(jnp.cos(pos * div))
    return pe


def init_decoder_params(key, vocab_size, d_model, num_layers, heads,
                        forward_expansion=4, max_len=512):
    ffn_dim = d_model * forward_expansion
    keys = jax.random.split(key, 2 + num_layers)
    params = {
        "embedding": 0.02 * jax.random.normal(keys[0], (vocab_size, d_model), jnp.float32),
        "pe": _positional_encoding(max_len, d_model),
    }
    params["fc_w"], params["fc_b"] = _dense_init(keys[1], d_model, vocab_size)

    names = ("wqkv", "bqkv", "wo1", "bo1", "ln1g", "ln1b",
             "wq2", "bq2", "wkv2", "bkv2", "wo2", "bo2", "ln2g", "ln2b",
             "w1", "b1", "w2", "b2", "ln3g", "ln3b")
    per_layer = {k: [] for k in names}
    ones = jnp.ones((1, d_model), jnp.float32)
    zeros = jnp.zeros((1, d_model), jnp.float32)

    for li in range(num_layers):
        lk = jax.random.split(keys[2 + li], 10)
        # self-attention: q/k/v projections concatenated into a single (D, 3D) weight
        wq, bq = _dense_init(lk[0], d_model, d_model)
        wk, bk = _dense_init(lk[1], d_model, d_model)
        wv, bv = _dense_init(lk[2], d_model, d_model)
        wo, bo = _dense_init(lk[3], d_model, d_model)
        per_layer["wqkv"].append(jnp.concatenate([wq, wk, wv], axis=1))
        per_layer["bqkv"].append(jnp.concatenate([bq, bk, bv], axis=1))
        per_layer["wo1"].append(wo); per_layer["bo1"].append(bo)
        # cross-attention: separate Q projection, fused (D, 2D) K/V projection
        wq2, bq2 = _dense_init(lk[4], d_model, d_model)
        wk2, bk2 = _dense_init(lk[5], d_model, d_model)
        wv2, bv2 = _dense_init(lk[6], d_model, d_model)
        wo2, bo2 = _dense_init(lk[7], d_model, d_model)
        per_layer["wq2"].append(wq2); per_layer["bq2"].append(bq2)
        per_layer["wkv2"].append(jnp.concatenate([wk2, wv2], axis=1))
        per_layer["bkv2"].append(jnp.concatenate([bk2, bv2], axis=1))
        per_layer["wo2"].append(wo2); per_layer["bo2"].append(bo2)
        # feed-forward
        w1, b1 = _dense_init(lk[8], d_model, ffn_dim)
        w2, b2 = _dense_init(lk[9], ffn_dim, d_model)
        per_layer["w1"].append(w1); per_layer["b1"].append(b1)
        per_layer["w2"].append(w2); per_layer["b2"].append(b2)
        # layer norms
        for k in ("ln1g", "ln2g", "ln3g"):
            per_layer[k].append(ones)
        for k in ("ln1b", "ln2b", "ln3b"):
            per_layer[k].append(zeros)

    for k in names:
        params[k] = jnp.stack(per_layer[k], axis=0)
    return params


# ----------------------------------- main --------------------------------------

if __name__ == "__main__":
    VOCAB, D_MODEL, NUM_LAYERS, HEADS = 64, 32, 2, 4
    FWD_EXP, MAX_LEN = 4, 64
    B, S_TGT, S_SRC = 2, 8, 8

    root = jax.random.PRNGKey(0)
    k_par, k_ids, k_enc = jax.random.split(root, 3)

    params = init_decoder_params(k_par, VOCAB, D_MODEL, NUM_LAYERS, HEADS,
                                 forward_expansion=FWD_EXP, max_len=MAX_LEN)

    x_ids = jax.random.randint(k_ids, (B, S_TGT), 0, VOCAB, dtype=jnp.int32)
    enc_out = jax.random.normal(k_enc, (B, S_SRC, D_MODEL), jnp.float32)
    src_mask = jnp.ones((S_TGT, S_SRC), jnp.float32)                 # attend to all source tokens
    tgt_mask = jnp.tril(jnp.ones((S_TGT, S_TGT), jnp.float32))       # causal mask

    fwd = jax.jit(functools.partial(decoder_forward, heads=HEADS))
    logits = fwd(params, x_ids, enc_out, src_mask, tgt_mask)
    jax.block_until_ready(logits)

    assert logits.shape == (B, S_TGT, VOCAB), logits.shape
    assert logits.dtype == jnp.float32
    assert bool(jnp.all(jnp.isfinite(logits)))
    print("KERNEL_OK")
</pallas_src>

<mosaic_0001>
module attributes {stable_mosaic.version = 11 : i64} {
  func.func @_decoder_kernel(%arg0: i32, %arg1: memref<16x32xf32, #tpu.memory_space<vmem>>, %arg2: memref<16x32xf32, #tpu.memory_space<vmem>>, %arg3: memref<8x8xf32, #tpu.memory_space<vmem>>, %arg4: memref<8x8xf32, #tpu.memory_space<vmem>>, %arg5: memref<1x32x96xf32, #tpu.memory_space<vmem>>, %arg6: memref<1x1x96xf32, #tpu.memory_space<vmem>>, %arg7: memref<1x32x32xf32, #tpu.memory_space<vmem>>, %arg8: memref<1x1x32xf32, #tpu.memory_space<vmem>>, %arg9: memref<1x1x32xf32, #tpu.memory_space<vmem>>, %arg10: memref<1x1x32xf32, #tpu.memory_space<vmem>>, %arg11: memref<1x32x32xf32, #tpu.memory_space<vmem>>, %arg12: memref<1x1x32xf32, #tpu.memory_space<vmem>>, %arg13: memref<1x32x64xf32, #tpu.memory_space<vmem>>, %arg14: memref<1x1x64xf32, #tpu.memory_space<vmem>>, %arg15: memref<1x32x32xf32, #tpu.memory_space<vmem>>, %arg16: memref<1x1x32xf32, #tpu.memory_space<vmem>>, %arg17: memref<1x1x32xf32, #tpu.memory_space<vmem>>, %arg18: memref<1x1x32xf32, #tpu.memory_space<vmem>>, %arg19: memref<1x32x128xf32, #tpu.memory_space<vmem>>, %arg20: memref<1x1x128xf32, #tpu.memory_space<vmem>>, %arg21: memref<1x128x32xf32, #tpu.memory_space<vmem>>, %arg22: memref<1x1x32xf32, #tpu.memory_space<vmem>>, %arg23: memref<1x1x32xf32, #tpu.memory_space<vmem>>, %arg24: memref<1x1x32xf32, #tpu.memory_space<vmem>>, %arg25: memref<32x128xf32, #tpu.memory_space<vmem>>, %arg26: memref<1x128xf32, #tpu.memory_space<vmem>>, %arg27: memref<16x128xf32, #tpu.memory_space<vmem>>, %arg28: memref<16x32xf32, #tpu.memory_space<vmem>>) attributes {dimension_semantics = [#tpu.dimension_semantics<arbitrary>], iteration_bounds = array<i64: 2>, scalar_prefetch = 0 : i64, scratch_operands = 1 : i64, tpu.core_type = #tpu.core_type<tc>, window_params = [{pipeline_mode = #tpu.pipeline_mode<synchronous>, transform_indices = @transform_0, window_bounds = array<i64: 16, 32>}, {pipeline_mode = #tpu.pipeline_mode<synchronous>, transform_indices = @transform_1, window_bounds = array<i64: 16, 32>}, {pipeline_mode = #tpu.pipeline_mode<synchronous>, transform_indices = @transform_2, window_bounds = array<i64: 8, 8>}, {pipeline_mode = #tpu.pipeline_mode<synchronous>, transform_indices = @transform_3, window_bounds = array<i64: 8, 8>}, {transform_indices = @transform_4, window_bounds = array<i64: 1, 32, 96>}, {transform_indices = @transform_5, window_bounds = array<i64: 1, 1, 96>}, {transform_indices = @transform_6, window_bounds = array<i64: 1, 32, 32>}, {transform_indices = @transform_7, window_bounds = array<i64: 1, 1, 32>}, {transform_indices = @transform_8, window_bounds = array<i64: 1, 1, 32>}, {transform_indices = @transform_9, window_bounds = array<i64: 1, 1, 32>}, {transform_indices = @transform_10, window_bounds = array<i64: 1, 32, 32>}, {transform_indices = @transform_11, window_bounds = array<i64: 1, 1, 32>}, {transform_indices = @transform_12, window_bounds = array<i64: 1, 32, 64>}, {transform_indices = @transform_13, window_bounds = array<i64: 1, 1, 64>}, {transform_indices = @transform_14, window_bounds = array<i64: 1, 32, 32>}, {transform_indices = @transform_15, window_bounds = array<i64: 1, 1, 32>}, {transform_indices = @transform_16, window_bounds = array<i64: 1, 1, 32>}, {transform_indices = @transform_17, window_bounds = array<i64: 1, 1, 32>}, {transform_indices = @transform_18, window_bounds = array<i64: 1, 32, 128>}, {transform_indices = @transform_19, window_bounds = array<i64: 1, 1, 128>}, {transform_indices = @transform_20, window_bounds = array<i64: 1, 128, 32>}, {transform_indices = @transform_21, window_bounds = array<i64: 1, 1, 32>}, {transform_indices = @transform_22, window_bounds = array<i64: 1, 1, 32>}, {transform_indices = @transform_23, window_bounds = array<i64: 1, 1, 32>}, {pipeline_mode = #tpu.pipeline_mode<synchronous>, transform_indices = @transform_24, window_bounds = array<i64: 32, 128>}, {pipeline_mode = #tpu.pipeline_mode<synchronous>, transform_indices = @transform_25, window_bounds = array<i64: 1, 128>}, {pipeline_mode = #tpu.pipeline_mode<synchronous>, transform_indices = @transform_26, window_bounds = array<i64: 16, 128>}]} {
    %c0_i32 = arith.constant 0 : i32
    %0 = arith.cmpi eq, %arg0, %c0_i32 : i32
    %1 = arith.extui %0 : i1 to i32
    %c0_i32_0 = arith.constant 0 : i32
    %2 = arith.cmpi ne, %1, %c0_i32_0 : i32
    scf.if %2 {
      %c0_133 = arith.constant 0 : index
      %c0_134 = arith.constant 0 : index
      %312 = vector.load %arg1[%c0_133, %c0_134] : memref<16x32xf32, #tpu.memory_space<vmem>>, vector<16x32xf32>
      %c0_135 = arith.constant 0 : index
      %c0_136 = arith.constant 0 : index
      %313 = vector.load %arg28[%c0_135, %c0_136] : memref<16x32xf32, #tpu.memory_space<vmem>>, vector<16x32xf32>
      tpu.vector_store %arg28[%c0_135, %c0_136], %312 {strides = array<i32>} : memref<16x32xf32, #tpu.memory_space<vmem>>, vector<16x32xf32>,
    } else {
    }
    %c0 = arith.constant 0 : index
    %c0_1 = arith.constant 0 : index
    %3 = vector.load %arg28[%c0, %c0_1] : memref<16x32xf32, #tpu.memory_space<vmem>>, vector<16x32xf32>
    %c0_2 = arith.constant 0 : index
    %c0_3 = arith.constant 0 : index
    %c0_4 = arith.constant 0 : index
    %4 = vector.load %arg5[%c0_2, %c0_3, %c0_4] : memref<1x32x96xf32, #tpu.memory_space<vmem>>, vector<1x32x96xf32>
    %5 = vector.shape_cast %4 : vector<1x32x96xf32> to vector<32x96xf32>
    %cst = arith.constant dense<0.000000e+00> : vector<16x96xf32>
    %6 = tpu.matmul %3, %5, %cst {dimension_numbers = #tpu.dot_dimension_numbers<[1], [0], [0], [1], [0, 0, 1, 1], [], []>} : vector<16x32xf32>, vector<32x96xf32>, vector<16x96xf32> -> vector<16x96xf32>
    %c0_5 = arith.constant 0 : index
    %c0_6 = arith.constant 0 : index
    %c0_7 = arith.constant 0 : index
    %7 = vector.load %arg6[%c0_5, %c0_6, %c0_7] : memref<1x1x96xf32, #tpu.memory_space<vmem>>, vector<1x1x96xf32>
    %8 = vector.shape_cast %7 : vector<1x1x96xf32> to vector<1x96xf32>
    %9 = vector.broadcast %8 : vector<1x96xf32> to vector<16x96xf32>
    %10 = arith.addf %6, %9 : vector<16x96xf32>
    %11 = vector.extract_strided_slice %10 {offsets = [0, 0], sizes = [16, 32], strides = [1, 1]} : vector<16x96xf32> to vector<16x32xf32>
    %12 = vector.shape_cast %11 : vector<16x32xf32> to vector<2x8x32xf32>
    %13 = vector.extract_strided_slice %10 {offsets = [0, 32], sizes = [16, 32], strides = [1, 1]} : vector<16x96xf32> to vector<16x32xf32>
    %14 = vector.shape_cast %13 : vector<16x32xf32> to vector<2x8x32xf32>
    %15 = vector.extract_strided_slice %10 {offsets = [0, 64], sizes = [16, 32], strides = [1, 1]} : vector<16x96xf32> to vector<16x32xf32>
    %16 = vector.shape_cast %15 : vector<16x32xf32> to vector<2x8x32xf32>
    %c0_8 = arith.constant 0 : index
    %c0_9 = arith.constant 0 : index
    %17 = vector.load %arg3[%c0_8, %c0_9] : memref<8x8xf32, #tpu.memory_space<vmem>>, vector<8x8xf32>
    %18 = vector.shape_cast %17 : vector<8x8xf32> to vector<1x8x8xf32>
    %19 = vector.extract_strided_slice %12 {offsets = [0, 0, 0], sizes = [2, 8, 8], strides = [1, 1, 1]} : vector<2x8x32xf32> to vector<2x8x8xf32>
    %20 = vector.extract_strided_slice %14 {offsets = [0, 0, 0], sizes = [2, 8, 8], strides = [1, 1, 1]} : vector<2x8x32xf32> to vector<2x8x8xf32>
    %21 = vector.extract_strided_slice %16 {offsets = [0, 0, 0], sizes = [2, 8, 8], strides = [1, 1, 1]} : vector<2x8x32xf32> to vector<2x8x8xf32>
    "tpu.trace_start"() <{level = 10 : i32, message = "bqd,bkd->bqk"}> : () -> ()
    %cst_10 = arith.constant dense<0.000000e+00> : vector<2x8x8xf32>
    %22 = tpu.matmul %19, %20, %cst_10 {dimension_numbers = #tpu.dot_dimension_numbers<[2], [2], [1], [1], [0, 0, 0, 1, 1, 1], [0], [0]>} : vector<2x8x8xf32>, vector<2x8x8xf32>, vector<2x8x8xf32> -> vector<2x8x8xf32>
    "tpu.trace_stop"() : () -> ()
    %cst_11 = arith.constant 0.353553385 : f32
    %23 = vector.broadcast %cst_11 : f32 to vector<2x8x8xf32>
    %24 = arith.mulf %22, %23 : vector<2x8x8xf32>
    %25 = vector.broadcast %18 : vector<1x8x8xf32> to vector<2x8x8xf32>
    %26 = arith.addf %24, %25 : vector<2x8x8xf32>
    %cst_12 = arith.constant dense<0xFF800000> : vector<2x8xf32>
    %27 = vector.multi_reduction <maximumf>, %26, %cst_12 [2] : vector<2x8x8xf32> to vector<2x8xf32>
    %28 = vector.shape_cast %27 : vector<2x8xf32> to vector<2x8x1xf32>
    %29 = vector.broadcast %28 : vector<2x8x1xf32> to vector<2x8x8xf32>
    %30 = arith.subf %26, %29 : vector<2x8x8xf32>
    %31 = math.exp %30 : vector<2x8x8xf32>
    %cst_13 = arith.constant dense<0.000000e+00> : vector<2x8xf32>
    %32 = vector.multi_reduction <add>, %31, %cst_13 [2] : vector<2x8x8xf32> to vector<2x8xf32>
    %33 = vector.shape_cast %32 : vector<2x8xf32> to vector<2x8x1xf32>
    %34 = tpu.reciprocal %33 {approx = true} : vector<2x8x1xf32> -> vector<2x8x1xf32>
    %35 = vector.broadcast %34 : vector<2x8x1xf32> to vector<2x8x8xf32>
    %36 = arith.mulf %31, %35 : vector<2x8x8xf32>
    "tpu.trace_start"() <{level = 10 : i32, message = "bqk,bkd->bqd"}> : () -> ()
    %cst_14 = arith.constant dense<0.000000e+00> : vector<2x8x8xf32>
    %37 = tpu.matmul %36, %21, %cst_14 {dimension_numbers = #tpu.dot_dimension_numbers<[2], [1], [1], [2], [0, 0, 0, 1, 1, 2], [0], [0]>} : vector<2x8x8xf32>, vector<2x8x8xf32>, vector<2x8x8xf32> -> vector<2x8x8xf32>
    "tpu.trace_stop"() : () -> ()
    %38 = vector.extract_strided_slice %12 {offsets = [0, 0, 8], sizes = [2, 8, 8], strides = [1, 1, 1]} : vector<2x8x32xf32> to vector<2x8x8xf32>
    %39 = vector.extract_strided_slice %14 {offsets = [0, 0, 8], sizes = [2, 8, 8], strides = [1, 1, 1]} : vector<2x8x32xf32> to vector<2x8x8xf32>
    %40 = vector.extract_strided_slice %16 {offsets = [0, 0, 8], sizes = [2, 8, 8], strides = [1, 1, 1]} : vector<2x8x32xf32> to vector<2x8x8xf32>
    "tpu.trace_start"() <{level = 10 : i32, message = "bqd,bkd->bqk"}> : () -> ()
    %cst_15 = arith.constant dense<0.000000e+00> : vector<2x8x8xf32>
    %41 = tpu.matmul %38, %39, %cst_15 {dimension_numbers = #tpu.dot_dimension_numbers<[2], [2], [1], [1], [0, 0, 0, 1, 1, 1], [0], [0]>} : vector<2x8x8xf32>, vector<2x8x8xf32>, vector<2x8x8xf32> -> vector<2x8x8xf32>
    "tpu.trace_stop"() : () -> ()
    %cst_16 = arith.constant 0.353553385 : f32
    %42 = vector.broadcast %cst_16 : f32 to vector<2x8x8xf32>
    %43 = arith.mulf %41, %42 : vector<2x8x8xf32>
    %44 = vector.broadcast %18 : vector<1x8x8xf32> to vector<2x8x8xf32>
    %45 = arith.addf %43, %44 : vector<2x8x8xf32>
    %cst_17 = arith.constant dense<0xFF800000> : vector<2x8xf32>
    %46 = vector.multi_reduction <maximumf>, %45, %cst_17 [2] : vector<2x8x8xf32> to vector<2x8xf32>
    %47 = vector.shape_cast %46 : vector<2x8xf32> to vector<2x8x1xf32>
    %48 = vector.broadcast %47 : vector<2x8x1xf32> to vector<2x8x8xf32>
    %49 = arith.subf %45, %48 : vector<2x8x8xf32>
    %50 = math.exp %49 : vector<2x8x8xf32>
    %cst_18 = arith.constant dense<0.000000e+00> : vector<2x8xf32>
    %51 = vector.multi_reduction <add>, %50, %cst_18 [2] : vector<2x8x8xf32> to vector<2x8xf32>
    %52 = vector.shape_cast %51 : vector<2x8xf32> to vector<2x8x1xf32>
    %53 = tpu.reciprocal %52 {approx = true} : vector<2x8x1xf32> -> vector<2x8x1xf32>
    %54 = vector.broadcast %53 : vector<2x8x1xf32> to vector<2x8x8xf32>
    %55 = arith.mulf %50, %54 : vector<2x8x8xf32>
    "tpu.trace_start"() <{level = 10 : i32, message = "bqk,bkd->bqd"}> : () -> ()
    %cst_19 = arith.constant dense<0.000000e+00> : vector<2x8x8xf32>
    %56 = tpu.matmul %55, %40, %cst_19 {dimension_numbers = #tpu.dot_dimension_numbers<[2], [1], [1], [2], [0, 0, 0, 1, 1, 2], [0], [0]>} : vector<2x8x8xf32>, vector<2x8x8xf32>, vector<2x8x8xf32> -> vector<2x8x8xf32>
    "tpu.trace_stop"() : () -> ()
    %57 = vector.extract_strided_slice %12 {offsets = [0, 0, 16], sizes = [2, 8, 8], strides = [1, 1, 1]} : vector<2x8x32xf32> to vector<2x8x8xf32>
    %58 = vector.extract_strided_slice %14 {offsets = [0, 0, 16], sizes = [2, 8, 8], strides = [1, 1, 1]} : vector<2x8x32xf32> to vector<2x8x8xf32>
    %59 = vector.extract_strided_slice %16 {offsets = [0, 0, 16], sizes = [2, 8, 8], strides = [1, 1, 1]} : vector<2x8x32xf32> to vector<2x8x8xf32>
    "tpu.trace_start"() <{level = 10 : i32, message = "bqd,bkd->bqk"}> : () -> ()
    %cst_20 = arith.constant dense<0.000000e+00> : vector<2x8x8xf32>
    %60 = tpu.matmul %57, %58, %cst_20 {dimension_numbers = #tpu.dot_dimension_numbers<[2], [2], [1], [1], [0, 0, 0, 1, 1, 1], [0], [0]>} : vector<2x8x8xf32>, vector<2x8x8xf32>, vector<2x8x8xf32> -> vector<2x8x8xf32>
    "tpu.trace_stop"() : () -> ()
    %cst_21 = arith.constant 0.353553385 : f32
    %61 = vector.broadcast %cst_21 : f32 to vector<2x8x8xf32>
    %62 = arith.mulf %60, %61 : vector<2x8x8xf32>
    %63 = vector.broadcast %18 : vector<1x8x8xf32> to vector<2x8x8xf32>
    %64 = arith.addf %62, %63 : vector<2x8x8xf32>
    %cst_22 = arith.constant dense<0xFF800000> : vector<2x8xf32>
    %65 = vector.multi_reduction <maximumf>, %64, %cst_22 [2] : vector<2x8x8xf32> to vector<2x8xf32>
    %66 = vector.shape_cast %65 : vector<2x8xf32> to vector<2x8x1xf32>
    %67 = vector.broadcast %66 : vector<2x8x1xf32> to vector<2x8x8xf32>
    %68 = arith.subf %64, %67 : vector<2x8x8xf32>
    %69 = math.exp %68 : vector<2x8x8xf32>
    %cst_23 = arith.constant dense<0.000000e+00> : vector<2x8xf32>
    %70 = vector.multi_reduction <add>, %69, %cst_23 [2] : vector<2x8x8xf32> to vector<2x8xf32>
    %71 = vector.shape_cast %70 : vector<2x8xf32> to vector<2x8x1xf32>
    %72 = tpu.reciprocal %71 {approx = true} : vector<2x8x1xf32> -> vector<2x8x1xf32>
    %73 = vector.broadcast %72 : vector<2x8x1xf32> to vector<2x8x8xf32>
    %74 = arith.mulf %69, %73 : vector<2x8x8xf32>
    "tpu.trace_start"() <{level = 10 : i32, message = "bqk,bkd->bqd"}> : () -> ()
    %cst_24 = arith.constant dense<0.000000e+00> : vector<2x8x8xf32>
    %75 = tpu.matmul %74, %59, %cst_24 {dimension_numbers = #tpu.dot_dimension_numbers<[2], [1], [1], [2], [0, 0, 0, 1, 1, 2], [0], [0]>} : vector<2x8x8xf32>, vector<2x8x8xf32>, vector<2x8x8xf32> -> vector<2x8x8xf32>
    "tpu.trace_stop"() : () -> ()
    %76 = vector.extract_strided_slice %12 {offsets = [0, 0, 24], sizes = [2, 8, 8], strides = [1, 1, 1]} : vector<2x8x32xf32> to vector<2x8x8xf32>
    %77 = vector.extract_strided_slice %14 {offsets = [0, 0, 24], sizes = [2, 8, 8], strides = [1, 1, 1]} : vector<2x8x32xf32> to vector<2x8x8xf32>
    %78 = vector.extract_strided_slice %16 {offsets = [0, 0, 24], sizes = [2, 8, 8], strides = [1, 1, 1]} : vector<2x8x32xf32> to vector<2x8x8xf32>
    "tpu.trace_start"() <{level = 10 : i32, message = "bqd,bkd->bqk"}> : () -> ()
    %cst_25 = arith.constant dense<0.000000e+00> : vector<2x8x8xf32>
    %79 = tpu.matmul %76, %77, %cst_25 {dimension_numbers = #tpu.dot_dimension_numbers<[2], [2], [1], [1], [0, 0, 0, 1, 1, 1], [0], [0]>} : vector<2x8x8xf32>, vector<2x8x8xf32>, vector<2x8x8xf32> -> vector<2x8x8xf32>
    "tpu.trace_stop"() : () -> ()
    %cst_26 = arith.constant 0.353553385 : f32
    %80 = vector.broadcast %cst_26 : f32 to vector<2x8x8xf32>
    %81 = arith.mulf %79, %80 : vector<2x8x8xf32>
    %82 = vector.broadcast %18 : vector<1x8x8xf32> to vector<2x8x8xf32>
    %83 = arith.addf %81, %82 : vector<2x8x8xf32>
    %cst_27 = arith.constant dense<0xFF800000> : vector<2x8xf32>
    %84 = vector.multi_reduction <maximumf>, %83, %cst_27 [2] : vector<2x8x8xf32> to vector<2x8xf32>
    %85 = vector.shape_cast %84 : vector<2x8xf32> to vector<2x8x1xf32>
    %86 = vector.broadcast %85 : vector<2x8x1xf32> to vector<2x8x8xf32>
    %87 = arith.subf %83, %86 : vector<2x8x8xf32>
    %88 = math.exp %87 : vector<2x8x8xf32>
    %cst_28 = arith.constant dense<0.000000e+00> : vector<2x8xf32>
    %89 = vector.multi_reduction <add>, %88, %cst_28 [2] : vector<2x8x8xf32> to vector<2x8xf32>
    %90 = vector.shape_cast %89 : vector<2x8xf32> to vector<2x8x1xf32>
    %91 = tpu.reciprocal %90 {approx = true} : vector<2x8x1xf32> -> vector<2x8x1xf32>
    %92 = vector.broadcast %91 : vector<2x8x1xf32> to vector<2x8x8xf32>
    %93 = arith.mulf %88, %92 : vector<2x8x8xf32>
    "tpu.trace_start"() <{level = 10 : i32, message = "bqk,bkd->bqd"}> : () -> ()
    %cst_29 = arith.constant dense<0.000000e+00> : vector<2x8x8xf32>
    %94 = tpu.matmul %93, %78, %cst_29 {dimension_numbers = #tpu.dot_dimension_numbers<[2], [1], [1], [2], [0, 0, 0, 1, 1, 2], [0], [0]>} : vector<2x8x8xf32>, vector<2x8x8xf32>, vector<2x8x8xf32> -> vector<2x8x8xf32>
    "tpu.trace_stop"() : () -> ()
    %95 = tpu.concatenate %37, %56, %75, %94 in 2 : vector<2x8x8xf32>, vector<2x8x8xf32>, vector<2x8x8xf32>, vector<2x8x8xf32> -> vector<2x8x32xf32>
    %96 = vector.shape_cast %95 : vector<2x8x32xf32> to vector<16x32xf32>
    %c0_30 = arith.constant 0 : index
    %c0_31 = arith.constant 0 : index
    %c0_32 = arith.constant 0 : index
    %97 = vector.load %arg7[%c0_30, %c0_31, %c0_32] : memref<1x32x32xf32, #tpu.memory_space<vmem>>, vector<1x32x32xf32>
    %98 = vector.shape_cast %97 : vector<1x32x32xf32> to vector<32x32xf32>
    %cst_33 = arith.constant dense<0.000000e+00> : vector<16x32xf32>
    %99 = tpu.matmul %96, %98, %cst_33 {dimension_numbers = #tpu.dot_dimension_numbers<[1], [0], [0], [1], [0, 0, 1, 1], [], []>} : vector<16x32xf32>, vector<32x32xf32>, vector<16x32xf32> -> vector<16x32xf32>
    %c0_34 = arith.constant 0 : index
    %c0_35 = arith.constant 0 : index
    %c0_36 = arith.constant 0 : index
    %100 = vector.load %arg8[%c0_34, %c0_35, %c0_36] : memref<1x1x32xf32, #tpu.memory_space<vmem>>, vector<1x1x32xf32>
    %101 = vector.shape_cast %100 : vector<1x1x32xf32> to vector<1x32xf32>
    %102 = vector.broadcast %101 : vector<1x32xf32> to vector<16x32xf32>
    %103 = arith.addf %99, %102 : vector<16x32xf32>
    %104 = arith.addf %3, %103 : vector<16x32xf32>
    %c0_37 = arith.constant 0 : index
    %c0_38 = arith.constant 0 : index
    %c0_39 = arith.constant 0 : index
    %105 = vector.load %arg9[%c0_37, %c0_38, %c0_39] : memref<1x1x32xf32, #tpu.memory_space<vmem>>, vector<1x1x32xf32>
    %106 = vector.shape_cast %105 : vector<1x1x32xf32> to vector<1x32xf32>
    %c0_40 = arith.constant 0 : index
    %c0_41 = arith.constant 0 : index
    %c0_42 = arith.constant 0 : index
    %107 = vector.load %arg10[%c0_40, %c0_41, %c0_42] : memref<1x1x32xf32, #tpu.memory_space<vmem>>, vector<1x1x32xf32>
    %108 = vector.shape_cast %107 : vector<1x1x32xf32> to vector<1x32xf32>
    %cst_43 = arith.constant dense<0.000000e+00> : vector<16xf32>
    %109 = vector.multi_reduction <add>, %104, %cst_43 [1] : vector<16x32xf32> to vector<16xf32>
    %110 = vector.shape_cast %109 : vector<16xf32> to vector<16x1xf32>
    %cst_44 = arith.constant 3.200000e+01 : f32
    %111 = vector.broadcast %cst_44 : f32 to vector<16x1xf32>
    %112 = arith.divf %110, %111 : vector<16x1xf32>
    %113 = vector.broadcast %112 : vector<16x1xf32> to vector<16x32xf32>
    %114 = arith.subf %104, %113 : vector<16x32xf32>
    %115 = arith.mulf %114, %114 : vector<16x32xf32>
    %cst_45 = arith.constant dense<0.000000e+00> : vector<16xf32>
    %116 = vector.multi_reduction <add>, %115, %cst_45 [1] : vector<16x32xf32> to vector<16xf32>
    %117 = vector.shape_cast %116 : vector<16xf32> to vector<16x1xf32>
    %cst_46 = arith.constant 3.200000e+01 : f32
    %118 = vector.broadcast %cst_46 : f32 to vector<16x1xf32>
    %119 = arith.divf %117, %118 : vector<16x1xf32>
    %120 = vector.broadcast %112 : vector<16x1xf32> to vector<16x32xf32>
    %121 = arith.subf %104, %120 : vector<16x32xf32>
    %cst_47 = arith.constant 9.99999974E-6 : f32
    %122 = vector.broadcast %cst_47 : f32 to vector<16x1xf32>
    %123 = arith.addf %119, %122 : vector<16x1xf32>
    %124 = math.rsqrt %123 : vector<16x1xf32>
    %125 = vector.broadcast %124 : vector<16x1xf32> to vector<16x32xf32>
    %126 = arith.mulf %121, %125 : vector<16x32xf32>
    %127 = vector.broadcast %106 : vector<1x32xf32> to vector<16x32xf32>
    %128 = arith.mulf %126, %127 : vector<16x32xf32>
    %129 = vector.broadcast %108 : vector<1x32xf32> to vector<16x32xf32>
    %130 = arith.addf %128, %129 : vector<16x32xf32>
    %c0_48 = arith.constant 0 : index
    %c0_49 = arith.constant 0 : index
    %131 = vector.load %arg2[%c0_48, %c0_49] : memref<16x32xf32, #tpu.memory_space<vmem>>, vector<16x32xf32>
    %c0_50 = arith.constant 0 : index
    %c0_51 = arith.constant 0 : index
    %c0_52 = arith.constant 0 : index
    %132 = vector.load %arg11[%c0_50, %c0_51, %c0_52] : memref<1x32x32xf32, #tpu.memory_space<vmem>>, vector<1x32x32xf32>
    %133 = vector.shape_cast %132 : vector<1x32x32xf32> to vector<32x32xf32>
    %cst_53 = arith.constant dense<0.000000e+00> : vector<16x32xf32>
    %134 = tpu.matmul %130, %133, %cst_53 {dimension_numbers = #tpu.dot_dimension_numbers<[1], [0], [0], [1], [0, 0, 1, 1], [], []>} : vector<16x32xf32>, vector<32x32xf32>, vector<16x32xf32> -> vector<16x32xf32>
    %c0_54 = arith.constant 0 : index
    %c0_55 = arith.constant 0 : index
    %c0_56 = arith.constant 0 : index
    %135 = vector.load %arg12[%c0_54, %c0_55, %c0_56] : memref<1x1x32xf32, #tpu.memory_space<vmem>>, vector<1x1x32xf32>
    %136 = vector.shape_cast %135 : vector<1x1x32xf32> to vector<1x32xf32>
    %137 = vector.broadcast %136 : vector<1x32xf32> to vector<16x32xf32>
    %138 = arith.addf %134, %137 : vector<16x32xf32>
    %139 = vector.shape_cast %138 : vector<16x32xf32> to vector<2x8x32xf32>
    %c0_57 = arith.constant 0 : index
    %c0_58 = arith.constant 0 : index
    %c0_59 = arith.constant 0 : index
    %140 = vector.load %arg13[%c0_57, %c0_58, %c0_59] : memref<1x32x64xf32, #tpu.memory_space<vmem>>, vector<1x32x64xf32>
    %141 = vector.shape_cast %140 : vector<1x32x64xf32> to vector<32x64xf32>
    %cst_60 = arith.constant dense<0.000000e+00> : vector<16x64xf32>
    %142 = tpu.matmul %131, %141, %cst_60 {dimension_numbers = #tpu.dot_dimension_numbers<[1], [0], [0], [1], [0, 0, 1, 1], [], []>} : vector<16x32xf32>, vector<32x64xf32>, vector<16x64xf32> -> vector<16x64xf32>
    %c0_61 = arith.constant 0 : index
    %c0_62 = arith.constant 0 : index
    %c0_63 = arith.constant 0 : index
    %143 = vector.load %arg14[%c0_61, %c0_62, %c0_63] : memref<1x1x64xf32, #tpu.memory_space<vmem>>, vector<1x1x64xf32>
    %144 = vector.shape_cast %143 : vector<1x1x64xf32> to vector<1x64xf32>
    %145 = vector.broadcast %144 : vector<1x64xf32> to vector<16x64xf32>
    %146 = arith.addf %142, %145 : vector<16x64xf32>
    %147 = vector.extract_strided_slice %146 {offsets = [0, 0], sizes = [16, 32], strides = [1, 1]} : vector<16x64xf32> to vector<16x32xf32>
    %148 = vector.shape_cast %147 : vector<16x32xf32> to vector<2x8x32xf32>
    %149 = vector.extract_strided_slice %146 {offsets = [0, 32], sizes = [16, 32], strides = [1, 1]} : vector<16x64xf32> to vector<16x32xf32>
    %150 = vector.shape_cast %149 : vector<16x32xf32> to vector<2x8x32xf32>
    %c0_64 = arith.constant 0 : index
    %c0_65 = arith.constant 0 : index
    %151 = vector.load %arg4[%c0_64, %c0_65] : memref<8x8xf32, #tpu.memory_space<vmem>>, vector<8x8xf32>
    %152 = vector.shape_cast %151 : vector<8x8xf32> to vector<1x8x8xf32>
    %153 = vector.extract_strided_slice %139 {offsets = [0, 0, 0], sizes = [2, 8, 8], strides = [1, 1, 1]} : vector<2x8x32xf32> to vector<2x8x8xf32>
    %154 = vector.extract_strided_slice %148 {offsets = [0, 0, 0], sizes = [2, 8, 8], strides = [1, 1, 1]} : vector<2x8x32xf32> to vector<2x8x8xf32>
    %155 = vector.extract_strided_slice %150 {offsets = [0, 0, 0], sizes = [2, 8, 8], strides = [1, 1, 1]} : vector<2x8x32xf32> to vector<2x8x8xf32>
    "tpu.trace_start"() <{level = 10 : i32, message = "bqd,bkd->bqk"}> : () -> ()
    %cst_66 = arith.constant dense<0.000000e+00> : vector<2x8x8xf32>
    %156 = tpu.matmul %153, %154, %cst_66 {dimension_numbers = #tpu.dot_dimension_numbers<[2], [2], [1], [1], [0, 0, 0, 1, 1, 1], [0], [0]>} : vector<2x8x8xf32>, vector<2x8x8xf32>, vector<2x8x8xf32> -> vector<2x8x8xf32>
    "tpu.trace_stop"() : () -> ()
    %cst_67 = arith.constant 0.353553385 : f32
    %157 = vector.broadcast %cst_67 : f32 to vector<2x8x8xf32>
    %158 = arith.mulf %156, %157 : vector<2x8x8xf32>
    %159 = vector.broadcast %152 : vector<1x8x8xf32> to vector<2x8x8xf32>
    %160 = arith.addf %158, %159 : vector<2x8x8xf32>
    %cst_68 = arith.constant dense<0xFF800000> : vector<2x8xf32>
    %161 = vector.multi_reduction <maximumf>, %160, %cst_68 [2] : vector<2x8x8xf32> to vector<2x8xf32>
    %162 = vector.shape_cast %161 : vector<2x8xf32> to vector<2x8x1xf32>
    %163 = vector.broadcast %162 : vector<2x8x1xf32> to vector<2x8x8xf32>
    %164 = arith.subf %160, %163 : vector<2x8x8xf32>
    %165 = math.exp %164 : vector<2x8x8xf32>
    %cst_69 = arith.constant dense<0.000000e+00> : vector<2x8xf32>
    %166 = vector.multi_reduction <add>, %165, %cst_69 [2] : vector<2x8x8xf32> to vector<2x8xf32>
    %167 = vector.shape_cast %166 : vector<2x8xf32> to vector<2x8x1xf32>
    %168 = tpu.reciprocal %167 {approx = true} : vector<2x8x1xf32> -> vector<2x8x1xf32>
    %169 = vector.broadcast %168 : vector<2x8x1xf32> to vector<2x8x8xf32>
    %170 = arith.mulf %165, %169 : vector<2x8x8xf32>
    "tpu.trace_start"() <{level = 10 : i32, message = "bqk,bkd->bqd"}> : () -> ()
    %cst_70 = arith.constant dense<0.000000e+00> : vector<2x8x8xf32>
    %171 = tpu.matmul %170, %155, %cst_70 {dimension_numbers = #tpu.dot_dimension_numbers<[2], [1], [1], [2], [0, 0, 0, 1, 1, 2], [0], [0]>} : vector<2x8x8xf32>, vector<2x8x8xf32>, vector<2x8x8xf32> -> vector<2x8x8xf32>
    "tpu.trace_stop"() : () -> ()
    %172 = vector.extract_strided_slice %139 {offsets = [0, 0, 8], sizes = [2, 8, 8], strides = [1, 1, 1]} : vector<2x8x32xf32> to vector<2x8x8xf32>
    %173 = vector.extract_strided_slice %148 {offsets = [0, 0, 8], sizes = [2, 8, 8], strides = [1, 1, 1]} : vector<2x8x32xf32> to vector<2x8x8xf32>
    %174 = vector.extract_strided_slice %150 {offsets = [0, 0, 8], sizes = [2, 8, 8], strides = [1, 1, 1]} : vector<2x8x32xf32> to vector<2x8x8xf32>
    "tpu.trace_start"() <{level = 10 : i32, message = "bqd,bkd->bqk"}> : () -> ()
    %cst_71 = arith.constant dense<0.000000e+00> : vector<2x8x8xf32>
    %175 = tpu.matmul %172, %173, %cst_71 {dimension_numbers = #tpu.dot_dimension_numbers<[2], [2], [1], [1], [0, 0, 0, 1, 1, 1], [0], [0]>} : vector<2x8x8xf32>, vector<2x8x8xf32>, vector<2x8x8xf32> -> vector<2x8x8xf32>
    "tpu.trace_stop"() : () -> ()
    %cst_72 = arith.constant 0.353553385 : f32
    %176 = vector.broadcast %cst_72 : f32 to vector<2x8x8xf32>
    %177 = arith.mulf %175, %176 : vector<2x8x8xf32>
    %178 = vector.broadcast %152 : vector<1x8x8xf32> to vector<2x8x8xf32>
    %179 = arith.addf %177, %178 : vector<2x8x8xf32>
    %cst_73 = arith.constant dense<0xFF800000> : vector<2x8xf32>
    %180 = vector.multi_reduction <maximumf>, %179, %cst_73 [2] : vector<2x8x8xf32> to vector<2x8xf32>
    %181 = vector.shape_cast %180 : vector<2x8xf32> to vector<2x8x1xf32>
    %182 = vector.broadcast %181 : vector<2x8x1xf32> to vector<2x8x8xf32>
    %183 = arith.subf %179, %182 : vector<2x8x8xf32>
    %184 = math.exp %183 : vector<2x8x8xf32>
    %cst_74 = arith.constant dense<0.000000e+00> : vector<2x8xf32>
    %185 = vector.multi_reduction <add>, %184, %cst_74 [2] : vector<2x8x8xf32> to vector<2x8xf32>
    %186 = vector.shape_cast %185 : vector<2x8xf32> to vector<2x8x1xf32>
    %187 = tpu.reciprocal %186 {approx = true} : vector<2x8x1xf32> -> vector<2x8x1xf32>
    %188 = vector.broadcast %187 : vector<2x8x1xf32> to vector<2x8x8xf32>
    %189 = arith.mulf %184, %188 : vector<2x8x8xf32>
    "tpu.trace_start"() <{level = 10 : i32, message = "bqk,bkd->bqd"}> : () -> ()
    %cst_75 = arith.constant dense<0.000000e+00> : vector<2x8x8xf32>
    %190 = tpu.matmul %189, %174, %cst_75 {dimension_numbers = #tpu.dot_dimension_numbers<[2], [1], [1], [2], [0, 0, 0, 1, 1, 2], [0], [0]>} : vector<2x8x8xf32>, vector<2x8x8xf32>, vector<2x8x8xf32> -> vector<2x8x8xf32>
    "tpu.trace_stop"() : () -> ()
    %191 = vector.extract_strided_slice %139 {offsets = [0, 0, 16], sizes = [2, 8, 8], strides = [1, 1, 1]} : vector<2x8x32xf32> to vector<2x8x8xf32>
    %192 = vector.extract_strided_slice %148 {offsets = [0, 0, 16], sizes = [2, 8, 8], strides = [1, 1, 1]} : vector<2x8x32xf32> to vector<2x8x8xf32>
    %193 = vector.extract_strided_slice %150 {offsets = [0, 0, 16], sizes = [2, 8, 8], strides = [1, 1, 1]} : vector<2x8x32xf32> to vector<2x8x8xf32>
    "tpu.trace_start"() <{level = 10 : i32, message = "bqd,bkd->bqk"}> : () -> ()
    %cst_76 = arith.constant dense<0.000000e+00> : vector<2x8x8xf32>
    %194 = tpu.matmul %191, %192, %cst_76 {dimension_numbers = #tpu.dot_dimension_numbers<[2], [2], [1], [1], [0, 0, 0, 1, 1, 1], [0], [0]>} : vector<2x8x8xf32>, vector<2x8x8xf32>, vector<2x8x8xf32> -> vector<2x8x8xf32>
    "tpu.trace_stop"() : () -> ()
    %cst_77 = arith.constant 0.353553385 : f32
    %195 = vector.broadcast %cst_77 : f32 to vector<2x8x8xf32>
    %196 = arith.mulf %194, %195 : vector<2x8x8xf32>
    %197 = vector.broadcast %152 : vector<1x8x8xf32> to vector<2x8x8xf32>
    %198 = arith.addf %196, %197 : vector<2x8x8xf32>
    %cst_78 = arith.constant dense<0xFF800000> : vector<2x8xf32>
    %199 = vector.multi_reduction <maximumf>, %198, %cst_78 [2] : vector<2x8x8xf32> to vector<2x8xf32>
    %200 = vector.shape_cast %199 : vector<2x8xf32> to vector<2x8x1xf32>
    %201 = vector.broadcast %200 : vector<2x8x1xf32> to vector<2x8x8xf32>
    %202 = arith.subf %198, %201 : vector<2x8x8xf32>
    %203 = math.exp %202 : vector<2x8x8xf32>
    %cst_79 = arith.constant dense<0.000000e+00> : vector<2x8xf32>
    %204 = vector.multi_reduction <add>, %203, %cst_79 [2] : vector<2x8x8xf32> to vector<2x8xf32>
    %205 = vector.shape_cast %204 : vector<2x8xf32> to vector<2x8x1xf32>
    %206 = tpu.reciprocal %205 {approx = true} : vector<2x8x1xf32> -> vector<2x8x1xf32>
    %207 = vector.broadcast %206 : vector<2x8x1xf32> to vector<2x8x8xf32>
    %208 = arith.mulf %203, %207 : vector<2x8x8xf32>
    "tpu.trace_start"() <{level = 10 : i32, message = "bqk,bkd->bqd"}> : () -> ()
    %cst_80 = arith.constant dense<0.000000e+00> : vector<2x8x8xf32>
    %209 = tpu.matmul %208, %193, %cst_80 {dimension_numbers = #tpu.dot_dimension_numbers<[2], [1], [1], [2], [0, 0, 0, 1, 1, 2], [0], [0]>} : vector<2x8x8xf32>, vector<2x8x8xf32>, vector<2x8x8xf32> -> vector<2x8x8xf32>
    "tpu.trace_stop"() : () -> ()
    %210 = vector.extract_strided_slice %139 {offsets = [0, 0, 24], sizes = [2, 8, 8], strides = [1, 1, 1]} : vector<2x8x32xf32> to vector<2x8x8xf32>
    %211 = vector.extract_strided_slice %148 {offsets = [0, 0, 24], sizes = [2, 8, 8], strides = [1, 1, 1]} : vector<2x8x32xf32> to vector<2x8x8xf32>
    %212 = vector.extract_strided_slice %150 {offsets = [0, 0, 24], sizes = [2, 8, 8], strides = [1, 1, 1]} : vector<2x8x32xf32> to vector<2x8x8xf32>
    "tpu.trace_start"() <{level = 10 : i32, message = "bqd,bkd->bqk"}> : () -> ()
    %cst_81 = arith.constant dense<0.000000e+00> : vector<2x8x8xf32>
    %213 = tpu.matmul %210, %211, %cst_81 {dimension_numbers = #tpu.dot_dimension_numbers<[2], [2], [1], [1], [0, 0, 0, 1, 1, 1], [0], [0]>} : vector<2x8x8xf32>, vector<2x8x8xf32>, vector<2x8x8xf32> -> vector<2x8x8xf32>
    "tpu.trace_stop"() : () -> ()
    %cst_82 = arith.constant 0.353553385 : f32
    %214 = vector.broadcast %cst_82 : f32 to vector<2x8x8xf32>
    %215 = arith.mulf %213, %214 : vector<2x8x8xf32>
    %216 = vector.broadcast %152 : vector<1x8x8xf32> to vector<2x8x8xf32>
    %217 = arith.addf %215, %216 : vector<2x8x8xf32>
    %cst_83 = arith.constant dense<0xFF800000> : vector<2x8xf32>
    %218 = vector.multi_reduction <maximumf>, %217, %cst_83 [2] : vector<2x8x8xf32> to vector<2x8xf32>
    %219 = vector.shape_cast %218 : vector<2x8xf32> to vector<2x8x1xf32>
    %220 = vector.broadcast %219 : vector<2x8x1xf32> to vector<2x8x8xf32>
    %221 = arith.subf %217, %220 : vector<2x8x8xf32>
    %222 = math.exp %221 : vector<2x8x8xf32>
    %cst_84 = arith.constant dense<0.000000e+00> : vector<2x8xf32>
    %223 = vector.multi_reduction <add>, %222, %cst_84 [2] : vector<2x8x8xf32> to vector<2x8xf32>
    %224 = vector.shape_cast %223 : vector<2x8xf32> to vector<2x8x1xf32>
    %225 = tpu.reciprocal %224 {approx = true} : vector<2x8x1xf32> -> vector<2x8x1xf32>
    %226 = vector.broadcast %225 : vector<2x8x1xf32> to vector<2x8x8xf32>
    %227 = arith.mulf %222, %226 : vector<2x8x8xf32>
    "tpu.trace_start"() <{level = 10 : i32, message = "bqk,bkd->bqd"}> : () -> ()
    %cst_85 = arith.constant dense<0.000000e+00> : vector<2x8x8xf32>
    %228 = tpu.matmul %227, %212, %cst_85 {dimension_numbers = #tpu.dot_dimension_numbers<[2], [1], [1], [2], [0, 0, 0, 1, 1, 2], [0], [0]>} : vector<2x8x8xf32>, vector<2x8x8xf32>, vector<2x8x8xf32> -> vector<2x8x8xf32>
    "tpu.trace_stop"() : () -> ()
    %229 = tpu.concatenate %171, %190, %209, %228 in 2 : vector<2x8x8xf32>, vector<2x8x8xf32>, vector<2x8x8xf32>, vector<2x8x8xf32> -> vector<2x8x32xf32>
    %230 = vector.shape_cast %229 : vector<2x8x32xf32> to vector<16x32xf32>
    %c0_86 = arith.constant 0 : index
    %c0_87 = arith.constant 0 : index
    %c0_88 = arith.constant 0 : index
    %231 = vector.load %arg15[%c0_86, %c0_87, %c0_88] : memref<1x32x32xf32, #tpu.memory_space<vmem>>, vector<1x32x32xf32>
    %232 = vector.shape_cast %231 : vector<1x32x32xf32> to vector<32x32xf32>
    %cst_89 = arith.constant dense<0.000000e+00> : vector<16x32xf32>
    %233 = tpu.matmul %230, %232, %cst_89 {dimension_numbers = #tpu.dot_dimension_numbers<[1], [0], [0], [1], [0, 0, 1, 1], [], []>} : vector<16x32xf32>, vector<32x32xf32>, vector<16x32xf32> -> vector<16x32xf32>
    %c0_90 = arith.constant 0 : index
    %c0_91 = arith.constant 0 : index
    %c0_92 = arith.constant 0 : index
    %234 = vector.load %arg16[%c0_90, %c0_91, %c0_92] : memref<1x1x32xf32, #tpu.memory_space<vmem>>, vector<1x1x32xf32>
    %235 = vector.shape_cast %234 : vector<1x1x32xf32> to vector<1x32xf32>
    %236 = vector.broadcast %235 : vector<1x32xf32> to vector<16x32xf32>
    %237 = arith.addf %233, %236 : vector<16x32xf32>
    %238 = arith.addf %130, %237 : vector<16x32xf32>
    %c0_93 = arith.constant 0 : index
    %c0_94 = arith.constant 0 : index
    %c0_95 = arith.constant 0 : index
    %239 = vector.load %arg17[%c0_93, %c0_94, %c0_95] : memref<1x1x32xf32, #tpu.memory_space<vmem>>, vector<1x1x32xf32>
    %240 = vector.shape_cast %239 : vector<1x1x32xf32> to vector<1x32xf32>
    %c0_96 = arith.constant 0 : index
    %c0_97 = arith.constant 0 : index
    %c0_98 = arith.constant 0 : index
    %241 = vector.load %arg18[%c0_96, %c0_97, %c0_98] : memref<1x1x32xf32, #tpu.memory_space<vmem>>, vector<1x1x32xf32>
    %242 = vector.shape_cast %241 : vector<1x1x32xf32> to vector<1x32xf32>
    %cst_99 = arith.constant dense<0.000000e+00> : vector<16xf32>
    %243 = vector.multi_reduction <add>, %238, %cst_99 [1] : vector<16x32xf32> to vector<16xf32>
    %244 = vector.shape_cast %243 : vector<16xf32> to vector<16x1xf32>
    %cst_100 = arith.constant 3.200000e+01 : f32
    %245 = vector.broadcast %cst_100 : f32 to vector<16x1xf32>
    %246 = arith.divf %244, %245 : vector<16x1xf32>
    %247 = vector.broadcast %246 : vector<16x1xf32> to vector<16x32xf32>
    %248 = arith.subf %238, %247 : vector<16x32xf32>
    %249 = arith.mulf %248, %248 : vector<16x32xf32>
    %cst_101 = arith.constant dense<0.000000e+00> : vector<16xf32>
    %250 = vector.multi_reduction <add>, %249, %cst_101 [1] : vector<16x32xf32> to vector<16xf32>
    %251 = vector.shape_cast %250 : vector<16xf32> to vector<16x1xf32>
    %cst_102 = arith.constant 3.200000e+01 : f32
    %252 = vector.broadcast %cst_102 : f32 to vector<16x1xf32>
    %253 = arith.divf %251, %252 : vector<16x1xf32>
    %254 = vector.broadcast %246 : vector<16x1xf32> to vector<16x32xf32>
    %255 = arith.subf %238, %254 : vector<16x32xf32>
    %cst_103 = arith.constant 9.99999974E-6 : f32
    %256 = vector.broadcast %cst_103 : f32 to vector<16x1xf32>
    %257 = arith.addf %253, %256 : vector<16x1xf32>
    %258 = math.rsqrt %257 : vector<16x1xf32>
    %259 = vector.broadcast %258 : vector<16x1xf32> to vector<16x32xf32>
    %260 = arith.mulf %255, %259 : vector<16x32xf32>
    %261 = vector.broadcast %240 : vector<1x32xf32> to vector<16x32xf32>
    %262 = arith.mulf %260, %261 : vector<16x32xf32>
    %263 = vector.broadcast %242 : vector<1x32xf32> to vector<16x32xf32>
    %264 = arith.addf %262, %263 : vector<16x32xf32>
    %c0_104 = arith.constant 0 : index
    %c0_105 = arith.constant 0 : index
    %c0_106 = arith.constant 0 : index
    %265 = vector.load %arg19[%c0_104, %c0_105, %c0_106] : memref<1x32x128xf32, #tpu.memory_space<vmem>>, vector<1x32x128xf32>
    %266 = vector.shape_cast %265 : vector<1x32x128xf32> to vector<32x128xf32>
    %cst_107 = arith.constant dense<0.000000e+00> : vector<16x128xf32>
    %267 = tpu.matmul %264, %266, %cst_107 {dimension_numbers = #tpu.dot_dimension_numbers<[1], [0], [0], [1], [0, 0, 1, 1], [], []>} : vector<16x32xf32>, vector<32x128xf32>, vector<16x128xf32> -> vector<16x128xf32>
    %c0_108 = arith.constant 0 : index
    %c0_109 = arith.constant 0 : index
    %c0_110 = arith.constant 0 : index
    %268 = vector.load %arg20[%c0_108, %c0_109, %c0_110] : memref<1x1x128xf32, #tpu.memory_space<vmem>>, vector<1x1x128xf32>
    %269 = vector.shape_cast %268 : vector<1x1x128xf32> to vector<1x128xf32>
    %270 = vector.broadcast %269 : vector<1x128xf32> to vector<16x128xf32>
    %271 = arith.addf %267, %270 : vector<16x128xf32>
    %cst_111 = arith.constant 0.000000e+00 : f32
    %272 = vector.broadcast %cst_111 : f32 to vector<16x128xf32>
    %273 = arith.maximumf %271, %272 : vector<16x128xf32>
    %c0_112 = arith.constant 0 : index
    %c0_113 = arith.constant 0 : index
    %c0_114 = arith.constant 0 : index
    %274 = vector.load %arg21[%c0_112, %c0_113, %c0_114] : memref<1x128x32xf32, #tpu.memory_space<vmem>>, vector<1x128x32xf32>
    %275 = vector.shape_cast %274 : vector<1x128x32xf32> to vector<128x32xf32>
    %cst_115 = arith.constant dense<0.000000e+00> : vector<16x32xf32>
    %276 = tpu.matmul %273, %275, %cst_115 {dimension_numbers = #tpu.dot_dimension_numbers<[1], [0], [0], [1], [0, 0, 1, 1], [], []>} : vector<16x128xf32>, vector<128x32xf32>, vector<16x32xf32> -> vector<16x32xf32>
    %c0_116 = arith.constant 0 : index
    %c0_117 = arith.constant 0 : index
    %c0_118 = arith.constant 0 : index
    %277 = vector.load %arg22[%c0_116, %c0_117, %c0_118] : memref<1x1x32xf32, #tpu.memory_space<vmem>>, vector<1x1x32xf32>
    %278 = vector.shape_cast %277 : vector<1x1x32xf32> to vector<1x32xf32>
    %279 = vector.broadcast %278 : vector<1x32xf32> to vector<16x32xf32>
    %280 = arith.addf %276, %279 : vector<16x32xf32>
    %281 = arith.addf %264, %280 : vector<16x32xf32>
    %c0_119 = arith.constant 0 : index
    %c0_120 = arith.constant 0 : index
    %c0_121 = arith.constant 0 : index
    %282 = vector.load %arg23[%c0_119, %c0_120, %c0_121] : memref<1x1x32xf32, #tpu.memory_space<vmem>>, vector<1x1x32xf32>
    %283 = vector.shape_cast %282 : vector<1x1x32xf32> to vector<1x32xf32>
    %c0_122 = arith.constant 0 : index
    %c0_123 = arith.constant 0 : index
    %c0_124 = arith.constant 0 : index
    %284 = vector.load %arg24[%c0_122, %c0_123, %c0_124] : memref<1x1x32xf32, #tpu.memory_space<vmem>>, vector<1x1x32xf32>
    %285 = vector.shape_cast %284 : vector<1x1x32xf32> to vector<1x32xf32>
    %cst_125 = arith.constant dense<0.000000e+00> : vector<16xf32>
    %286 = vector.multi_reduction <add>, %281, %cst_125 [1] : vector<16x32xf32> to vector<16xf32>
    %287 = vector.shape_cast %286 : vector<16xf32> to vector<16x1xf32>
    %cst_126 = arith.constant 3.200000e+01 : f32
    %288 = vector.broadcast %cst_126 : f32 to vector<16x1xf32>
    %289 = arith.divf %287, %288 : vector<16x1xf32>
    %290 = vector.broadcast %289 : vector<16x1xf32> to vector<16x32xf32>
    %291 = arith.subf %281, %290 : vector<16x32xf32>
    %292 = arith.mulf %291, %291 : vector<16x32xf32>
    %cst_127 = arith.constant dense<0.000000e+00> : vector<16xf32>
    %293 = vector.multi_reduction <add>, %292, %cst_127 [1] : vector<16x32xf32> to vector<16xf32>
    %294 = vector.shape_cast %293 : vector<16xf32> to vector<16x1xf32>
    %cst_128 = arith.constant 3.200000e+01 : f32
    %295 = vector.broadcast %cst_128 : f32 to vector<16x1xf32>
    %296 = arith.divf %294, %295 : vector<16x1xf32>
    %297 = vector.broadcast %289 : vector<16x1xf32> to vector<16x32xf32>
    %298 = arith.subf %281, %297 : vector<16x32xf32>
    %cst_129 = arith.constant 9.99999974E-6 : f32
    %299 = vector.broadcast %cst_129 : f32 to vector<16x1xf32>
    %300 = arith.addf %296, %299 : vector<16x1xf32>
    %301 = math.rsqrt %300 : vector<16x1xf32>
    %302 = vector.broadcast %301 : vector<16x1xf32> to vector<16x32xf32>
    %303 = arith.mulf %298, %302 : vector<16x32xf32>
    %304 = vector.broadcast %283 : vector<1x32xf32> to vector<16x32xf32>
    %305 = arith.mulf %303, %304 : vector<16x32xf32>
    %306 = vector.broadcast %285 : vector<1x32xf32> to vector<16x32xf32>
    %307 = arith.addf %305, %306 : vector<16x32xf32>
    %c0_130 = arith.constant 0 : index
    %c0_131 = arith.constant 0 : index
    %308 = vector.load %arg28[%c0_130, %c0_131] : memref<16x32xf32, #tpu.memory_space<vmem>>, vector<16x32xf32>
    tpu.vector_store %arg28[%c0_130, %c0_131], %307 {strides = array<i32>} : memref<16x32xf32, #tpu.memory_space<vmem>>, vector<16x32xf32>,
    %c1_i32 = arith.constant 1 : i32
    %309 = arith.cmpi eq, %arg0, %c1_i32 : i32
    %310 = arith.extui %309 : i1 to i32
    %c0_i32_132 = arith.constant 0 : i32
    %311 = arith.cmpi ne, %310, %c0_i32_132 : i32
    scf.if %311 {
      %c0_133 = arith.constant 0 : index
      %c0_134 = arith.constant 0 : index
      %312 = vector.load %arg25[%c0_133, %c0_134] : memref<32x128xf32, #tpu.memory_space<vmem>>, vector<32x128xf32>
      %cst_135 = arith.constant dense<0.000000e+00> : vector<16x128xf32>
      %313 = tpu.matmul %307, %312, %cst_135 {dimension_numbers = #tpu.dot_dimension_numbers<[1], [0], [0], [1], [0, 0, 1, 1], [], []>} : vector<16x32xf32>, vector<32x128xf32>, vector<16x128xf32> -> vector<16x128xf32>
      %c0_136 = arith.constant 0 : index
      %c0_137 = arith.constant 0 : index
      %314 = vector.load %arg26[%c0_136, %c0_137] : memref<1x128xf32, #tpu.memory_space<vmem>>, vector<1x128xf32>
      %315 = vector.broadcast %314 : vector<1x128xf32> to vector<16x128xf32>
      %316 = arith.addf %313, %315 : vector<16x128xf32>
      %c0_138 = arith.constant 0 : index
      %c0_139 = arith.constant 0 : index
      %317 = vector.load %arg27[%c0_138, %c0_139] : memref<16x128xf32, #tpu.memory_space<vmem>>, vector<16x128xf32>
      tpu.vector_store %arg27[%c0_138, %c0_139], %316 {strides = array<i32>} : memref<16x128xf32, #tpu.memory_space<vmem>>, vector<16x128xf32>,
    } else {
    }
    return
  }
  func.func @transform_0(%arg0: i32) -> (i32, i32) {
    %c0_i32 = arith.constant 0 : i32
    %c0_i32_0 = arith.constant 0 : i32
    %c0_i32_1 = arith.constant 0 : i32
    return %c0_i32, %c0_i32_0 : i32, i32
  }
  func.func @transform_1(%arg0: i32) -> (i32, i32) {
    %c0_i32 = arith.constant 0 : i32
    %c0_i32_0 = arith.constant 0 : i32
    %c0_i32_1 = arith.constant 0 : i32
    return %c0_i32, %c0_i32_0 : i32, i32
  }
  func.func @transform_2(%arg0: i32) -> (i32, i32) {
    %c0_i32 = arith.constant 0 : i32
    %c0_i32_0 = arith.constant 0 : i32
    %c0_i32_1 = arith.constant 0 : i32
    return %c0_i32, %c0_i32_0 : i32, i32
  }
  func.func @transform_3(%arg0: i32) -> (i32, i32) {
    %c0_i32 = arith.constant 0 : i32
    %c0_i32_0 = arith.constant 0 : i32
    %c0_i32_1 = arith.constant 0 : i32
    return %c0_i32, %c0_i32_0 : i32, i32
  }
  func.func @transform_4(%arg0: i32) -> (i32, i32, i32) {
    %c0_i32 = arith.constant 0 : i32
    %c0_i32_0 = arith.constant 0 : i32
    %c0_i32_1 = arith.constant 0 : i32
    return %arg0, %c0_i32, %c0_i32_0 : i32, i32, i32
  }
  func.func @transform_5(%arg0: i32) -> (i32, i32, i32) {
    %c0_i32 = arith.constant 0 : i32
    %c0_i32_0 = arith.constant 0 : i32
    %c0_i32_1 = arith.constant 0 : i32
    return %arg0, %c0_i32, %c0_i32_0 : i32, i32, i32
  }
  func.func @transform_6(%arg0: i32) -> (i32, i32, i32) {
    %c0_i32 = arith.constant 0 : i32
    %c0_i32_0 = arith.constant 0 : i32
    %c0_i32_1 = arith.constant 0 : i32
    return %arg0, %c0_i32, %c0_i32_0 : i32, i32, i32
  }
  func.func @transform_7(%arg0: i32) -> (i32, i32, i32) {
    %c0_i32 = arith.constant 0 : i32
    %c0_i32_0 = arith.constant 0 : i32
    %c0_i32_1 = arith.constant 0 : i32
    return %arg0, %c0_i32, %c0_i32_0 : i32, i32, i32
  }
  func.func @transform_8(%arg0: i32) -> (i32, i32, i32) {
    %c0_i32 = arith.constant 0 : i32
    %c0_i32_0 = arith.constant 0 : i32
    %c0_i32_1 = arith.constant 0 : i32
    return %arg0, %c0_i32, %c0_i32_0 : i32, i32, i32
  }
  func.func @transform_9(%arg0: i32) -> (i32, i32, i32) {
    %c0_i32 = arith.constant 0 : i32
    %c0_i32_0 = arith.constant 0 : i32
    %c0_i32_1 = arith.constant 0 : i32
    return %arg0, %c0_i32, %c0_i32_0 : i32, i32, i32
  }
  func.func @transform_10(%arg0: i32) -> (i32, i32, i32) {
    %c0_i32 = arith.constant 0 : i32
    %c0_i32_0 = arith.constant 0 : i32
    %c0_i32_1 = arith.constant 0 : i32
    return %arg0, %c0_i32, %c0_i32_0 : i32, i32, i32
  }
  func.func @transform_11(%arg0: i32) -> (i32, i32, i32) {
    %c0_i32 = arith.constant 0 : i32
    %c0_i32_0 = arith.constant 0 : i32
    %c0_i32_1 = arith.constant 0 : i32
    return %arg0, %c0_i32, %c0_i32_0 : i32, i32, i32
  }
  func.func @transform_12(%arg0: i32) -> (i32, i32, i32) {
    %c0_i32 = arith.constant 0 : i32
    %c0_i32_0 = arith.constant 0 : i32
    %c0_i32_1 = arith.constant 0 : i32
    return %arg0, %c0_i32, %c0_i32_0 : i32, i32, i32
  }
  func.func @transform_13(%arg0: i32) -> (i32, i32, i32) {
    %c0_i32 = arith.constant 0 : i32
    %c0_i32_0 = arith.constant 0 : i32
    %c0_i32_1 = arith.constant 0 : i32
    return %arg0, %c0_i32, %c0_i32_0 : i32, i32, i32
  }
  func.func @transform_14(%arg0: i32) -> (i32, i32, i32) {
    %c0_i32 = arith.constant 0 : i32
    %c0_i32_0 = arith.constant 0 : i32
    %c0_i32_1 = arith.constant 0 : i32
    return %arg0, %c0_i32, %c0_i32_0 : i32, i32, i32
  }
  func.func @transform_15(%arg0: i32) -> (i32, i32, i32) {
    %c0_i32 = arith.constant 0 : i32
    %c0_i32_0 = arith.constant 0 : i32
    %c0_i32_1 = arith.constant 0 : i32
    return %arg0, %c0_i32, %c0_i32_0 : i32, i32, i32
  }
  func.func @transform_16(%arg0: i32) -> (i32, i32, i32) {
    %c0_i32 = arith.constant 0 : i32
    %c0_i32_0 = arith.constant 0 : i32
    %c0_i32_1 = arith.constant 0 : i32
    return %arg0, %c0_i32, %c0_i32_0 : i32, i32, i32
  }
  func.func @transform_17(%arg0: i32) -> (i32, i32, i32) {
    %c0_i32 = arith.constant 0 : i32
    %c0_i32_0 = arith.constant 0 : i32
    %c0_i32_1 = arith.constant 0 : i32
    return %arg0, %c0_i32, %c0_i32_0 : i32, i32, i32
  }
  func.func @transform_18(%arg0: i32) -> (i32, i32, i32) {
    %c0_i32 = arith.constant 0 : i32
    %c0_i32_0 = arith.constant 0 : i32
    %c0_i32_1 = arith.constant 0 : i32
    return %arg0, %c0_i32, %c0_i32_0 : i32, i32, i32
  }
  func.func @transform_19(%arg0: i32) -> (i32, i32, i32) {
    %c0_i32 = arith.constant 0 : i32
    %c0_i32_0 = arith.constant 0 : i32
    %c0_i32_1 = arith.constant 0 : i32
    return %arg0, %c0_i32, %c0_i32_0 : i32, i32, i32
  }
  func.func @transform_20(%arg0: i32) -> (i32, i32, i32) {
    %c0_i32 = arith.constant 0 : i32
    %c0_i32_0 = arith.constant 0 : i32
    %c0_i32_1 = arith.constant 0 : i32
    return %arg0, %c0_i32, %c0_i32_0 : i32, i32, i32
  }
  func.func @transform_21(%arg0: i32) -> (i32, i32, i32) {
    %c0_i32 = arith.constant 0 : i32
    %c0_i32_0 = arith.constant 0 : i32
    %c0_i32_1 = arith.constant 0 : i32
    return %arg0, %c0_i32, %c0_i32_0 : i32, i32, i32
  }
  func.func @transform_22(%arg0: i32) -> (i32, i32, i32) {
    %c0_i32 = arith.constant 0 : i32
    %c0_i32_0 = arith.constant 0 : i32
    %c0_i32_1 = arith.constant 0 : i32
    return %arg0, %c0_i32, %c0_i32_0 : i32, i32, i32
  }
  func.func @transform_23(%arg0: i32) -> (i32, i32, i32) {
    %c0_i32 = arith.constant 0 : i32
    %c0_i32_0 = arith.constant 0 : i32
    %c0_i32_1 = arith.constant 0 : i32
    return %arg0, %c0_i32, %c0_i32_0 : i32, i32, i32
  }
  func.func @transform_24(%arg0: i32) -> (i32, i32) {
    %c0_i32 = arith.constant 0 : i32
    %c0_i32_0 = arith.constant 0 : i32
    %c0_i32_1 = arith.constant 0 : i32
    return %c0_i32, %c0_i32_0 : i32, i32
  }
  func.func @transform_25(%arg0: i32) -> (i32, i32) {
    %c0_i32 = arith.constant 0 : i32
    %c0_i32_0 = arith.constant 0 : i32
    %c0_i32_1 = arith.constant 0 : i32
    return %c0_i32, %c0_i32_0 : i32, i32
  }
  func.func @transform_26(%arg0: i32) -> (i32, i32) {
    %c0_i32 = arith.constant 0 : i32
    %c0_i32_0 = arith.constant 0 : i32
    %c0_i32_1 = arith.constant 0 : i32
    return %c0_i32, %c0_i32_0 : i32, i32
  }
}

</mosaic_0001>

<llo_original>
// kernel: decoder_forward.1
$region0: #{decoder_forward.1}
  #allocation0 [shape = 'u32[]', space=smem, size = 0x4, offset = 0x4, fixed_abs, tag = 'smem constant byte address 0x4 - core index']
  #allocation1 [shape = 'u32[144,128]{1,0:T(1,128)}', space=vmem, size = 0x12000, scoped, tag = 'internal scratch']
  #allocation2 [shape = 'f32[16,32]{1,0:T(8,128)}', space=vmem, size = 0x2000, scoped, tag = 'scratch operand']
  %s0 = inlined_call_operand.vmem [shape: f32[16,32], index: 0, kind: input, shape index: {}]
  %s1 = inlined_call_operand.vmem [shape: f32[16,32], index: 1, kind: input, shape index: {}]
  %s2 = inlined_call_operand.vmem [shape: f32[8,8], index: 2, kind: input, shape index: {}]
  %s3 = inlined_call_operand.vmem [shape: f32[8,8], index: 3, kind: input, shape index: {}]
  %s4 = inlined_call_operand.vmem [shape: f32[2,32,96], index: 4, kind: input, shape index: {}]
  %s5 = inlined_call_operand.vmem [shape: f32[2,1,96], index: 5, kind: input, shape index: {}]
  %s6 = inlined_call_operand.vmem [shape: f32[2,32,32], index: 6, kind: input, shape index: {}]
  %s7 = inlined_call_operand.vmem [shape: f32[2,1,32], index: 7, kind: input, shape index: {}]
  %s8 = inlined_call_operand.vmem [shape: f32[2,1,32], index: 8, kind: input, shape index: {}]
  %s9 = inlined_call_operand.vmem [shape: f32[2,1,32], index: 9, kind: input, shape index: {}]
  %s10 = inlined_call_operand.vmem [shape: f32[2,32,32], index: 10, kind: input, shape index: {}]
  %s11 = inlined_call_operand.vmem [shape: f32[2,1,32], index: 11, kind: input, shape index: {}]
  %s12 = inlined_call_operand.vmem [shape: f32[2,32,64], index: 12, kind: input, shape index: {}]
  %s13 = inlined_call_operand.vmem [shape: f32[2,1,64], index: 13, kind: input, shape index: {}]
  %s14 = inlined_call_operand.vmem [shape: f32[2,32,32], index: 14, kind: input, shape index: {}]
  %s15 = inlined_call_operand.vmem [shape: f32[2,1,32], index: 15, kind: input, shape index: {}]
  %s16 = inlined_call_operand.vmem [shape: f32[2,1,32], index: 16, kind: input, shape index: {}]
  %s17 = inlined_call_operand.vmem [shape: f32[2,1,32], index: 17, kind: input, shape index: {}]
  %s18 = inlined_call_operand.vmem [shape: f32[2,32,128], index: 18, kind: input, shape index: {}]
  %s19 = inlined_call_operand.vmem [shape: f32[2,1,128], index: 19, kind: input, shape index: {}]
  %s20 = inlined_call_operand.vmem [shape: f32[2,128,32], index: 20, kind: input, shape index: {}]
  %s21 = inlined_call_operand.vmem [shape: f32[2,1,32], index: 21, kind: input, shape index: {}]
  %s22 = inlined_call_operand.vmem [shape: f32[2,1,32], index: 22, kind: input, shape index: {}]
  %s23 = inlined_call_operand.vmem [shape: f32[2,1,32], index: 23, kind: input, shape index: {}]
  %s24 = inlined_call_operand.vmem [shape: f32[32,128], index: 24, kind: input, shape index: {}]
  %s25 = inlined_call_operand.vmem [shape: f32[1,128], index: 25, kind: input, shape index: {}]
  %s26 = inlined_call_operand.vmem [shape: f32[16,128], index: 26, kind: output, shape index: {}]
  %s27 = sld [smem:[#allocation0]]
  $region145: #{decoder_forward.1} parent=0
    _
  %s29 = ssub.s32 1, %s27
  %s30 = scalar_select 0, %s29, %s27
  loop: start=0, step=1, limit=4
  $region2: #{decoder_forward.1} parent=0 // loop_pre_header
    _
  $region3: #{decoder_forward.1} parent=0 // loop_header
    %s32 = sphi 0, %s36
    %p33 = scmp.ge.s32.totalorder %s32, 4
    %s40 = sphi 0, %s40
    %s42 = sphi 0, %s40
    %s43 = sphi 0, %s42
    %s57 = sphi 0, %s43
    %s61 = sphi 0, %s61
    %s63 = sphi 0, %s61
    %s64 = sphi 0, %s63
    %s78 = sphi 0, %s64
    %s82 = sphi 0, %s82
    %s84 = sphi 0, %s82
    %s85 = sphi 0, %s84
    %s99 = sphi 0, %s85
    %s103 = sphi 0, %s103
    %s105 = sphi 0, %s103
    %s106 = sphi 0, %s105
    %s120 = sphi 0, %s106
    %s126 = sphi 0, %s128
    %s129 = sphi 0, %s126
    %s130 = sphi 0, %s129
    %s146 = sphi 0, %s130
    %s152 = sphi 0, %s154
    %s155 = sphi 0, %s152
    %s156 = sphi 0, %s155
    %s172 = sphi 0, %s156
    %s178 = sphi 0, %s180
    %s181 = sphi 0, %s178
    %s182 = sphi 0, %s181
    %s198 = sphi 0, %s182
    %s204 = sphi 0, %s206
    %s207 = sphi 0, %s204
    %s208 = sphi 0, %s207
    %s224 = sphi 0, %s208
    %s230 = sphi 0, %s232
    %s233 = sphi 0, %s230
    %s234 = sphi 0, %s233
    %s250 = sphi 0, %s234
    %s256 = sphi 0, %s258
    %s259 = sphi 0, %s256
    %s260 = sphi 0, %s259
    %s276 = sphi 0, %s260
    %s282 = sphi 0, %s284
    %s285 = sphi 0, %s282
    %s286 = sphi 0, %s285
    %s302 = sphi 0, %s286
    %s308 = sphi 0, %s310
    %s311 = sphi 0, %s308
    %s312 = sphi 0, %s311
    %s328 = sphi 0, %s312
    %s334 = sphi 0, %s336
    %s337 = sphi 0, %s334
    %s338 = sphi 0, %s337
    %s354 = sphi 0, %s338
    %s360 = sphi 0, %s362
    %s363 = sphi 0, %s360
    %s364 = sphi 0, %s363
    %s380 = sphi 0, %s364
    %s386 = sphi 0, %s388
    %s389 = sphi 0, %s386
    %s390 = sphi 0, %s389
    %s406 = sphi 0, %s390
    %s412 = sphi 0, %s414
    %s415 = sphi 0, %s412
    %s416 = sphi 0, %s415
    %s432 = sphi 0, %s416
    %s438 = sphi 0, %s440
    %s441 = sphi 0, %s438
    %s442 = sphi 0, %s441
    %s458 = sphi 0, %s442
    %s464 = sphi 0, %s466
    %s467 = sphi 0, %s464
    %s468 = sphi 0, %s467
    %s484 = sphi 0, %s468
    %s490 = sphi 0, %s492
    %s493 = sphi 0, %s490
    %s494 = sphi 0, %s493
    %s510 = sphi 0, %s494
    %s516 = sphi 0, %s518
    %s519 = sphi 0, %s516
    %s520 = sphi 0, %s519
    %s536 = sphi 0, %s520
    %s542 = sphi 0, %s544
    %s545 = sphi 0, %s542
    %s546 = sphi 0, %s545
    %s562 = sphi 0, %s546
    %s568 = sphi 0, %s570
    %s571 = sphi 0, %s568
    %s572 = sphi 0, %s571
    %s588 = sphi 0, %s572
    %s594 = sphi 0, %s596
    %s597 = sphi 0, %s594
    %s598 = sphi 0, %s597
    %s614 = sphi 0, %s598
    %s620 = sphi 0, %s622
    %s623 = sphi 0, %s620
    %s624 = sphi 0, %s623
    %s640 = sphi 0, %s624
    %s644 = sphi 0, %s644
    %s646 = sphi 0, %s644
    %s647 = sphi 0, %s646
    %s661 = sphi 0, %s647
    %s665 = sphi 0, %s665
    %s667 = sphi 0, %s665
    %s668 = sphi 0, %s667
    %s682 = sphi 0, %s668
    %s686 = sphi 0, %s686
    %s688 = sphi 0, %s686
    %s689 = sphi 0, %s688
    %s703 = sphi 0, %s689
  $region4: #{decoder_forward.1} parent=0 // loop_header_branch
    %35 = sbr.rel (%p33) target = $region8
  $region5: #{decoder_forward.1} parent=0 // loop_body
    %s37 = ssub.s32 %s32, 1
    %s38 = ssub.s32 %s32, 2
    %s39 = sadd.s32 %s32, 1
    %s41 = sadd.s32 %s40, 1
    %p44 = scmp.eq.s32.totalorder %s32, 1
    %p45 = scmp.ne.s32.totalorder %s40, %s42
    %p46 = scmp.eq.s32.totalorder %s32, 0
    %p47 = por %p45, %p46
    %p48 = scmp.ne.s32.totalorder %s40, %s42
    %p49 = scmp.eq.s32.totalorder %s37, 1
    %p50 = por %p48, %p49
    %p51 = scmp.ne.s32.totalorder %s42, %s43
    %p52 = scmp.eq.s32.totalorder %s37, 0
    %p53 = por %p51, %p52
    %p54 = scmp.ne.s32.totalorder %s42, %s43
    %p55 = scmp.eq.s32.totalorder %s38, 1
    %p56 = por %p54, %p55
    %p58 = scmp.ne.s32.totalorder %s43, %s57
    %p59 = scmp.eq.s32.totalorder %s38, 0
    %p60 = por %p58, %p59
    %s62 = sadd.s32 %s61, 1
    %p65 = scmp.eq.s32.totalorder %s32, 1
    %p66 = scmp.ne.s32.totalorder %s61, %s63
    %p67 = scmp.eq.s32.totalorder %s32, 0
    %p68 = por %p66, %p67
    %p69 = scmp.ne.s32.totalorder %s61, %s63
    %p70 = scmp.eq.s32.totalorder %s37, 1
    %p71 = por %p69, %p70
    %p72 = scmp.ne.s32.totalorder %s63, %s64
    %p73 = scmp.eq.s32.totalorder %s37, 0
    %p74 = por %p72, %p73
    %p75 = scmp.ne.s32.totalorder %s63, %s64
    %p76 = scmp.eq.s32.totalorder %s38, 1
    %p77 = por %p75, %p76
    %p79 = scmp.ne.s32.totalorder %s64, %s78
    %p80 = scmp.eq.s32.totalorder %s38, 0
    %p81 = por %p79, %p80
    %s83 = sadd.s32 %s82, 1
    %p86 = scmp.eq.s32.totalorder %s32, 1
    %p87 = scmp.ne.s32.totalorder %s82, %s84
    %p88 = scmp.eq.s32.totalorder %s32, 0
    %p89 = por %p87, %p88
    %p90 = scmp.ne.s32.totalorder %s82, %s84
    %p91 = scmp.eq.s32.totalorder %s37, 1
    %p92 = por %p90, %p91
    %p93 = scmp.ne.s32.totalorder %s84, %s85
    %p94 = scmp.eq.s32.totalorder %s37, 0
    %p95 = por %p93, %p94
    %p96 = scmp.ne.s32.totalorder %s84, %s85
    %p97 = scmp.eq.s32.totalorder %s38, 1
    %p98 = por %p96, %p97
    %p100 = scmp.ne.s32.totalorder %s85, %s99
    %p101 = scmp.eq.s32.totalorder %s38, 0
    %p102 = por %p100, %p101
    %s104 = sadd.s32 %s103, 1
    %p107 = scmp.eq.s32.totalorder %s32, 1
    %p108 = scmp.ne.s32.totalorder %s103, %s105
    %p109 = scmp.eq.s32.totalorder %s32, 0
    %p110 = por %p108, %p109
    %p111 = scmp.ne.s32.totalorder %s103, %s105
    %p112 = scmp.eq.s32.totalorder %s37, 1
    %p113 = por %p111, %p112
    %p114 = scmp.ne.s32.totalorder %s105, %s106
    %p115 = scmp.eq.s32.totalorder %s37, 0
    %p116 = por %p114, %p115
    %p117 = scmp.ne.s32.totalorder %s105, %s106
    %p118 = scmp.eq.s32.totalorder %s38, 1
    %p119 = por %p117, %p118
    %p121 = scmp.ne.s32.totalorder %s106, %s120
    %p122 = scmp.eq.s32.totalorder %s38, 0
    %p123 = por %p121, %p122
    %s124 = ssub.s32 %s32, %s39
    %p125 = scmp.eq.s32.totalorder %s124, 0
    %s127 = sadd.s32 %s126, 1
    %s128 = scalar_select %p125, %s126, %s127
    %p131 = pneg %p125
    %p132 = scmp.eq.s32.totalorder %s32, 1
    %p133 = por %p131, %p132
    %p134 = scmp.ne.s32.totalorder %s126, %s129
    %p135 = scmp.eq.s32.totalorder %s32, 0
    %p136 = por %p134, %p135
    %p137 = scmp.ne.s32.totalorder %s126, %s129
    %p138 = scmp.eq.s32.totalorder %s37, 1
    %p139 = por %p137, %p138
    %p140 = scmp.ne.s32.totalorder %s129, %s130
    %p141 = scmp.eq.s32.totalorder %s37, 0
    %p142 = por %p140, %p141
    %p143 = scmp.ne.s32.totalorder %s129, %s130
    %p144 = scmp.eq.s32.totalorder %s38, 1
    %p145 = por %p143, %p144
    %p147 = scmp.ne.s32.totalorder %s130, %s146
    %p148 = scmp.eq.s32.totalorder %s38, 0
    %p149 = por %p147, %p148
    %s150 = ssub.s32 %s32, %s39
    %p151 = scmp.eq.s32.totalorder %s150, 0
    %s153 = sadd.s32 %s152, 1
    %s154 = scalar_select %p151, %s152, %s153
    %p157 = pneg %p151
    %p158 = scmp.eq.s32.totalorder %s32, 1
    %p159 = por %p157, %p158
    %p160 = scmp.ne.s32.totalorder %s152, %s155
    %p161 = scmp.eq.s32.totalorder %s32, 0
    %p162 = por %p160, %p161
    %p163 = scmp.ne.s32.totalorder %s152, %s155
    %p164 = scmp.eq.s32.totalorder %s37, 1
    %p165 = por %p163, %p164
    %p166 = scmp.ne.s32.totalorder %s155, %s156
    %p167 = scmp.eq.s32.totalorder %s37, 0
    %p168 = por %p166, %p167
    %p169 = scmp.ne.s32.totalorder %s155, %s156
    %p170 = scmp.eq.s32.totalorder %s38, 1
    %p171 = por %p169, %p170
    %p173 = scmp.ne.s32.totalorder %s156, %s172
    %p174 = scmp.eq.s32.totalorder %s38, 0
    %p175 = por %p173, %p174
    %s176 = ssub.s32 %s32, %s39
    %p177 = scmp.eq.s32.totalorder %s176, 0
    %s179 = sadd.s32 %s178, 1
    %s180 = scalar_select %p177, %s178, %s179
    %p183 = pneg %p177
    %p184 = scmp.eq.s32.totalorder %s32, 1
    %p185 = por %p183, %p184
    %p186 = scmp.ne.s32.totalorder %s178, %s181
    %p187 = scmp.eq.s32.totalorder %s32, 0
    %p188 = por %p186, %p187
    %p189 = scmp.ne.s32.totalorder %s178, %s181
    %p190 = scmp.eq.s32.totalorder %s37, 1
    %p191 = por %p189, %p190
    %p192 = scmp.ne.s32.totalorder %s181, %s182
    %p193 = scmp.eq.s32.totalorder %s37, 0
    %p194 = por %p192, %p193
    %p195 = scmp.ne.s32.totalorder %s181, %s182
    %p196 = scmp.eq.s32.totalorder %s38, 1
    %p197 = por %p195, %p196
    %p199 = scmp.ne.s32.totalorder %s182, %s198
    %p200 = scmp.eq.s32.totalorder %s38, 0
    %p201 = por %p199, %p200
    %s202 = ssub.s32 %s32, %s39
    %p203 = scmp.eq.s32.totalorder %s202, 0
    %s205 = sadd.s32 %s204, 1
    %s206 = scalar_select %p203, %s204, %s205
    %p209 = pneg %p203
    %p210 = scmp.eq.s32.totalorder %s32, 1
    %p211 = por %p209, %p210
    %p212 = scmp.ne.s32.totalorder %s204, %s207
    %p213 = scmp.eq.s32.totalorder %s32, 0
    %p214 = por %p212, %p213
    %p215 = scmp.ne.s32.totalorder %s204, %s207
    %p216 = scmp.eq.s32.totalorder %s37, 1
    %p217 = por %p215, %p216
    %p218 = scmp.ne.s32.totalorder %s207, %s208
    %p219 = scmp.eq.s32.totalorder %s37, 0
    %p220 = por %p218, %p219
    %p221 = scmp.ne.s32.totalorder %s207, %s208
    %p222 = scmp.eq.s32.totalorder %s38, 1
    %p223 = por %p221, %p222
    %p225 = scmp.ne.s32.totalorder %s208, %s224
    %p226 = scmp.eq.s32.totalorder %s38, 0
    %p227 = por %p225, %p226
    %s228 = ssub.s32 %s32, %s39
    %p229 = scmp.eq.s32.totalorder %s228, 0
    %s231 = sadd.s32 %s230, 1
    %s232 = scalar_select %p229, %s230, %s231
    %p235 = pneg %p229
    %p236 = scmp.eq.s32.totalorder %s32, 1
    %p237 = por %p235, %p236
    %p238 = scmp.ne.s32.totalorder %s230, %s233
    %p239 = scmp.eq.s32.totalorder %s32, 0
    %p240 = por %p238, %p239
    %p241 = scmp.ne.s32.totalorder %s230, %s233
    %p242 = scmp.eq.s32.totalorder %s37, 1
    %p243 = por %p241, %p242
    %p244 = scmp.ne.s32.totalorder %s233, %s234
    %p245 = scmp.eq.s32.totalorder %s37, 0
    %p246 = por %p244, %p245
    %p247 = scmp.ne.s32.totalorder %s233, %s234
    %p248 = scmp.eq.s32.totalorder %s38, 1
    %p249 = por %p247, %p248
    %p251 = scmp.ne.s32.totalorder %s234, %s250
    %p252 = scmp.eq.s32.totalorder %s38, 0
    %p253 = por %p251, %p252
    %s254 = ssub.s32 %s32, %s39
    %p255 = scmp.eq.s32.totalorder %s254, 0
    %s257 = sadd.s32 %s256, 1
    %s258 = scalar_select %p255, %s256, %s257
    %p261 = pneg %p255
    %p262 = scmp.eq.s32.totalorder %s32, 1
    %p263 = por %p261, %p262
    %p264 = scmp.ne.s32.totalorder %s256, %s259
    %p265 = scmp.eq.s32.totalorder %s32, 0
    %p266 = por %p264, %p265
    %p267 = scmp.ne.s32.totalorder %s256, %s259
    %p268 = scmp.eq.s32.totalorder %s37, 1
    %p269 = por %p267, %p268
    %p270 = scmp.ne.s32.totalorder %s259, %s260
    %p271 = scmp.eq.s32.totalorder %s37, 0
    %p272 = por %p270, %p271
    %p273 = scmp.ne.s32.totalorder %s259, %s260
    %p274 = scmp.eq.s32.totalorder %s38, 1
    %p275 = por %p273, %p274
    %p277 = scmp.ne.s32.totalorder %s260, %s276
    %p278 = scmp.eq.s32.totalorder %s38, 0
    %p279 = por %p277, %p278
    %s280 = ssub.s32 %s32, %s39
    %p281 = scmp.eq.s32.totalorder %s280, 0
    %s283 = sadd.s32 %s282, 1
    %s284 = scalar_select %p281, %s282, %s283
    %p287 = pneg %p281
    %p288 = scmp.eq.s32.totalorder %s32, 1
    %p289 = por %p287, %p288
    %p290 = scmp.ne.s32.totalorder %s282, %s285
    %p291 = scmp.eq.s32.totalorder %s32, 0
    %p292 = por %p290, %p291
    %p293 = scmp.ne.s32.totalorder %s282, %s285
    %p294 = scmp.eq.s32.totalorder %s37, 1
    %p295 = por %p293, %p294
    %p296 = scmp.ne.s32.totalorder %s285, %s286
    %p297 = scmp.eq.s32.totalorder %s37, 0
    %p298 = por %p296, %p297
    %p299 = scmp.ne.s32.totalorder %s285, %s286
    %p300 = scmp.eq.s32.totalorder %s38, 1
    %p301 = por %p299, %p300
    %p303 = scmp.ne.s32.totalorder %s286, %s302
    %p304 = scmp.eq.s32.totalorder %s38, 0
    %p305 = por %p303, %p304
    %s306 = ssub.s32 %s32, %s39
    %p307 = scmp.eq.s32.totalorder %s306, 0
    %s309 = sadd.s32 %s308, 1
    %s310 = scalar_select %p307, %s308, %s309
    %p313 = pneg %p307
    %p314 = scmp.eq.s32.totalorder %s32, 1
    %p315 = por %p313, %p314
    %p316 = scmp.ne.s32.totalorder %s308, %s311
    %p317 = scmp.eq.s32.totalorder %s32, 0
    %p318 = por %p316, %p317
    %p319 = scmp.ne.s32.totalorder %s308, %s311
    %p320 = scmp.eq.s32.totalorder %s37, 1
    %p321 = por %p319, %p320
    %p322 = scmp.ne.s32.totalorder %s311, %s312
    %p323 = scmp.eq.s32.totalorder %s37, 0
    %p324 = por %p322, %p323
    %p325 = scmp.ne.s32.totalorder %s311, %s312
    %p326 = scmp.eq.s32.totalorder %s38, 1
    %p327 = por %p325, %p326
    %p329 = scmp.ne.s32.totalorder %s312, %s328
    %p330 = scmp.eq.s32.totalorder %s38, 0
    %p331 = por %p329, %p330
    %s332 = ssub.s32 %s32, %s39
    %p333 = scmp.eq.s32.totalorder %s332, 0
    %s335 = sadd.s32 %s334, 1
    %s336 = scalar_select %p333, %s334, %s335
    %p339 = pneg %p333
    %p340 = scmp.eq.s32.totalorder %s32, 1
    %p341 = por %p339, %p340
    %p342 = scmp.ne.s32.totalorder %s334, %s337
    %p343 = scmp.eq.s32.totalorder %s32, 0
    %p344 = por %p342, %p343
    %p345 = scmp.ne.s32.totalorder %s334, %s337
    %p346 = scmp.eq.s32.totalorder %s37, 1
    %p347 = por %p345, %p346
    %p348 = scmp.ne.s32.totalorder %s337, %s338
    %p349 = scmp.eq.s32.totalorder %s37, 0
    %p350 = por %p348, %p349
    %p351 = scmp.ne.s32.totalorder %s337, %s338
    %p352 = scmp.eq.s32.totalorder %s38, 1
    %p353 = por %p351, %p352
    %p355 = scmp.ne.s32.totalorder %s338, %s354
    %p356 = scmp.eq.s32.totalorder %s38, 0
    %p357 = por %p355, %p356
    %s358 = ssub.s32 %s32, %s39
    %p359 = scmp.eq.s32.totalorder %s358, 0
    %s361 = sadd.s32 %s360, 1
    %s362 = scalar_select %p359, %s360, %s361
    %p365 = pneg %p359
    %p366 = scmp.eq.s32.totalorder %s32, 1
    %p367 = por %p365, %p366
    %p368 = scmp.ne.s32.totalorder %s360, %s363
    %p369 = scmp.eq.s32.totalorder %s32, 0
    %p370 = por %p368, %p369
    %p371 = scmp.ne.s32.totalorder %s360, %s363
    %p372 = scmp.eq.s32.totalorder %s37, 1
    %p373 = por %p371, %p372
    %p374 = scmp.ne.s32.totalorder %s363, %s364
    %p375 = scmp.eq.s32.totalorder %s37, 0
    %p376 = por %p374, %p375
    %p377 = scmp.ne.s32.totalorder %s363, %s364
    %p378 = scmp.eq.s32.totalorder %s38, 1
    %p379 = por %p377, %p378
    %p381 = scmp.ne.s32.totalorder %s364, %s380
    %p382 = scmp.eq.s32.totalorder %s38, 0
    %p383 = por %p381, %p382
    %s384 = ssub.s32 %s32, %s39
    %p385 = scmp.eq.s32.totalorder %s384, 0
    %s387 = sadd.s32 %s386, 1
    %s388 = scalar_select %p385, %s386, %s387
    %p391 = pneg %p385
    %p392 = scmp.eq.s32.totalorder %s32, 1
    %p393 = por %p391, %p392
    %p394 = scmp.ne.s32.totalorder %s386, %s389
    %p395 = scmp.eq.s32.totalorder %s32, 0
    %p396 = por %p394, %p395
    %p397 = scmp.ne.s32.totalorder %s386, %s389
    %p398 = scmp.eq.s32.totalorder %s37, 1
    %p399 = por %p397, %p398
    %p400 = scmp.ne.s32.totalorder %s389, %s390
    %p401 = scmp.eq.s32.totalorder %s37, 0
    %p402 = por %p400, %p401
    %p403 = scmp.ne.s32.totalorder %s389, %s390
    %p404 = scmp.eq.s32.totalorder %s38, 1
    %p405 = por %p403, %p404
    %p407 = scmp.ne.s32.totalorder %s390, %s406
    %p408 = scmp.eq.s32.totalorder %s38, 0
    %p409 = por %p407, %p408
    %s410 = ssub.s32 %s32, %s39
    %p411 = scmp.eq.s32.totalorder %s410, 0
    %s413 = sadd.s32 %s412, 1
    %s414 = scalar_select %p411, %s412, %s413
    %p417 = pneg %p411
    %p418 = scmp.eq.s32.totalorder %s32, 1
    %p419 = por %p417, %p418
    %p420 = scmp.ne.s32.totalorder %s412, %s415
    %p421 = scmp.eq.s32.totalorder %s32, 0
    %p422 = por %p420, %p421
    %p423 = scmp.ne.s32.totalorder %s412, %s415
    %p424 = scmp.eq.s32.totalorder %s37, 1
    %p425 = por %p423, %p424
    %p426 = scmp.ne.s32.totalorder %s415, %s416
    %p427 = scmp.eq.s32.totalorder %s37, 0
    %p428 = por %p426, %p427
    %p429 = scmp.ne.s32.totalorder %s415, %s416
    %p430 = scmp.eq.s32.totalorder %s38, 1
    %p431 = por %p429, %p430
    %p433 = scmp.ne.s32.totalorder %s416, %s432
    %p434 = scmp.eq.s32.totalorder %s38, 0
    %p435 = por %p433, %p434
    %s436 = ssub.s32 %s32, %s39
    %p437 = scmp.eq.s32.totalorder %s436, 0
    %s439 = sadd.s32 %s438, 1
    %s440 = scalar_select %p437, %s438, %s439
    %p443 = pneg %p437
    %p444 = scmp.eq.s32.totalorder %s32, 1
    %p445 = por %p443, %p444
    %p446 = scmp.ne.s32.totalorder %s438, %s441
    %p447 = scmp.eq.s32.totalorder %s32, 0
    %p448 = por %p446, %p447
    %p449 = scmp.ne.s32.totalorder %s438, %s441
    %p450 = scmp.eq.s32.totalorder %s37, 1
    %p451 = por %p449, %p450
    %p452 = scmp.ne.s32.totalorder %s441, %s442
    %p453 = scmp.eq.s32.totalorder %s37, 0
    %p454 = por %p452, %p453
    %p455 = scmp.ne.s32.totalorder %s441, %s442
    %p456 = scmp.eq.s32.totalorder %s38, 1
    %p457 = por %p455, %p456
    %p459 = scmp.ne.s32.totalorder %s442, %s458
    %p460 = scmp.eq.s32.totalorder %s38, 0
    %p461 = por %p459, %p460
    %s462 = ssub.s32 %s32, %s39
    %p463 = scmp.eq.s32.totalorder %s462, 0
    %s465 = sadd.s32 %s464, 1
    %s466 = scalar_select %p463, %s464, %s465
    %p469 = pneg %p463
    %p470 = scmp.eq.s32.totalorder %s32, 1
    %p471 = por %p469, %p470
    %p472 = scmp.ne.s32.totalorder %s464, %s467
    %p473 = scmp.eq.s32.totalorder %s32, 0
    %p474 = por %p472, %p473
    %p475 = scmp.ne.s32.totalorder %s464, %s467
    %p476 = scmp.eq.s32.totalorder %s37, 1
    %p477 = por %p475, %p476
    %p478 = scmp.ne.s32.totalorder %s467, %s468
    %p479 = scmp.eq.s32.totalorder %s37, 0
    %p480 = por %p478, %p479
    %p481 = scmp.ne.s32.totalorder %s467, %s468
    %p482 = scmp.eq.s32.totalorder %s38, 1
    %p483 = por %p481, %p482
    %p485 = scmp.ne.s32.totalorder %s468, %s484
    %p486 = scmp.eq.s32.totalorder %s38, 0
    %p487 = por %p485, %p486
    %s488 = ssub.s32 %s32, %s39
    %p489 = scmp.eq.s32.totalorder %s488, 0
    %s491 = sadd.s32 %s490, 1
    %s492 = scalar_select %p489, %s490, %s491
    %p495 = pneg %p489
    %p496 = scmp.eq.s32.totalorder %s32, 1
    %p497 = por %p495, %p496
    %p498 = scmp.ne.s32.totalorder %s490, %s493
    %p499 = scmp.eq.s32.totalorder %s32, 0
    %p500 = por %p498, %p499
    %p501 = scmp.ne.s32.totalorder %s490, %s493
    %p502 = scmp.eq.s32.totalorder %s37, 1
    %p503 = por %p501, %p502
    %p504 = scmp.ne.s32.totalorder %s493, %s494
    %p505 = scmp.eq.s32.totalorder %s37, 0
    %p506 = por %p504, %p505
    %p507 = scmp.ne.s32.totalorder %s493, %s494
    %p508 = scmp.eq.s32.totalorder %s38, 1
    %p509 = por %p507, %p508
    %p511 = scmp.ne.s32.totalorder %s494, %s510
    %p512 = scmp.eq.s32.totalorder %s38, 0
    %p513 = por %p511, %p512
    %s514 = ssub.s32 %s32, %s39
    %p515 = scmp.eq.s32.totalorder %s514, 0
    %s517 = sadd.s32 %s516, 1
    %s518 = scalar_select %p515, %s516, %s517
    %p521 = pneg %p515
    %p522 = scmp.eq.s32.totalorder %s32, 1
    %p523 = por %p521, %p522
    %p524 = scmp.ne.s32.totalorder %s516, %s519
    %p525 = scmp.eq.s32.totalorder %s32, 0
    %p526 = por %p524, %p525
    %p527 = scmp.ne.s32.totalorder %s516, %s519
    %p528 = scmp.eq.s32.totalorder %s37, 1
    %p529 = por %p527, %p528
    %p530 = scmp.ne.s32.totalorder %s519, %s520
    %p531 = scmp.eq.s32.totalorder %s37, 0
    %p532 = por %p530, %p531
    %p533 = scmp.ne.s32.totalorder %s519, %s520
    %p534 = scmp.eq.s32.totalorder %s38, 1
    %p535 = por %p533, %p534
    %p537 = scmp.ne.s32.totalorder %s520, %s536
    %p538 = scmp.eq.s32.totalorder %s38, 0
    %p539 = por %p537, %p538
    %s540 = ssub.s32 %s32, %s39
    %p541 = scmp.eq.s32.totalorder %s540, 0
    %s543 = sadd.s32 %s542, 1
    %s544 = scalar_select %p541, %s542, %s543
    %p547 = pneg %p541
    %p548 = scmp.eq.s32.totalorder %s32, 1
    %p549 = por %p547, %p548
    %p550 = scmp.ne.s32.totalorder %s542, %s545
    %p551 = scmp.eq.s32.totalorder %s32, 0
    %p552 = por %p550, %p551
    %p553 = scmp.ne.s32.totalorder %s542, %s545
    %p554 = scmp.eq.s32.totalorder %s37, 1
    %p555 = por %p553, %p554
    %p556 = scmp.ne.s32.totalorder %s545, %s546
    %p557 = scmp.eq.s32.totalorder %s37, 0
    %p558 = por %p556, %p557
    %p559 = scmp.ne.s32.totalorder %s545, %s546
    %p560 = scmp.eq.s32.totalorder %s38, 1
    %p561 = por %p559, %p560
    %p563 = scmp.ne.s32.totalorder %s546, %s562
    %p564 = scmp.eq.s32.totalorder %s38, 0
    %p565 = por %p563, %p564
    %s566 = ssub.s32 %s32, %s39
    %p567 = scmp.eq.s32.totalorder %s566, 0
    %s569 = sadd.s32 %s568, 1
    %s570 = scalar_select %p567, %s568, %s569
    %p573 = pneg %p567
    %p574 = scmp.eq.s32.totalorder %s32, 1
    %p575 = por %p573, %p574
    %p576 = scmp.ne.s32.totalorder %s568, %s571
    %p577 = scmp.eq.s32.totalorder %s32, 0
    %p578 = por %p576, %p577
    %p579 = scmp.ne.s32.totalorder %s568, %s571
    %p580 = scmp.eq.s32.totalorder %s37, 1
    %p581 = por %p579, %p580
    %p582 = scmp.ne.s32.totalorder %s571, %s572
    %p583 = scmp.eq.s32.totalorder %s37, 0
    %p584 = por %p582, %p583
    %p585 = scmp.ne.s32.totalorder %s571, %s572
    %p586 = scmp.eq.s32.totalorder %s38, 1
    %p587 = por %p585, %p586
    %p589 = scmp.ne.s32.totalorder %s572, %s588
    %p590 = scmp.eq.s32.totalorder %s38, 0
    %p591 = por %p589, %p590
    %s592 = ssub.s32 %s32, %s39
    %p593 = scmp.eq.s32.totalorder %s592, 0
    %s595 = sadd.s32 %s594, 1
    %s596 = scalar_select %p593, %s594, %s595
    %p599 = pneg %p593
    %p600 = scmp.eq.s32.totalorder %s32, 1
    %p601 = por %p599, %p600
    %p602 = scmp.ne.s32.totalorder %s594, %s597
    %p603 = scmp.eq.s32.totalorder %s32, 0
    %p604 = por %p602, %p603
    %p605 = scmp.ne.s32.totalorder %s594, %s597
    %p606 = scmp.eq.s32.totalorder %s37, 1
    %p607 = por %p605, %p606
    %p608 = scmp.ne.s32.totalorder %s597, %s598
    %p609 = scmp.eq.s32.totalorder %s37, 0
    %p610 = por %p608, %p609
    %p611 = scmp.ne.s32.totalorder %s597, %s598
    %p612 = scmp.eq.s32.totalorder %s38, 1
    %p613 = por %p611, %p612
    %p615 = scmp.ne.s32.totalorder %s598, %s614
    %p616 = scmp.eq.s32.totalorder %s38, 0
    %p617 = por %p615, %p616
    %s618 = ssub.s32 %s32, %s39
    %p619 = scmp.eq.s32.totalorder %s618, 0
    %s621 = sadd.s32 %s620, 1
    %s622 = scalar_select %p619, %s620, %s621
    %p625 = pneg %p619
    %p626 = scmp.eq.s32.totalorder %s32, 1
    %p627 = por %p625, %p626
    %p628 = scmp.ne.s32.totalorder %s620, %s623
    %p629 = scmp.eq.s32.totalorder %s32, 0
    %p630 = por %p628, %p629
    %p631 = scmp.ne.s32.totalorder %s620, %s623
    %p632 = scmp.eq.s32.totalorder %s37, 1
    %p633 = por %p631, %p632
    %p634 = scmp.ne.s32.totalorder %s623, %s624
    %p635 = scmp.eq.s32.totalorder %s37, 0
    %p636 = por %p634, %p635
    %p637 = scmp.ne.s32.totalorder %s623, %s624
    %p638 = scmp.eq.s32.totalorder %s38, 1
    %p639 = por %p637, %p638
    %p641 = scmp.ne.s32.totalorder %s624, %s640
    %p642 = scmp.eq.s32.totalorder %s38, 0
    %p643 = por %p641, %p642
    %s645 = sadd.s32 %s644, 1
    %p648 = scmp.eq.s32.totalorder %s32, 1
    %p649 = scmp.ne.s32.totalorder %s644, %s646
    %p650 = scmp.eq.s32.totalorder %s32, 0
    %p651 = por %p649, %p650
    %p652 = scmp.ne.s32.totalorder %s644, %s646
    %p653 = scmp.eq.s32.totalorder %s37, 1
    %p654 = por %p652, %p653
    %p655 = scmp.ne.s32.totalorder %s646, %s647
    %p656 = scmp.eq.s32.totalorder %s37, 0
    %p657 = por %p655, %p656
    %p658 = scmp.ne.s32.totalorder %s646, %s647
    %p659 = scmp.eq.s32.totalorder %s38, 1
    %p660 = por %p658, %p659
    %p662 = scmp.ne.s32.totalorder %s647, %s661
    %p663 = scmp.eq.s32.totalorder %s38, 0
    %p664 = por %p662, %p663
    %s666 = sadd.s32 %s665, 1
    %p669 = scmp.eq.s32.totalorder %s32, 1
    %p670 = scmp.ne.s32.totalorder %s665, %s667
    %p671 = scmp.eq.s32.totalorder %s32, 0
    %p672 = por %p670, %p671
    %p673 = scmp.ne.s32.totalorder %s665, %s667
    %p674 = scmp.eq.s32.totalorder %s37, 1
    %p675 = por %p673, %p674
    %p676 = scmp.ne.s32.totalorder %s667, %s668
    %p677 = scmp.eq.s32.totalorder %s37, 0
    %p678 = por %p676, %p677
    %p679 = scmp.ne.s32.totalorder %s667, %s668
    %p680 = scmp.eq.s32.totalorder %s38, 1
    %p681 = por %p679, %p680
    %p683 = scmp.ne.s32.totalorder %s668, %s682
    %p684 = scmp.eq.s32.totalorder %s38, 0
    %p685 = por %p683, %p684
    %s687 = sadd.s32 %s686, 1
    %p690 = scmp.eq.s32.totalorder %s32, 1
    %p691 = scmp.ne.s32.totalorder %s686, %s688
    %p692 = scmp.eq.s32.totalorder %s32, 0
    %p693 = por %p691, %p692
    %p694 = scmp.ne.s32.totalorder %s686, %s688
    %p695 = scmp.eq.s32.totalorder %s37, 1
    %p696 = por %p694, %p695
    %p697 = scmp.ne.s32.totalorder %s688, %s689
    %p698 = scmp.eq.s32.totalorder %s37, 0
    %p699 = por %p697, %p698
    %p700 = scmp.ne.s32.totalorder %s688, %s689
    %p701 = scmp.eq.s32.totalorder %s38, 1
    %p702 = por %p700, %p701
    %p704 = scmp.ne.s32.totalorder %s689, %s703
    %p705 = scmp.eq.s32.totalorder %s38, 0
    %p706 = por %p704, %p705
    %p707 = scmp.le.s32.totalorder 1, %s32
    %p708 = scmp.lt.s32.totalorder %s32, 3
    %p709 = pnand %p707, %p708
    %p710 = pneg %p709
    // Predicated region
    $region9: #{decoder_forward.1} parent=5 // pred_check
      _
    $region10: #{decoder_forward.1} parent=5 // pred_check_branch
      %712 = sbr.rel (%p709) target = $region12
    $region11: #{decoder_forward.1} parent=5 // pred_region
      %s713 = ssub.s32 %s32, 1
      // Predicated region
      $region13: #{decoder_forward.1} parent=11 // pred_check
        %p714 = pneg %p53
      $region14: #{decoder_forward.1} parent=11 // pred_check_branch
        %716 = sbr.rel (%p714) target = $region16
      $region15: #{decoder_forward.1} parent=11 // pred_region
        _
      $region16: #{decoder_forward.1} parent=11 // pred_fallthru
        _
      // Predicated region
      $region17: #{decoder_forward.1} parent=11 // pred_check
        %p717 = pneg %p74
      $region18: #{decoder_forward.1} parent=11 // pred_check_branch
        %719 = sbr.rel (%p717) target = $region20
      $region19: #{decoder_forward.1} parent=11 // pred_region
        _
      $region20: #{decoder_forward.1} parent=11 // pred_fallthru
        _
      // Predicated region
      $region21: #{decoder_forward.1} parent=11 // pred_check
        %p720 = pneg %p95
      $region22: #{decoder_forward.1} parent=11 // pred_check_branch
        %722 = sbr.rel (%p720) target = $region24
      $region23: #{decoder_forward.1} parent=11 // pred_region
        _
      $region24: #{decoder_forward.1} parent=11 // pred_fallthru
        _
      // Predicated region
      $region25: #{decoder_forward.1} parent=11 // pred_check
        %p723 = pneg %p116
      $region26: #{decoder_forward.1} parent=11 // pred_check_branch
        %725 = sbr.rel (%p723) target = $region28
      $region27: #{decoder_forward.1} parent=11 // pred_region
        _
      $region28: #{decoder_forward.1} parent=11 // pred_fallthru
        _
      // Predicated region
      $region29: #{decoder_forward.1} parent=11 // pred_check
        %p726 = pneg %p657
      $region30: #{decoder_forward.1} parent=11 // pred_check_branch
        %728 = sbr.rel (%p726) target = $region32
      $region31: #{decoder_forward.1} parent=11 // pred_region
        _
      $region32: #{decoder_forward.1} parent=11 // pred_fallthru
        _
      // Predicated region
      $region33: #{decoder_forward.1} parent=11 // pred_check
        %p729 = pneg %p678
      $region34: #{decoder_forward.1} parent=11 // pred_check_branch
        %731 = sbr.rel (%p729) target = $region36
      $region35: #{decoder_forward.1} parent=11 // pred_region
        _
      $region36: #{decoder_forward.1} parent=11 // pred_fallthru
        _
    $region12: #{decoder_forward.1} parent=5 // pred_fallthru
      _
    %p732 = scmp.lt.s32.totalorder %s32, 2
    // Predicated region
    $region37: #{decoder_forward.1} parent=5 // pred_check
      %p733 = pneg %p732
    $region38: #{decoder_forward.1} parent=5 // pred_check_branch
      %735 = sbr.rel (%p733) target = $region40
    $region39: #{decoder_forward.1} parent=5 // pred_region
      // Predicated region
      $region41: #{decoder_forward.1} parent=39 // pred_check
        %p736 = pneg %p136
      $region42: #{decoder_forward.1} parent=39 // pred_check_branch
        %738 = sbr.rel (%p736) target = $region44
      $region43: #{decoder_forward.1} parent=39 // pred_region
        %p739 = scmp.lt.s32.totalorder %s32, 1
        %s740 = scalar_select %p739, %s32, 1
        %s741 = smul.addr %s740, 4
        %s742 = smul.addr %s741, 8
        %s743 = scalar_lea.vmem %s4, %s742
      $region44: #{decoder_forward.1} parent=39 // pred_fallthru
        _
      // Predicated region
      $region45: #{decoder_forward.1} parent=39 // pred_check
        %p744 = pneg %p162
      $region46: #{decoder_forward.1} parent=39 // pred_check_branch
        %746 = sbr.rel (%p744) target = $region48
      $region47: #{decoder_forward.1} parent=39 // pred_region
        %p747 = scmp.lt.s32.totalorder %s32, 1
        %s748 = scalar_select %p747, %s32, 1
        %s749 = scalar_lea.vmem %s5, %s748
      $region48: #{decoder_forward.1} parent=39 // pred_fallthru
        _
      // Predicated region
      $region49: #{decoder_forward.1} parent=39 // pred_check
        %p750 = pneg %p188
      $region50: #{decoder_forward.1} parent=39 // pred_check_branch
        %752 = sbr.rel (%p750) target = $region52
      $region51: #{decoder_forward.1} parent=39 // pred_region
        %p753 = scmp.lt.s32.totalorder %s32, 1
        %s754 = scalar_select %p753, %s32, 1
        %s755 = smul.addr %s754, 4
        %s756 = smul.addr %s755, 8
        %s757 = scalar_lea.vmem %s6, %s756
      $region52: #{decoder_forward.1} parent=39 // pred_fallthru
        _
      // Predicated region
      $region53: #{decoder_forward.1} parent=39 // pred_check
        %p758 = pneg %p214
      $region54: #{decoder_forward.1} parent=39 // pred_check_branch
        %760 = sbr.rel (%p758) target = $region56
      $region55: #{decoder_forward.1} parent=39 // pred_region
        %p761 = scmp.lt.s32.totalorder %s32, 1
        %s762 = scalar_select %p761, %s32, 1
        %s763 = scalar_lea.vmem %s7, %s762
      $region56: #{decoder_forward.1} parent=39 // pred_fallthru
        _
      // Predicated region
      $region57: #{decoder_forward.1} parent=39 // pred_check
        %p764 = pneg %p240
      $region58: #{decoder_forward.1} parent=39 // pred_check_branch
        %766 = sbr.rel (%p764) target = $region60
      $region59: #{decoder_forward.1} parent=39 // pred_region
        %p767 = scmp.lt.s32.totalorder %s32, 1
        %s768 = scalar_select %p767, %s32, 1
        %s769 = scalar_lea.vmem %s8, %s768
      $region60: #{decoder_forward.1} parent=39 // pred_fallthru
        _
      // Predicated region
      $region61: #{decoder_forward.1} parent=39 // pred_check
        %p770 = pneg %p266
      $region62: #{decoder_forward.1} parent=39 // pred_check_branch
        %772 = sbr.rel (%p770) target = $region64
      $region63: #{decoder_forward.1} parent=39 // pred_region
        %p773 = scmp.lt.s32.totalorder %s32, 1
        %s774 = scalar_select %p773, %s32, 1
        %s775 = scalar_lea.vmem %s9, %s774
      $region64: #{decoder_forward.1} parent=39 // pred_fallthru
        _
      // Predicated region
      $region65: #{decoder_forward.1} parent=39 // pred_check
        %p776 = pneg %p292
      $region66: #{decoder_forward.1} parent=39 // pred_check_branch
        %778 = sbr.rel (%p776) target = $region68
      $region67: #{decoder_forward.1} parent=39 // pred_region
        %p779 = scmp.lt.s32.totalorder %s32, 1
        %s780 = scalar_select %p779, %s32, 1
        %s781 = smul.addr %s780, 4
        %s782 = smul.addr %s781, 8
        %s783 = scalar_lea.vmem %s10, %s782
      $region68: #{decoder_forward.1} parent=39 // pred_fallthru
        _
      // Predicated region
      $region69: #{decoder_forward.1} parent=39 // pred_check
        %p784 = pneg %p318
      $region70: #{decoder_forward.1} parent=39 // pred_check_branch
        %786 = sbr.rel (%p784) target = $region72
      $region71: #{decoder_forward.1} parent=39 // pred_region
        %p787 = scmp.lt.s32.totalorder %s32, 1
        %s788 = scalar_select %p787, %s32, 1
        %s789 = scalar_lea.vmem %s11, %s788
      $region72: #{decoder_forward.1} parent=39 // pred_fallthru
        _
      // Predicated region
      $region73: #{decoder_forward.1} parent=39 // pred_check
        %p790 = pneg %p344
      $region74: #{decoder_forward.1} parent=39 // pred_check_branch
        %792 = sbr.rel (%p790) target = $region76
      $region75: #{decoder_forward.1} parent=39 // pred_region
        %p793 = scmp.lt.s32.totalorder %s32, 1
        %s794 = scalar_select %p793, %s32, 1
        %s795 = smul.addr %s794, 4
        %s796 = smul.addr %s795, 8
        %s797 = scalar_lea.vmem %s12, %s796
      $region76: #{decoder_forward.1} parent=39 // pred_fallthru
        _
      // Predicated region
      $region77: #{decoder_forward.1} parent=39 // pred_check
        %p798 = pneg %p370
      $region78: #{decoder_forward.1} parent=39 // pred_check_branch
        %800 = sbr.rel (%p798) target = $region80
      $region79: #{decoder_forward.1} parent=39 // pred_region
        %p801 = scmp.lt.s32.totalorder %s32, 1
        %s802 = scalar_select %p801, %s32, 1
        %s803 = scalar_lea.vmem %s13, %s802
      $region80: #{decoder_forward.1} parent=39 // pred_fallthru
        _
      // Predicated region
      $region81: #{decoder_forward.1} parent=39 // pred_check
        %p804 = pneg %p396
      $region82: #{decoder_forward.1} parent=39 // pred_check_branch
        %806 = sbr.rel (%p804) target = $region84
      $region83: #{decoder_forward.1} parent=39 // pred_region
        %p807 = scmp.lt.s32.totalorder %s32, 1
        %s808 = scalar_select %p807, %s32, 1
        %s809 = smul.addr %s808, 4
        %s810 = smul.addr %s809, 8
        %s811 = scalar_lea.vmem %s14, %s810
      $region84: #{decoder_forward.1} parent=39 // pred_fallthru
        _
      // Predicated region
      $region85: #{decoder_forward.1} parent=39 // pred_check
        %p812 = pneg %p422
      $region86: #{decoder_forward.1} parent=39 // pred_check_branch
        %814 = sbr.rel (%p812) target = $region88
      $region87: #{decoder_forward.1} parent=39 // pred_region
        %p815 = scmp.lt.s32.totalorder %s32, 1
        %s816 = scalar_select %p815, %s32, 1
        %s817 = scalar_lea.vmem %s15, %s816
      $region88: #{decoder_forward.1} parent=39 // pred_fallthru
        _
      // Predicated region
      $region89: #{decoder_forward.1} parent=39 // pred_check
        %p818 = pneg %p448
      $region90: #{decoder_forward.1} parent=39 // pred_check_branch
        %820 = sbr.rel (%p818) target = $region92
      $region91: #{decoder_forward.1} parent=39 // pred_region
        %p821 = scmp.lt.s32.totalorder %s32, 1
        %s822 = scalar_select %p821, %s32, 1
        %s823 = scalar_lea.vmem %s16, %s822
      $region92: #{decoder_forward.1} parent=39 // pred_fallthru
        _
      // Predicated region
      $region93: #{decoder_forward.1} parent=39 // pred_check
        %p824 = pneg %p474
      $region94: #{decoder_forward.1} parent=39 // pred_check_branch
        %826 = sbr.rel (%p824) target = $region96
      $region95: #{decoder_forward.1} parent=39 // pred_region
        %p827 = scmp.lt.s32.totalorder %s32, 1
        %s828 = scalar_select %p827, %s32, 1
        %s829 = scalar_lea.vmem %s17, %s828
      $region96: #{decoder_forward.1} parent=39 // pred_fallthru
        _
      // Predicated region
      $region97: #{decoder_forward.1} parent=39 // pred_check
        %p830 = pneg %p500
      $region98: #{decoder_forward.1} parent=39 // pred_check_branch
        %832 = sbr.rel (%p830) target = $region100
      $region99: #{decoder_forward.1} parent=39 // pred_region
        %p833 = scmp.lt.s32.totalorder %s32, 1
        %s834 = scalar_select %p833, %s32, 1
        %s835 = smul.addr %s834, 4
        %s836 = smul.addr %s835, 8
        %s837 = scalar_lea.vmem %s18, %s836
      $region100: #{decoder_forward.1} parent=39 // pred_fallthru
        _
      // Predicated region
      $region101: #{decoder_forward.1} parent=39 // pred_check
        %p838 = pneg %p526
      $region102: #{decoder_forward.1} parent=39 // pred_check_branch
        %840 = sbr.rel (%p838) target = $region104
      $region103: #{decoder_forward.1} parent=39 // pred_region
        %p841 = scmp.lt.s32.totalorder %s32, 1
        %s842 = scalar_select %p841, %s32, 1
        %s843 = scalar_lea.vmem %s19, %s842
      $region104: #{decoder_forward.1} parent=39 // pred_fallthru
        _
      // Predicated region
      $region105: #{decoder_forward.1} parent=39 // pred_check
        %p844 = pneg %p552
      $region106: #{decoder_forward.1} parent=39 // pred_check_branch
        %846 = sbr.rel (%p844) target = $region108
      $region107: #{decoder_forward.1} parent=39 // pred_region
        %p847 = scmp.lt.s32.totalorder %s32, 1
        %s848 = scalar_select %p847, %s32, 1
        %s849 = smul.addr %s848, 16
        %s850 = smul.addr %s849, 8
        %s851 = scalar_lea.vmem %s20, %s850
      $region108: #{decoder_forward.1} parent=39 // pred_fallthru
        _
      // Predicated region
      $region109: #{decoder_forward.1} parent=39 // pred_check
        %p852 = pneg %p578
      $region110: #{decoder_forward.1} parent=39 // pred_check_branch
        %854 = sbr.rel (%p852) target = $region112
      $region111: #{decoder_forward.1} parent=39 // pred_region
        %p855 = scmp.lt.s32.totalorder %s32, 1
        %s856 = scalar_select %p855, %s32, 1
        %s857 = scalar_lea.vmem %s21, %s856
      $region112: #{decoder_forward.1} parent=39 // pred_fallthru
        _
      // Predicated region
      $region113: #{decoder_forward.1} parent=39 // pred_check
        %p858 = pneg %p604
      $region114: #{decoder_forward.1} parent=39 // pred_check_branch
        %860 = sbr.rel (%p858) target = $region116
      $region115: #{decoder_forward.1} parent=39 // pred_region
        %p861 = scmp.lt.s32.totalorder %s32, 1
        %s862 = scalar_select %p861, %s32, 1
        %s863 = scalar_lea.vmem %s22, %s862
      $region116: #{decoder_forward.1} parent=39 // pred_fallthru
        _
      // Predicated region
      $region117: #{decoder_forward.1} parent=39 // pred_check
        %p864 = pneg %p630
      $region118: #{decoder_forward.1} parent=39 // pred_check_branch
        %866 = sbr.rel (%p864) target = $region120
      $region119: #{decoder_forward.1} parent=39 // pred_region
        %p867 = scmp.lt.s32.totalorder %s32, 1
        %s868 = scalar_select %p867, %s32, 1
        %s869 = scalar_lea.vmem %s23, %s868
      $region120: #{decoder_forward.1} parent=39 // pred_fallthru
        _
    $region40: #{decoder_forward.1} parent=5 // pred_fallthru
      _
    %p870 = scmp.le.s32.totalorder 1, %s32
    %p871 = scmp.lt.s32.totalorder %s32, 3
    %p872 = pnand %p870, %p871
    %p873 = pneg %p872
    // Predicated region
    $region121: #{decoder_forward.1} parent=5 // pred_check
      _
    $region122: #{decoder_forward.1} parent=5 // pred_check_branch
      %875 = sbr.rel (%p872) target = $region124
    $region123: #{decoder_forward.1} parent=5 // pred_region
      %s876 = ssub.s32 %s32, 1
      %p877 = pneg %p53
      %p878 = pneg %p50
      %p879 = pneg %p74
      %p880 = pneg %p71
      %p881 = pneg %p95
      %p882 = pneg %p92
      %p883 = pneg %p116
      %p884 = pneg %p113
      %p885 = scmp.lt.s32.totalorder %s37, 1
      %s886 = scalar_select %p885, %s37, 1
      %s887 = smul.addr %s886, 4
      %s888 = smul.addr %s887, 8
      %s889 = scalar_lea.vmem %s4, %s888
      %p890 = pneg %p142
      %p891 = pneg %p139
      %p892 = scmp.lt.s32.totalorder %s37, 1
      %s893 = scalar_select %p892, %s37, 1
      %s894 = scalar_lea.vmem %s5, %s893
      %p895 = pneg %p168
      %p896 = pneg %p165
      %p897 = scmp.lt.s32.totalorder %s37, 1
      %s898 = scalar_select %p897, %s37, 1
      %s899 = smul.addr %s898, 4
      %s900 = smul.addr %s899, 8
      %s901 = scalar_lea.vmem %s6, %s900
      %p902 = pneg %p194
      %p903 = pneg %p191
      %p904 = scmp.lt.s32.totalorder %s37, 1
      %s905 = scalar_select %p904, %s37, 1
      %s906 = scalar_lea.vmem %s7, %s905
      %p907 = pneg %p220
      %p908 = pneg %p217
      %p909 = scmp.lt.s32.totalorder %s37, 1
      %s910 = scalar_select %p909, %s37, 1
      %s911 = scalar_lea.vmem %s8, %s910
      %p912 = pneg %p246
      %p913 = pneg %p243
      %p914 = scmp.lt.s32.totalorder %s37, 1
      %s915 = scalar_select %p914, %s37, 1
      %s916 = scalar_lea.vmem %s9, %s915
      %p917 = pneg %p272
      %p918 = pneg %p269
      %p919 = scmp.lt.s32.totalorder %s37, 1
      %s920 = scalar_select %p919, %s37, 1
      %s921 = smul.addr %s920, 4
      %s922 = smul.addr %s921, 8
      %s923 = scalar_lea.vmem %s10, %s922
      %p924 = pneg %p298
      %p925 = pneg %p295
      %p926 = scmp.lt.s32.totalorder %s37, 1
      %s927 = scalar_select %p926, %s37, 1
      %s928 = scalar_lea.vmem %s11, %s927
      %p929 = pneg %p324
      %p930 = pneg %p321
      %p931 = scmp.lt.s32.totalorder %s37, 1
      %s932 = scalar_select %p931, %s37, 1
      %s933 = smul.addr %s932, 4
      %s934 = smul.addr %s933, 8
      %s935 = scalar_lea.vmem %s12, %s934
      %p936 = pneg %p350
      %p937 = pneg %p347
      %p938 = scmp.lt.s32.totalorder %s37, 1
      %s939 = scalar_select %p938, %s37, 1
      %s940 = scalar_lea.vmem %s13, %s939
      %p941 = pneg %p376
      %p942 = pneg %p373
      %p943 = scmp.lt.s32.totalorder %s37, 1
      %s944 = scalar_select %p943, %s37, 1
      %s945 = smul.addr %s944, 4
      %s946 = smul.addr %s945, 8
      %s947 = scalar_lea.vmem %s14, %s946
      %p948 = pneg %p402
      %p949 = pneg %p399
      %p950 = scmp.lt.s32.totalorder %s37, 1
      %s951 = scalar_select %p950, %s37, 1
      %s952 = scalar_lea.vmem %s15, %s951
      %p953 = pneg %p428
      %p954 = pneg %p425
      %p955 = scmp.lt.s32.totalorder %s37, 1
      %s956 = scalar_select %p955, %s37, 1
      %s957 = scalar_lea.vmem %s16, %s956
      %p958 = pneg %p454
      %p959 = pneg %p451
      %p960 = scmp.lt.s32.totalorder %s37, 1
      %s961 = scalar_select %p960, %s37, 1
      %s962 = scalar_lea.vmem %s17, %s961
      %p963 = pneg %p480
      %p964 = pneg %p477
      %p965 = scmp.lt.s32.totalorder %s37, 1
      %s966 = scalar_select %p965, %s37, 1
      %s967 = smul.addr %s966, 4
      %s968 = smul.addr %s967, 8
      %s969 = scalar_lea.vmem %s18, %s968
      %p970 = pneg %p506
      %p971 = pneg %p503
      %p972 = scmp.lt.s32.totalorder %s37, 1
      %s973 = scalar_select %p972, %s37, 1
      %s974 = scalar_lea.vmem %s19, %s973
      %p975 = pneg %p532
      %p976 = pneg %p529
      %p977 = scmp.lt.s32.totalorder %s37, 1
      %s978 = scalar_select %p977, %s37, 1
      %s979 = smul.addr %s978, 16
      %s980 = smul.addr %s979, 8
      %s981 = scalar_lea.vmem %s20, %s980
      %p982 = pneg %p558
      %p983 = pneg %p555
      %p984 = scmp.lt.s32.totalorder %s37, 1
      %s985 = scalar_select %p984, %s37, 1
      %s986 = scalar_lea.vmem %s21, %s985
      %p987 = pneg %p584
      %p988 = pneg %p581
      %p989 = scmp.lt.s32.totalorder %s37, 1
      %s990 = scalar_select %p989, %s37, 1
      %s991 = scalar_lea.vmem %s22, %s990
      %p992 = pneg %p610
      %p993 = pneg %p607
      %p994 = scmp.lt.s32.totalorder %s37, 1
      %s995 = scalar_select %p994, %s37, 1
      %s996 = scalar_lea.vmem %s23, %s995
      %p997 = pneg %p636
      %p998 = pneg %p633
      %p999 = pneg %p657
      %p1000 = pneg %p654
      %p1001 = pneg %p678
      %p1002 = pneg %p675
      %p1003 = pneg %p699
      %p1004 = pneg %p696
      %p1005 = scmp.lt.s32.totalorder %s37, 1
      %s1006 = scalar_select %p1005, %s37, 1
      %s1007 = smul.addr %s1006, 4
      %s1008 = smul.addr %s1007, 8
      %s1009 = scalar_lea.vmem %s4, %s1008
      %p1010 = scmp.lt.s32.totalorder %s37, 1
      %s1011 = scalar_select %p1010, %s37, 1
      %s1012 = scalar_lea.vmem %s5, %s1011
      %p1013 = scmp.lt.s32.totalorder %s37, 1
      %s1014 = scalar_select %p1013, %s37, 1
      %s1015 = smul.addr %s1014, 4
      %s1016 = smul.addr %s1015, 8
      %s1017 = scalar_lea.vmem %s6, %s1016
      %p1018 = scmp.lt.s32.totalorder %s37, 1
      %s1019 = scalar_select %p1018, %s37, 1
      %s1020 = scalar_lea.vmem %s7, %s1019
      %p1021 = scmp.lt.s32.totalorder %s37, 1
      %s1022 = scalar_select %p1021, %s37, 1
      %s1023 = scalar_lea.vmem %s8, %s1022
      %p1024 = scmp.lt.s32.totalorder %s37, 1
      %s1025 = scalar_select %p1024, %s37, 1
      %s1026 = scalar_lea.vmem %s9, %s1025
      %p1027 = scmp.lt.s32.totalorder %s37, 1
      %s1028 = scalar_select %p1027, %s37, 1
      %s1029 = smul.addr %s1028, 4
      %s1030 = smul.addr %s1029, 8
      %s1031 = scalar_lea.vmem %s10, %s1030
      %p1032 = scmp.lt.s32.totalorder %s37, 1
      %s1033 = scalar_select %p1032, %s37, 1
      %s1034 = scalar_lea.vmem %s11, %s1033
      %p1035 = scmp.lt.s32.totalorder %s37, 1
      %s1036 = scalar_select %p1035, %s37, 1
      %s1037 = smul.addr %s1036, 4
      %s1038 = smul.addr %s1037, 8
      %s1039 = scalar_lea.vmem %s12, %s1038
      %p1040 = scmp.lt.s32.totalorder %s37, 1
      %s1041 = scalar_select %p1040, %s37, 1
      %s1042 = scalar_lea.vmem %s13, %s1041
      %p1043 = scmp.lt.s32.totalorder %s37, 1
      %s1044 = scalar_select %p1043, %s37, 1
      %s1045 = smul.addr %s1044, 4
      %s1046 = smul.addr %s1045, 8
      %s1047 = scalar_lea.vmem %s14, %s1046
      %p1048 = scmp.lt.s32.totalorder %s37, 1
      %s1049 = scalar_select %p1048, %s37, 1
      %s1050 = scalar_lea.vmem %s15, %s1049
      %p1051 = scmp.lt.s32.totalorder %s37, 1
      %s1052 = scalar_select %p1051, %s37, 1
      %s1053 = scalar_lea.vmem %s16, %s1052
      %p1054 = scmp.lt.s32.totalorder %s37, 1
      %s1055 = scalar_select %p1054, %s37, 1
      %s1056 = scalar_lea.vmem %s17, %s1055
      %p1057 = scmp.lt.s32.totalorder %s37, 1
      %s1058 = scalar_select %p1057, %s37, 1
      %s1059 = smul.addr %s1058, 4
      %s1060 = smul.addr %s1059, 8
      %s1061 = scalar_lea.vmem %s18, %s1060
      %p1062 = scmp.lt.s32.totalorder %s37, 1
      %s1063 = scalar_select %p1062, %s37, 1
      %s1064 = scalar_lea.vmem %s19, %s1063
      %p1065 = scmp.lt.s32.totalorder %s37, 1
      %s1066 = scalar_select %p1065, %s37, 1
      %s1067 = smul.addr %s1066, 16
      %s1068 = smul.addr %s1067, 8
      %s1069 = scalar_lea.vmem %s20, %s1068
      %p1070 = scmp.lt.s32.totalorder %s37, 1
      %s1071 = scalar_select %p1070, %s37, 1
      %s1072 = scalar_lea.vmem %s21, %s1071
      %p1073 = scmp.lt.s32.totalorder %s37, 1
      %s1074 = scalar_select %p1073, %s37, 1
      %s1075 = scalar_lea.vmem %s22, %s1074
      %p1076 = scmp.lt.s32.totalorder %s37, 1
      %s1077 = scalar_select %p1076, %s37, 1
      %s1078 = scalar_lea.vmem %s23, %s1077
      %p1079 = scmp.eq.s32.totalorder %s37, 0
      // Predicated region
      $region125: #{decoder_forward.1} parent=123 // pred_check
        %p1080 = pneg %p1079
      $region126: #{decoder_forward.1} parent=123 // pred_check_branch
        %1082 = sbr.rel (%p1080) target = $region128
      $region127: #{decoder_forward.1} parent=123 // pred_region
        %v1083 = vld [vmem:[%s0] sm:$0xff]
        %v1084 = vld [vmem:[%s0 + $0x8] sm:$0xff]
        %vm1085 = vcmask 261120
        %1086 = vst.msk [vmem:[#allocation2] sm:$0xff] %vm1085, %v1083
        %1087 = vst.msk [vmem:[#allocation2 + $0x8] sm:$0xff] %vm1085, %v1084
      $region128: #{decoder_forward.1} parent=123 // pred_fallthru
        _
      %v1088 = vld [vmem:[#allocation2] sm:$0xff]
      %v1089 = vld [vmem:[#allocation2 + $0x8] sm:$0xff]
      %v1090 = vld [vmem:[%s1009] sm:$0xff]
      %v1091 = vld [vmem:[%s1009 + $0x8] sm:$0xff]
      %v1092 = vld [vmem:[%s1009 + $0x10] sm:$0xff]
      %v1093 = vld [vmem:[%s1009 + $0x18] sm:$0xff]
      %v1094 = vld [vmem:[%s1012] sm:$0x1]
      %v1096 = vlaneseq
      %v1097 = vshrl.u32 %v1096, 7
      %v1098 = vsub.s32 0, %v1097
      %v1099 = vrot.slane %v1094, %v1098
      %vm1101 = vcmask 261120
      %v1103 = vsel %vm1101, %v1088, 0
      %v1106 = vsel %vm1101, %v1089, 0
      %1108 = vmatprep.subr.mxu0 0.0
      %1109 = vmatpush1.msra.mxu0 %v1090
      %1110 = vmatprep.subr.mxu0 0.0
      %1111 = vmatpush1.msra.mxu0 %v1091
      %1112 = vmatprep.subr.mxu0 0.0
      %1113 = vmatpush1.msra.mxu0 %v1092
      %1114 = vmatprep.subr.mxu0 0.0
      %1115 = vmatpush1.msra.mxu0 %v1093
      %1116 = vmatprep.subr.mxu0 0.0
      %1117 = vmatpush1.msra.mxu0 0.0
      %1118 = vmatprep.subr.mxu0 0.0
      %1119 = vmatpush1.msra.mxu0 0.0
      %1120 = vmatprep.subr.mxu0 0.0
      %1121 = vmatpush1.msra.mxu0 0.0
      %1122 = vmatprep.subr.mxu0 0.0
      %1123 = vmatpush1.msra.mxu0 0.0
      %1124 = vmatprep.subr.mxu0 0.0
      %1125 = vmatpush1.msra.mxu0 0.0
      %1126 = vmatprep.subr.mxu0 0.0
      %1127 = vmatpush1.msra.mxu0 0.0
      %1128 = vmatprep.subr.mxu0 0.0
      %1129 = vmatpush1.msra.mxu0 0.0
      %1130 = vmatprep.subr.mxu0 0.0
      %1131 = vmatpush1.msra.mxu0 0.0
      %1132 = vmatprep.subr.mxu0 0.0
      %1133 = vmatpush1.msra.mxu0 0.0
      %1134 = vmatprep.subr.mxu0 0.0
      %1135 = vmatpush1.msra.mxu0 0.0
      %1136 = vmatprep.subr.mxu0 0.0
      %1137 = vmatpush1.msra.mxu0 0.0
      %1138 = vmatprep.subr.mxu0 0.0
      %1139 = vmatpush1.msra.mxu0 0.0
      %1140 = vmatprep.subr.mxu0 0.0
      %1141 = vmatpush1.msra.mxu0 0.0
      %1142 = vmatprep.subr.mxu0 0.0
      %1143 = vmatpush1.msra.mxu0 0.0
      %1144 = vmatprep.subr.mxu0 0.0
      %1145 = vmatpush1.msra.mxu0 0.0
      %1146 = vmatprep.subr.mxu0 0.0
      %1147 = vmatpush1.msra.mxu0 0.0
      %1148 = vmatprep.subr.mxu0 0.0
      %1149 = vmatpush1.msra.mxu0 0.0
      %1150 = vmatprep.subr.mxu0 0.0
      %1151 = vmatpush1.msra.mxu0 0.0
      %1152 = vmatprep.subr.mxu0 0.0
      %1153 = vmatpush1.msra.mxu0 0.0
      %1154 = vmatprep.subr.mxu0 0.0
      %1155 = vmatpush1.msra.mxu0 0.0
      %1156 = vmatprep.subr.mxu0 0.0
      %1157 = vmatpush1.msra.mxu0 0.0
      %1158 = vmatprep.subr.mxu0 0.0
      %1159 = vmatpush1.msra.mxu0 0.0
      %1160 = vmatprep.subr.mxu0 0.0
      %1161 = vmatpush1.msra.mxu0 0.0
      %1162 = vmatprep.subr.mxu0 0.0
      %1163 = vmatpush1.msra.mxu0 0.0
      %1164 = vmatprep.subr.mxu0 0.0
      %1165 = vmatpush1.msra.mxu0 0.0
      %1166 = vmatprep.subr.mxu0 0.0
      %1167 = vmatpush1.msra.mxu0 0.0
      %1168 = vmatprep.subr.mxu0 0.0
      %1169 = vmatpush1.msra.mxu0 0.0
      %1170 = vmatprep.subr.mxu0 0.0
      %1171 = vmatpush1.msra.mxu0 0.0
      %1172 = vmatprep.mubr.f32.mxu0 0.0
      %1173 = vmatmul.mubr.f32.gmra.mrb[0].mxu0 %v1103
      %v1174 = vpop.f32.mrb[0].mxu0
      %v1175 = vadd.f32 %v1099, %v1174
      %v1176 = vpop.f32.mrb[0].mxu0
      %1177 = vmatprep.mubr.f32.mxu0 0.0
      %1178 = vmatmul.mubr.f32.gmra.mrb[0].mxu0 %v1106
      %v1179 = vpop.f32.mrb[0].mxu0
      %v1180 = vadd.f32 %v1099, %v1179
      %v1181 = vpop.f32.mrb[0].mxu0
      %1182 = vdwg.mxu0
      %v1183 = vld [vmem:[%s2] sm:$0xff]
      %1185 = vrot.lane.b32.xlu0 %v1175, 96
      %v1186 = vpop.permute.xlu0 %1185
      %vm1187 = vcmask 64512
      %v1188 = vsel %vm1187, %v1175, 0
      %v1190 = vsel %vm1187, %v1186, 0
      %1192 = vmatprep.subr.mxu0 0.0
      %1193 = vmatpush1.xpose.msra.mxu0 %v1190
      %1194 = vmatprep.subr.mxu0 0.0
      %1195 = vmatpush1.xpose.msra.mxu0 0.0
      %1196 = vmatprep.subr.mxu0 0.0
      %1197 = vmatpush1.xpose.msra.mxu0 0.0
      %1198 = vmatprep.subr.mxu0 0.0
      %1199 = vmatpush1.xpose.msra.mxu0 0.0
      %1200 = vmatprep.subr.mxu0 0.0
      %1201 = vmatpush1.xpose.msra.mxu0 0.0
      %1202 = vmatprep.subr.mxu0 0.0
      %1203 = vmatpush1.xpose.msra.mxu0 0.0
      %1204 = vmatprep.subr.mxu0 0.0
      %1205 = vmatpush1.xpose.msra.mxu0 0.0
      %1206 = vmatprep.subr.mxu0 0.0
      %1207 = vmatpush1.xpose.msra.mxu0 0.0
      %1208 = vmatprep.subr.mxu0 0.0
      %1209 = vmatpush1.xpose.msra.mxu0 0.0
      %1210 = vmatprep.subr.mxu0 0.0
      %1211 = vmatpush1.xpose.msra.mxu0 0.0
      %1212 = vmatprep.subr.mxu0 0.0
      %1213 = vmatpush1.xpose.msra.mxu0 0.0
      %1214 = vmatprep.subr.mxu0 0.0
      %1215 = vmatpush1.xpose.msra.mxu0 0.0
      %1216 = vmatprep.subr.mxu0 0.0
      %1217 = vmatpush1.xpose.msra.mxu0 0.0
      %1218 = vmatprep.subr.mxu0 0.0
      %1219 = vmatpush1.xpose.msra.mxu0 0.0
      %1220 = vmatprep.subr.mxu0 0.0
      %1221 = vmatpush1.xpose.msra.mxu0 0.0
      %1222 = vmatprep.subr.mxu0 0.0
      %1223 = vmatpush1.xpose.msra.mxu0 0.0
      %1224 = vmatprep.subr.mxu0 0.0
      %1225 = vmatpush1.xpose.msra.mxu0 0.0
      %1226 = vmatprep.subr.mxu0 0.0
      %1227 = vmatpush1.xpose.msra.mxu0 0.0
      %1228 = vmatprep.subr.mxu0 0.0
      %1229 = vmatpush1.xpose.msra.mxu0 0.0
      %1230 = vmatprep.subr.mxu0 0.0
      %1231 = vmatpush1.xpose.msra.mxu0 0.0
      %1232 = vmatprep.subr.mxu0 0.0
      %1233 = vmatpush1.xpose.msra.mxu0 0.0
      %1234 = vmatprep.subr.mxu0 0.0
      %1235 = vmatpush1.xpose.msra.mxu0 0.0
      %1236 = vmatprep.subr.mxu0 0.0
      %1237 = vmatpush1.xpose.msra.mxu0 0.0
      %1238 = vmatprep.subr.mxu0 0.0
      %1239 = vmatpush1.xpose.msra.mxu0 0.0
      %1240 = vmatprep.subr.mxu0 0.0
      %1241 = vmatpush1.xpose.msra.mxu0 0.0
      %1242 = vmatprep.subr.mxu0 0.0
      %1243 = vmatpush1.xpose.msra.mxu0 0.0
      %1244 = vmatprep.subr.mxu0 0.0
      %1245 = vmatpush1.xpose.msra.mxu0 0.0
      %1246 = vmatprep.subr.mxu0 0.0
      %1247 = vmatpush1.xpose.msra.mxu0 0.0
      %1248 = vmatprep.subr.mxu0 0.0
      %1249 = vmatpush1.xpose.msra.mxu0 0.0
      %1250 = vmatprep.subr.mxu0 0.0
      %1251 = vmatpush1.xpose.msra.mxu0 0.0
      %1252 = vmatprep.subr.mxu0 0.0
      %1253 = vmatpush1.xpose.msra.mxu0 0.0
      %1254 = vmatprep.subr.mxu0 0.0
      %1255 = vmatpush1.xpose.msra.mxu0 0.0
      %1256 = vmatprep.mubr.f32.mxu0 0.0
      %1257 = vmatmul.mubr.f32.gmra.mrb[0].mxu0 %v1188
      %v1258 = vpop.f32.mrb[0].mxu0
      %v1259 = vadd.f32 0.0, %v1258
      %v1260 = vpop.f32.mrb[0].mxu0
      %1261 = vdwg.mxu0
      %1263 = vrot.lane.b32.xlu0 %v1180, 96
      %v1264 = vpop.permute.xlu0 %1263
      %v1265 = vsel %vm1187, %v1180, 0
      %v1267 = vsel %vm1187, %v1264, 0
      %1269 = vmatprep.subr.mxu0 0.0
      %1270 = vmatpush1.xpose.msra.mxu0 %v1267
      %1271 = vmatprep.subr.mxu0 0.0
      %1272 = vmatpush1.xpose.msra.mxu0 0.0
      %1273 = vmatprep.subr.mxu0 0.0
      %1274 = vmatpush1.xpose.msra.mxu0 0.0
      %1275 = vmatprep.subr.mxu0 0.0
      %1276 = vmatpush1.xpose.msra.mxu0 0.0
      %1277 = vmatprep.subr.mxu0 0.0
      %1278 = vmatpush1.xpose.msra.mxu0 0.0
      %1279 = vmatprep.subr.mxu0 0.0
      %1280 = vmatpush1.xpose.msra.mxu0 0.0
      %1281 = vmatprep.subr.mxu0 0.0
      %1282 = vmatpush1.xpose.msra.mxu0 0.0
      %1283 = vmatprep.subr.mxu0 0.0
      %1284 = vmatpush1.xpose.msra.mxu0 0.0
      %1285 = vmatprep.subr.mxu0 0.0
      %1286 = vmatpush1.xpose.msra.mxu0 0.0
      %1287 = vmatprep.subr.mxu0 0.0
      %1288 = vmatpush1.xpose.msra.mxu0 0.0
      %1289 = vmatprep.subr.mxu0 0.0
      %1290 = vmatpush1.xpose.msra.mxu0 0.0
      %1291 = vmatprep.subr.mxu0 0.0
      %1292 = vmatpush1.xpose.msra.mxu0 0.0
      %1293 = vmatprep.subr.mxu0 0.0
      %1294 = vmatpush1.xpose.msra.mxu0 0.0
      %1295 = vmatprep.subr.mxu0 0.0
      %1296 = vmatpush1.xpose.msra.mxu0 0.0
      %1297 = vmatprep.subr.mxu0 0.0
      %1298 = vmatpush1.xpose.msra.mxu0 0.0
      %1299 = vmatprep.subr.mxu0 0.0
      %1300 = vmatpush1.xpose.msra.mxu0 0.0
      %1301 = vmatprep.subr.mxu0 0.0
      %1302 = vmatpush1.xpose.msra.mxu0 0.0
      %1303 = vmatprep.subr.mxu0 0.0
      %1304 = vmatpush1.xpose.msra.mxu0 0.0
      %1305 = vmatprep.subr.mxu0 0.0
      %1306 = vmatpush1.xpose.msra.mxu0 0.0
      %1307 = vmatprep.subr.mxu0 0.0
      %1308 = vmatpush1.xpose.msra.mxu0 0.0
      %1309 = vmatprep.subr.mxu0 0.0
      %1310 = vmatpush1.xpose.msra.mxu0 0.0
      %1311 = vmatprep.subr.mxu0 0.0
      %1312 = vmatpush1.xpose.msra.mxu0 0.0
      %1313 = vmatprep.subr.mxu0 0.0
      %1314 = vmatpush1.xpose.msra.mxu0 0.0
      %1315 = vmatprep.subr.mxu0 0.0
      %1316 = vmatpush1.xpose.msra.mxu0 0.0
      %1317 = vmatprep.subr.mxu0 0.0
      %1318 = vmatpush1.xpose.msra.mxu0 0.0
      %1319 = vmatprep.subr.mxu0 0.0
      %1320 = vmatpush1.xpose.msra.mxu0 0.0
      %1321 = vmatprep.subr.mxu0 0.0
      %1322 = vmatpush1.xpose.msra.mxu0 0.0
      %1323 = vmatprep.subr.mxu0 0.0
      %1324 = vmatpush1.xpose.msra.mxu0 0.0
      %1325 = vmatprep.subr.mxu0 0.0
      %1326 = vmatpush1.xpose.msra.mxu0 0.0
      %1327 = vmatprep.subr.mxu0 0.0
      %1328 = vmatpush1.xpose.msra.mxu0 0.0
      %1329 = vmatprep.subr.mxu0 0.0
      %1330 = vmatpush1.xpose.msra.mxu0 0.0
      %1331 = vmatprep.subr.mxu0 0.0
      %1332 = vmatpush1.xpose.msra.mxu0 0.0
      %1333 = vmatprep.mubr.f32.mxu0 0.0
      %1334 = vmatmul.mubr.f32.gmra.mrb[0].mxu0 %v1265
      %v1335 = vpop.f32.mrb[0].mxu0
      %v1336 = vadd.f32 0.0, %v1335
      %v1337 = vpop.f32.mrb[0].mxu0
      %1338 = vdwg.mxu0
      %v1339 = vmul.f32 %v1259, 0.35355338
      %v1340 = vmul.f32 %v1336, 0.35355338
      %v1341 = vadd.f32 %v1339, %v1183
      %v1342 = vadd.f32 %v1340, %v1183
      %v1343 = vsel %vm1187, %v1341, -inf
      %1344 = vmax.xlane.f32.xlu0 %v1343
      %v1345 = vpop.xlane.xlu0 %1344
      %v1346 = vsel %vm1187, %v1342, -inf
      %1347 = vmax.xlane.f32.xlu0 %v1346
      %v1348 = vpop.xlane.xlu0 %1347
      %v1349 = vsub.f32 %v1341, %v1345
      %v1350 = vsub.f32 %v1342, %v1348
      %v1351 = vmul.f32 %v1349, 1.442695
      %v1352 = vpow.pop %v1351
      %v1353 = vmul.f32 %v1350, 1.442695
      %v1354 = vpow.pop %v1353
      %v1355 = vsel %vm1187, %v1352, 0.0
      %1356 = vadd.xlane.f32.xlu0 %v1355
      %v1357 = vpop.xlane.xlu0 %1356
      %v1358 = vsel %vm1187, %v1354, 0.0
      %1359 = vadd.xlane.f32.xlu0 %v1358
      %v1360 = vpop.xlane.xlu0 %1359
      %v1361 = vrcp.pop %v1357
      %v1362 = vrcp.pop %v1360
      %v1363 = vmul.f32 %v1352, %v1361
      %v1364 = vmul.f32 %v1354, %v1362
      %1365 = vrot.lane.b32.xlu0 %v1175, 64
      %v1366 = vpop.permute.xlu0 %1365
      %v1369 = vsel %vm1187, %v1363, 0
      %1371 = vmatprep.subr.mxu0 0.0
      %1372 = vmatpush1.msra.mxu0 %v1366
      %1373 = vmatprep.subr.mxu0 0.0
      %1374 = vmatpush1.msra.mxu0 0.0
      %1375 = vmatprep.subr.mxu0 0.0
      %1376 = vmatpush1.msra.mxu0 0.0
      %1377 = vmatprep.subr.mxu0 0.0
      %1378 = vmatpush1.msra.mxu0 0.0
      %1379 = vmatprep.subr.mxu0 0.0
      %1380 = vmatpush1.msra.mxu0 0.0
      %1381 = vmatprep.subr.mxu0 0.0
      %1382 = vmatpush1.msra.mxu0 0.0
      %1383 = vmatprep.subr.mxu0 0.0
      %1384 = vmatpush1.msra.mxu0 0.0
      %1385 = vmatprep.subr.mxu0 0.0
      %1386 = vmatpush1.msra.mxu0 0.0
      %1387 = vmatprep.subr.mxu0 0.0
      %1388 = vmatpush1.msra.mxu0 0.0
      %1389 = vmatprep.subr.mxu0 0.0
      %1390 = vmatpush1.msra.mxu0 0.0
      %1391 = vmatprep.subr.mxu0 0.0
      %1392 = vmatpush1.msra.mxu0 0.0
      %1393 = vmatprep.subr.mxu0 0.0
      %1394 = vmatpush1.msra.mxu0 0.0
      %1395 = vmatprep.subr.mxu0 0.0
      %1396 = vmatpush1.msra.mxu0 0.0
      %1397 = vmatprep.subr.mxu0 0.0
      %1398 = vmatpush1.msra.mxu0 0.0
      %1399 = vmatprep.subr.mxu0 0.0
      %1400 = vmatpush1.msra.mxu0 0.0
      %1401 = vmatprep.subr.mxu0 0.0
      %1402 = vmatpush1.msra.mxu0 0.0
      %1403 = vmatprep.subr.mxu0 0.0
      %1404 = vmatpush1.msra.mxu0 0.0
      %1405 = vmatprep.subr.mxu0 0.0
      %1406 = vmatpush1.msra.mxu0 0.0
      %1407 = vmatprep.subr.mxu0 0.0
      %1408 = vmatpush1.msra.mxu0 0.0
      %1409 = vmatprep.subr.mxu0 0.0
      %1410 = vmatpush1.msra.mxu0 0.0
      %1411 = vmatprep.subr.mxu0 0.0
      %1412 = vmatpush1.msra.mxu0 0.0
      %1413 = vmatprep.subr.mxu0 0.0
      %1414 = vmatpush1.msra.mxu0 0.0
      %1415 = vmatprep.subr.mxu0 0.0
      %1416 = vmatpush1.msra.mxu0 0.0
      %1417 = vmatprep.subr.mxu0 0.0
      %1418 = vmatpush1.msra.mxu0 0.0
      %1419 = vmatprep.subr.mxu0 0.0
      %1420 = vmatpush1.msra.mxu0 0.0
      %1421 = vmatprep.subr.mxu0 0.0
      %1422 = vmatpush1.msra.mxu0 0.0
      %1423 = vmatprep.subr.mxu0 0.0
      %1424 = vmatpush1.msra.mxu0 0.0
      %1425 = vmatprep.subr.mxu0 0.0
      %1426 = vmatpush1.msra.mxu0 0.0
      %1427 = vmatprep.subr.mxu0 0.0
      %1428 = vmatpush1.msra.mxu0 0.0
      %1429 = vmatprep.subr.mxu0 0.0
      %1430 = vmatpush1.msra.mxu0 0.0
      %1431 = vmatprep.subr.mxu0 0.0
      %1432 = vmatpush1.msra.mxu0 0.0
      %1433 = vmatprep.subr.mxu0 0.0
      %1434 = vmatpush1.msra.mxu0 0.0
      %1435 = vmatprep.mubr.f32.mxu0 0.0
      %1436 = vmatmul.mubr.f32.gmra.mrb[0].mxu0 %v1369
      %v1437 = vpop.f32.mrb[0].mxu0
      %v1438 = vadd.f32 0.0, %v1437
      %v1439 = vpop.f32.mrb[0].mxu0
      %1440 = vdwg.mxu0
      %1441 = vrot.lane.b32.xlu0 %v1180, 64
      %v1442 = vpop.permute.xlu0 %1441
      %v1445 = vsel %vm1187, %v1364, 0
      %1447 = vmatprep.subr.mxu0 0.0
      %1448 = vmatpush1.msra.mxu0 %v1442
      %1449 = vmatprep.subr.mxu0 0.0
      %1450 = vmatpush1.msra.mxu0 0.0
      %1451 = vmatprep.subr.mxu0 0.0
      %1452 = vmatpush1.msra.mxu0 0.0
      %1453 = vmatprep.subr.mxu0 0.0
      %1454 = vmatpush1.msra.mxu0 0.0
      %1455 = vmatprep.subr.mxu0 0.0
      %1456 = vmatpush1.msra.mxu0 0.0
      %1457 = vmatprep.subr.mxu0 0.0
      %1458 = vmatpush1.msra.mxu0 0.0
      %1459 = vmatprep.subr.mxu0 0.0
      %1460 = vmatpush1.msra.mxu0 0.0
      %1461 = vmatprep.subr.mxu0 0.0
      %1462 = vmatpush1.msra.mxu0 0.0
      %1463 = vmatprep.subr.mxu0 0.0
      %1464 = vmatpush1.msra.mxu0 0.0
      %1465 = vmatprep.subr.mxu0 0.0
      %1466 = vmatpush1.msra.mxu0 0.0
      %1467 = vmatprep.subr.mxu0 0.0
      %1468 = vmatpush1.msra.mxu0 0.0
      %1469 = vmatprep.subr.mxu0 0.0
      %1470 = vmatpush1.msra.mxu0 0.0
      %1471 = vmatprep.subr.mxu0 0.0
      %1472 = vmatpush1.msra.mxu0 0.0
      %1473 = vmatprep.subr.mxu0 0.0
      %1474 = vmatpush1.msra.mxu0 0.0
      %1475 = vmatprep.subr.mxu0 0.0
      %1476 = vmatpush1.msra.mxu0 0.0
      %1477 = vmatprep.subr.mxu0 0.0
      %1478 = vmatpush1.msra.mxu0 0.0
      %1479 = vmatprep.subr.mxu0 0.0
      %1480 = vmatpush1.msra.mxu0 0.0
      %1481 = vmatprep.subr.mxu0 0.0
      %1482 = vmatpush1.msra.mxu0 0.0
      %1483 = vmatprep.subr.mxu0 0.0
      %1484 = vmatpush1.msra.mxu0 0.0
      %1485 = vmatprep.subr.mxu0 0.0
      %1486 = vmatpush1.msra.mxu0 0.0
      %1487 = vmatprep.subr.mxu0 0.0
      %1488 = vmatpush1.msra.mxu0 0.0
      %1489 = vmatprep.subr.mxu0 0.0
      %1490 = vmatpush1.msra.mxu0 0.0
      %1491 = vmatprep.subr.mxu0 0.0
      %1492 = vmatpush1.msra.mxu0 0.0
      %1493 = vmatprep.subr.mxu0 0.0
      %1494 = vmatpush1.msra.mxu0 0.0
      %1495 = vmatprep.subr.mxu0 0.0
      %1496 = vmatpush1.msra.mxu0 0.0
      %1497 = vmatprep.subr.mxu0 0.0
      %1498 = vmatpush1.msra.mxu0 0.0
      %1499 = vmatprep.subr.mxu0 0.0
      %1500 = vmatpush1.msra.mxu0 0.0
      %1501 = vmatprep.subr.mxu0 0.0
      %1502 = vmatpush1.msra.mxu0 0.0
      %1503 = vmatprep.subr.mxu0 0.0
      %1504 = vmatpush1.msra.mxu0 0.0
      %1505 = vmatprep.subr.mxu0 0.0
      %1506 = vmatpush1.msra.mxu0 0.0
      %1507 = vmatprep.subr.mxu0 0.0
      %1508 = vmatpush1.msra.mxu0 0.0
      %1509 = vmatprep.subr.mxu0 0.0
      %1510 = vmatpush1.msra.mxu0 0.0
      %1511 = vmatprep.mubr.f32.mxu0 0.0
      %1512 = vmatmul.mubr.f32.gmra.mrb[0].mxu0 %v1445
      %v1513 = vpop.f32.mrb[0].mxu0
      %v1514 = vadd.f32 0.0, %v1513
      %v1515 = vpop.f32.mrb[0].mxu0
      %1516 = vdwg.mxu0
      %1517 = vrot.lane.b32.xlu0 %v1175, 120
      %v1518 = vpop.permute.xlu0 %1517
      %1519 = vrot.lane.b32.xlu0 %v1175, 88
      %v1520 = vpop.permute.xlu0 %1519
      %v1521 = vsel %vm1187, %v1518, 0
      %v1523 = vsel %vm1187, %v1520, 0
      %1525 = vmatprep.subr.mxu0 0.0
      %1526 = vmatpush1.xpose.msra.mxu0 %v1523
      %1527 = vmatprep.subr.mxu0 0.0
      %1528 = vmatpush1.xpose.msra.mxu0 0.0
      %1529 = vmatprep.subr.mxu0 0.0
      %1530 = vmatpush1.xpose.msra.mxu0 0.0
      %1531 = vmatprep.subr.mxu0 0.0
      %1532 = vmatpush1.xpose.msra.mxu0 0.0
      %1533 = vmatprep.subr.mxu0 0.0
      %1534 = vmatpush1.xpose.msra.mxu0 0.0
      %1535 = vmatprep.subr.mxu0 0.0
      %1536 = vmatpush1.xpose.msra.mxu0 0.0
      %1537 = vmatprep.subr.mxu0 0.0
      %1538 = vmatpush1.xpose.msra.mxu0 0.0
      %1539 = vmatprep.subr.mxu0 0.0
      %1540 = vmatpush1.xpose.msra.mxu0 0.0
      %1541 = vmatprep.subr.mxu0 0.0
      %1542 = vmatpush1.xpose.msra.mxu0 0.0
      %1543 = vmatprep.subr.mxu0 0.0
      %1544 = vmatpush1.xpose.msra.mxu0 0.0
      %1545 = vmatprep.subr.mxu0 0.0
      %1546 = vmatpush1.xpose.msra.mxu0 0.0
      %1547 = vmatprep.subr.mxu0 0.0
      %1548 = vmatpush1.xpose.msra.mxu0 0.0
      %1549 = vmatprep.subr.mxu0 0.0
      %1550 = vmatpush1.xpose.msra.mxu0 0.0
      %1551 = vmatprep.subr.mxu0 0.0
      %1552 = vmatpush1.xpose.msra.mxu0 0.0
      %1553 = vmatprep.subr.mxu0 0.0
      %1554 = vmatpush1.xpose.msra.mxu0 0.0
      %1555 = vmatprep.subr.mxu0 0.0
      %1556 = vmatpush1.xpose.msra.mxu0 0.0
      %1557 = vmatprep.subr.mxu0 0.0
      %1558 = vmatpush1.xpose.msra.mxu0 0.0
      %1559 = vmatprep.subr.mxu0 0.0
      %1560 = vmatpush1.xpose.msra.mxu0 0.0
      %1561 = vmatprep.subr.mxu0 0.0
      %1562 = vmatpush1.xpose.msra.mxu0 0.0
      %1563 = vmatprep.subr.mxu0 0.0
      %1564 = vmatpush1.xpose.msra.mxu0 0.0
      %1565 = vmatprep.subr.mxu0 0.0
      %1566 = vmatpush1.xpose.msra.mxu0 0.0
      %1567 = vmatprep.subr.mxu0 0.0
      %1568 = vmatpush1.xpose.msra.mxu0 0.0
      %1569 = vmatprep.subr.mxu0 0.0
      %1570 = vmatpush1.xpose.msra.mxu0 0.0
      %1571 = vmatprep.subr.mxu0 0.0
      %1572 = vmatpush1.xpose.msra.mxu0 0.0
      %1573 = vmatprep.subr.mxu0 0.0
      %1574 = vmatpush1.xpose.msra.mxu0 0.0
      %1575 = vmatprep.subr.mxu0 0.0
      %1576 = vmatpush1.xpose.msra.mxu0 0.0
      %1577 = vmatprep.subr.mxu0 0.0
      %1578 = vmatpush1.xpose.msra.mxu0 0.0
      %1579 = vmatprep.subr.mxu0 0.0
      %1580 = vmatpush1.xpose.msra.mxu0 0.0
      %1581 = vmatprep.subr.mxu0 0.0
      %1582 = vmatpush1.xpose.msra.mxu0 0.0
      %1583 = vmatprep.subr.mxu0 0.0
      %1584 = vmatpush1.xpose.msra.mxu0 0.0
      %1585 = vmatprep.subr.mxu0 0.0
      %1586 = vmatpush1.xpose.msra.mxu0 0.0
      %1587 = vmatprep.subr.mxu0 0.0
      %1588 = vmatpush1.xpose.msra.mxu0 0.0
      %1589 = vmatprep.mubr.f32.mxu0 0.0
      %1590 = vmatmul.mubr.f32.gmra.mrb[0].mxu0 %v1521
      %v1591 = vpop.f32.mrb[0].mxu0
      %v1592 = vadd.f32 0.0, %v1591
      %v1593 = vpop.f32.mrb[0].mxu0
      %1594 = vdwg.mxu0
      %1595 = vrot.lane.b32.xlu0 %v1180, 120
      %v1596 = vpop.permute.xlu0 %1595
      %1597 = vrot.lane.b32.xlu0 %v1180, 88
      %v1598 = vpop.permute.xlu0 %1597
      %v1599 = vsel %vm1187, %v1596, 0
      %v1601 = vsel %vm1187, %v1598, 0
      %1603 = vmatprep.subr.mxu0 0.0
      %1604 = vmatpush1.xpose.msra.mxu0 %v1601
      %1605 = vmatprep.subr.mxu0 0.0
      %1606 = vmatpush1.xpose.msra.mxu0 0.0
      %1607 = vmatprep.subr.mxu0 0.0
      %1608 = vmatpush1.xpose.msra.mxu0 0.0
      %1609 = vmatprep.subr.mxu0 0.0
      %1610 = vmatpush1.xpose.msra.mxu0 0.0
      %1611 = vmatprep.subr.mxu0 0.0
      %1612 = vmatpush1.xpose.msra.mxu0 0.0
      %1613 = vmatprep.subr.mxu0 0.0
      %1614 = vmatpush1.xpose.msra.mxu0 0.0
      %1615 = vmatprep.subr.mxu0 0.0
      %1616 = vmatpush1.xpose.msra.mxu0 0.0
      %1617 = vmatprep.subr.mxu0 0.0
      %1618 = vmatpush1.xpose.msra.mxu0 0.0
      %1619 = vmatprep.subr.mxu0 0.0
      %1620 = vmatpush1.xpose.msra.mxu0 0.0
      %1621 = vmatprep.subr.mxu0 0.0
      %1622 = vmatpush1.xpose.msra.mxu0 0.0
      %1623 = vmatprep.subr.mxu0 0.0
      %1624 = vmatpush1.xpose.msra.mxu0 0.0
      %1625 = vmatprep.subr.mxu0 0.0
      %1626 = vmatpush1.xpose.msra.mxu0 0.0
      %1627 = vmatprep.subr.mxu0 0.0
      %1628 = vmatpush1.xpose.msra.mxu0 0.0
      %1629 = vmatprep.subr.mxu0 0.0
      %1630 = vmatpush1.xpose.msra.mxu0 0.0
      %1631 = vmatprep.subr.mxu0 0.0
      %1632 = vmatpush1.xpose.msra.mxu0 0.0
      %1633 = vmatprep.subr.mxu0 0.0
      %1634 = vmatpush1.xpose.msra.mxu0 0.0
      %1635 = vmatprep.subr.mxu0 0.0
      %1636 = vmatpush1.xpose.msra.mxu0 0.0
      %1637 = vmatprep.subr.mxu0 0.0
      %1638 = vmatpush1.xpose.msra.mxu0 0.0
      %1639 = vmatprep.subr.mxu0 0.0
      %1640 = vmatpush1.xpose.msra.mxu0 0.0
      %1641 = vmatprep.subr.mxu0 0.0
      %1642 = vmatpush1.xpose.msra.mxu0 0.0
      %1643 = vmatprep.subr.mxu0 0.0
      %1644 = vmatpush1.xpose.msra.mxu0 0.0
      %1645 = vmatprep.subr.mxu0 0.0
      %1646 = vmatpush1.xpose.msra.mxu0 0.0
      %1647 = vmatprep.subr.mxu0 0.0
      %1648 = vmatpush1.xpose.msra.mxu0 0.0
      %1649 = vmatprep.subr.mxu0 0.0
      %1650 = vmatpush1.xpose.msra.mxu0 0.0
      %1651 = vmatprep.subr.mxu0 0.0
      %1652 = vmatpush1.xpose.msra.mxu0 0.0
      %1653 = vmatprep.subr.mxu0 0.0
      %1654 = vmatpush1.xpose.msra.mxu0 0.0
      %1655 = vmatprep.subr.mxu0 0.0
      %1656 = vmatpush1.xpose.msra.mxu0 0.0
      %1657 = vmatprep.subr.mxu0 0.0
      %1658 = vmatpush1.xpose.msra.mxu0 0.0
      %1659 = vmatprep.subr.mxu0 0.0
      %1660 = vmatpush1.xpose.msra.mxu0 0.0
      %1661 = vmatprep.subr.mxu0 0.0
      %1662 = vmatpush1.xpose.msra.mxu0 0.0
      %1663 = vmatprep.subr.mxu0 0.0
      %1664 = vmatpush1.xpose.msra.mxu0 0.0
      %1665 = vmatprep.subr.mxu0 0.0
      %1666 = vmatpush1.xpose.msra.mxu0 0.0
      %1667 = vmatprep.mubr.f32.mxu0 0.0
      %1668 = vmatmul.mubr.f32.gmra.mrb[0].mxu0 %v1599
      %v1669 = vpop.f32.mrb[0].mxu0
      %v1670 = vadd.f32 0.0, %v1669
      %v1671 = vpop.f32.mrb[0].mxu0
      %1672 = vdwg.mxu0
      %v1673 = vmul.f32 %v1592, 0.35355338
      %v1674 = vmul.f32 %v1670, 0.35355338
      %v1675 = vadd.f32 %v1673, %v1183
      %v1676 = vadd.f32 %v1674, %v1183
      %v1677 = vsel %vm1187, %v1675, -inf
      %1678 = vmax.xlane.f32.xlu0 %v1677
      %v1679 = vpop.xlane.xlu0 %1678
      %v1680 = vsel %vm1187, %v1676, -inf
      %1681 = vmax.xlane.f32.xlu0 %v1680
      %v1682 = vpop.xlane.xlu0 %1681
      %v1683 = vsub.f32 %v1675, %v1679
      %v1684 = vsub.f32 %v1676, %v1682
      %v1685 = vmul.f32 %v1683, 1.442695
      %v1686 = vpow.pop %v1685
      %v1687 = vmul.f32 %v1684, 1.442695
      %v1688 = vpow.pop %v1687
      %v1689 = vsel %vm1187, %v1686, 0.0
      %1690 = vadd.xlane.f32.xlu0 %v1689
      %v1691 = vpop.xlane.xlu0 %1690
      %v1692 = vsel %vm1187, %v1688, 0.0
      %1693 = vadd.xlane.f32.xlu0 %v1692
      %v1694 = vpop.xlane.xlu0 %1693
      %v1695 = vrcp.pop %v1691
      %v1696 = vrcp.pop %v1694
      %v1697 = vmul.f32 %v1686, %v1695
      %v1698 = vmul.f32 %v1688, %v1696
      %1699 = vrot.lane.b32.xlu0 %v1175, 56
      %v1700 = vpop.permute.xlu0 %1699
      %v1703 = vsel %vm1187, %v1697, 0
      %1705 = vmatprep.subr.mxu0 0.0
      %1706 = vmatpush1.msra.mxu0 %v1700
      %1707 = vmatprep.subr.mxu0 0.0
      %1708 = vmatpush1.msra.mxu0 0.0
      %1709 = vmatprep.subr.mxu0 0.0
      %1710 = vmatpush1.msra.mxu0 0.0
      %1711 = vmatprep.subr.mxu0 0.0
      %1712 = vmatpush1.msra.mxu0 0.0
      %1713 = vmatprep.subr.mxu0 0.0
      %1714 = vmatpush1.msra.mxu0 0.0
      %1715 = vmatprep.subr.mxu0 0.0
      %1716 = vmatpush1.msra.mxu0 0.0
      %1717 = vmatprep.subr.mxu0 0.0
      %1718 = vmatpush1.msra.mxu0 0.0
      %1719 = vmatprep.subr.mxu0 0.0
      %1720 = vmatpush1.msra.mxu0 0.0
      %1721 = vmatprep.subr.mxu0 0.0
      %1722 = vmatpush1.msra.mxu0 0.0
      %1723 = vmatprep.subr.mxu0 0.0
      %1724 = vmatpush1.msra.mxu0 0.0
      %1725 = vmatprep.subr.mxu0 0.0
      %1726 = vmatpush1.msra.mxu0 0.0
      %1727 = vmatprep.subr.mxu0 0.0
      %1728 = vmatpush1.msra.mxu0 0.0
      %1729 = vmatprep.subr.mxu0 0.0
      %1730 = vmatpush1.msra.mxu0 0.0
      %1731 = vmatprep.subr.mxu0 0.0
      %1732 = vmatpush1.msra.mxu0 0.0
      %1733 = vmatprep.subr.mxu0 0.0
      %1734 = vmatpush1.msra.mxu0 0.0
      %1735 = vmatprep.subr.mxu0 0.0
      %1736 = vmatpush1.msra.mxu0 0.0
      %1737 = vmatprep.subr.mxu0 0.0
      %1738 = vmatpush1.msra.mxu0 0.0
      %1739 = vmatprep.subr.mxu0 0.0
      %1740 = vmatpush1.msra.mxu0 0.0
      %1741 = vmatprep.subr.mxu0 0.0
      %1742 = vmatpush1.msra.mxu0 0.0
      %1743 = vmatprep.subr.mxu0 0.0
      %1744 = vmatpush1.msra.mxu0 0.0
      %1745 = vmatprep.subr.mxu0 0.0
      %1746 = vmatpush1.msra.mxu0 0.0
      %1747 = vmatprep.subr.mxu0 0.0
      %1748 = vmatpush1.msra.mxu0 0.0
      %1749 = vmatprep.subr.mxu0 0.0
      %1750 = vmatpush1.msra.mxu0 0.0
      %1751 = vmatprep.subr.mxu0 0.0
      %1752 = vmatpush1.msra.mxu0 0.0
      %1753 = vmatprep.subr.mxu0 0.0
      %1754 = vmatpush1.msra.mxu0 0.0
      %1755 = vmatprep.subr.mxu0 0.0
      %1756 = vmatpush1.msra.mxu0 0.0
      %1757 = vmatprep.subr.mxu0 0.0
      %1758 = vmatpush1.msra.mxu0 0.0
      %1759 = vmatprep.subr.mxu0 0.0
      %1760 = vmatpush1.msra.mxu0 0.0
      %1761 = vmatprep.subr.mxu0 0.0
      %1762 = vmatpush1.msra.mxu0 0.0
      %1763 = vmatprep.subr.mxu0 0.0
      %1764 = vmatpush1.msra.mxu0 0.0
      %1765 = vmatprep.subr.mxu0 0.0
      %1766 = vmatpush1.msra.mxu0 0.0
      %1767 = vmatprep.subr.mxu0 0.0
      %1768 = vmatpush1.msra.mxu0 0.0
      %1769 = vmatprep.mubr.f32.mxu0 0.0
      %1770 = vmatmul.mubr.f32.gmra.mrb[0].mxu0 %v1703
      %v1771 = vpop.f32.mrb[0].mxu0
      %v1772 = vadd.f32 0.0, %v1771
      %v1773 = vpop.f32.mrb[0].mxu0
      %1774 = vdwg.mxu0
      %1775 = vrot.lane.b32.xlu0 %v1180, 56
      %v1776 = vpop.permute.xlu0 %1775
      %v1779 = vsel %vm1187, %v1698, 0
      %1781 = vmatprep.subr.mxu0 0.0
      %1782 = vmatpush1.msra.mxu0 %v1776
      %1783 = vmatprep.subr.mxu0 0.0
      %1784 = vmatpush1.msra.mxu0 0.0
      %1785 = vmatprep.subr.mxu0 0.0
      %1786 = vmatpush1.msra.mxu0 0.0
      %1787 = vmatprep.subr.mxu0 0.0
      %1788 = vmatpush1.msra.mxu0 0.0
      %1789 = vmatprep.subr.mxu0 0.0
      %1790 = vmatpush1.msra.mxu0 0.0
      %1791 = vmatprep.subr.mxu0 0.0
      %1792 = vmatpush1.msra.mxu0 0.0
      %1793 = vmatprep.subr.mxu0 0.0
      %1794 = vmatpush1.msra.mxu0 0.0
      %1795 = vmatprep.subr.mxu0 0.0
      %1796 = vmatpush1.msra.mxu0 0.0
      %1797 = vmatprep.subr.mxu0 0.0
      %1798 = vmatpush1.msra.mxu0 0.0
      %1799 = vmatprep.subr.mxu0 0.0
      %1800 = vmatpush1.msra.mxu0 0.0
      %1801 = vmatprep.subr.mxu0 0.0
      %1802 = vmatpush1.msra.mxu0 0.0
      %1803 = vmatprep.subr.mxu0 0.0
      %1804 = vmatpush1.msra.mxu0 0.0
      %1805 = vmatprep.subr.mxu0 0.0
      %1806 = vmatpush1.msra.mxu0 0.0
      %1807 = vmatprep.subr.mxu0 0.0
      %1808 = vmatpush1.msra.mxu0 0.0
      %1809 = vmatprep.subr.mxu0 0.0
      %1810 = vmatpush1.msra.mxu0 0.0
      %1811 = vmatprep.subr.mxu0 0.0
      %1812 = vmatpush1.msra.mxu0 0.0
      %1813 = vmatprep.subr.mxu0 0.0
      %1814 = vmatpush1.msra.mxu0 0.0
      %1815 = vmatprep.subr.mxu0 0.0
      %1816 = vmatpush1.msra.mxu0 0.0
      %1817 = vmatprep.subr.mxu0 0.0
      %1818 = vmatpush1.msra.mxu0 0.0
      %1819 = vmatprep.subr.mxu0 0.0
      %1820 = vmatpush1.msra.mxu0 0.0
      %1821 = vmatprep.subr.mxu0 0.0
      %1822 = vmatpush1.msra.mxu0 0.0
      %1823 = vmatprep.subr.mxu0 0.0
      %1824 = vmatpush1.msra.mxu0 0.0
      %1825 = vmatprep.subr.mxu0 0.0
      %1826 = vmatpush1.msra.mxu0 0.0
      %1827 = vmatprep.subr.mxu0 0.0
      %1828 = vmatpush1.msra.mxu0 0.0
      %1829 = vmatprep.subr.mxu0 0.0
      %1830 = vmatpush1.msra.mxu0 0.0
      %1831 = vmatprep.subr.mxu0 0.0
      %1832 = vmatpush1.msra.mxu0 0.0
      %1833 = vmatprep.subr.mxu0 0.0
      %1834 = vmatpush1.msra.mxu0 0.0
      %1835 = vmatprep.subr.mxu0 0.0
      %1836 = vmatpush1.msra.mxu0 0.0
      %1837 = vmatprep.subr.mxu0 0.0
      %1838 = vmatpush1.msra.mxu0 0.0
      %1839 = vmatprep.subr.mxu0 0.0
      %1840 = vmatpush1.msra.mxu0 0.0
      %1841 = vmatprep.subr.mxu0 0.0
      %1842 = vmatpush1.msra.mxu0 0.0
      %1843 = vmatprep.subr.mxu0 0.0
      %1844 = vmatpush1.msra.mxu0 0.0
      %1845 = vmatprep.mubr.f32.mxu0 0.0
      %1846 = vmatmul.mubr.f32.gmra.mrb[0].mxu0 %v1779
      %v1847 = vpop.f32.mrb[0].mxu0
      %v1848 = vadd.f32 0.0, %v1847
      %v1849 = vpop.f32.mrb[0].mxu0
      %1850 = vdwg.mxu0
      %1851 = vrot.lane.b32.xlu0 %v1175, 112
      %v1852 = vpop.permute.xlu0 %1851
      %1853 = vrot.lane.b32.xlu0 %v1175, 80
      %v1854 = vpop.permute.xlu0 %1853
      %v1855 = vsel %vm1187, %v1852, 0
      %v1857 = vsel %vm1187, %v1854, 0
      %1859 = vmatprep.subr.mxu0 0.0
      %1860 = vmatpush1.xpose.msra.mxu0 %v1857
      %1861 = vmatprep.subr.mxu0 0.0
      %1862 = vmatpush1.xpose.msra.mxu0 0.0
      %1863 = vmatprep.subr.mxu0 0.0
      %1864 = vmatpush1.xpose.msra.mxu0 0.0
      %1865 = vmatprep.subr.mxu0 0.0
      %1866 = vmatpush1.xpose.msra.mxu0 0.0
      %1867 = vmatprep.subr.mxu0 0.0
      %1868 = vmatpush1.xpose.msra.mxu0 0.0
      %1869 = vmatprep.subr.mxu0 0.0
      %1870 = vmatpush1.xpose.msra.mxu0 0.0
      %1871 = vmatprep.subr.mxu0 0.0
      %1872 = vmatpush1.xpose.msra.mxu0 0.0
      %1873 = vmatprep.subr.mxu0 0.0
      %1874 = vmatpush1.xpose.msra.mxu0 0.0
      %1875 = vmatprep.subr.mxu0 0.0
      %1876 = vmatpush1.xpose.msra.mxu0 0.0
      %1877 = vmatprep.subr.mxu0 0.0
      %1878 = vmatpush1.xpose.msra.mxu0 0.0
      %1879 = vmatprep.subr.mxu0 0.0
      %1880 = vmatpush1.xpose.msra.mxu0 0.0
      %1881 = vmatprep.subr.mxu0 0.0
      %1882 = vmatpush1.xpose.msra.mxu0 0.0
      %1883 = vmatprep.subr.mxu0 0.0
      %1884 = vmatpush1.xpose.msra.mxu0 0.0
      %1885 = vmatprep.subr.mxu0 0.0
      %1886 = vmatpush1.xpose.msra.mxu0 0.0
      %1887 = vmatprep.subr.mxu0 0.0
      %1888 = vmatpush1.xpose.msra.mxu0 0.0
      %1889 = vmatprep.subr.mxu0 0.0
      %1890 = vmatpush1.xpose.msra.mxu0 0.0
      %1891 = vmatprep.subr.mxu0 0.0
      %1892 = vmatpush1.xpose.msra.mxu0 0.0
      %1893 = vmatprep.subr.mxu0 0.0
      %1894 = vmatpush1.xpose.msra.mxu0 0.0
      %1895 = vmatprep.subr.mxu0 0.0
      %1896 = vmatpush1.xpose.msra.mxu0 0.0
      %1897 = vmatprep.subr.mxu0 0.0
      %1898 = vmatpush1.xpose.msra.mxu0 0.0
      %1899 = vmatprep.subr.mxu0 0.0
      %1900 = vmatpush1.xpose.msra.mxu0 0.0
      %1901 = vmatprep.subr.mxu0 0.0
      %1902 = vmatpush1.xpose.msra.mxu0 0.0
      %1903 = vmatprep.subr.mxu0 0.0
      %1904 = vmatpush1.xpose.msra.mxu0 0.0
      %1905 = vmatprep.subr.mxu0 0.0
      %1906 = vmatpush1.xpose.msra.mxu0 0.0
      %1907 = vmatprep.subr.mxu0 0.0
      %1908 = vmatpush1.xpose.msra.mxu0 0.0
      %1909 = vmatprep.subr.mxu0 0.0
      %1910 = vmatpush1.xpose.msra.mxu0 0.0
      %1911 = vmatprep.subr.mxu0 0.0
      %1912 = vmatpush1.xpose.msra.mxu0 0.0
      %1913 = vmatprep.subr.mxu0 0.0
      %1914 = vmatpush1.xpose.msra.mxu0 0.0
      %1915 = vmatprep.subr.mxu0 0.0
      %1916 = vmatpush1.xpose.msra.mxu0 0.0
      %1917 = vmatprep.subr.mxu0 0.0
      %1918 = vmatpush1.xpose.msra.mxu0 0.0
      %1919 = vmatprep.subr.mxu0 0.0
      %1920 = vmatpush1.xpose.msra.mxu0 0.0
      %1921 = vmatprep.subr.mxu0 0.0
      %1922 = vmatpush1.xpose.msra.mxu0 0.0
      %1923 = vmatprep.mubr.f32.mxu0 0.0
      %1924 = vmatmul.mubr.f32.gmra.mrb[0].mxu0 %v1855
      %v1925 = vpop.f32.mrb[0].mxu0
      %v1926 = vadd.f32 0.0, %v1925
      %v1927 = vpop.f32.mrb[0].mxu0
      %1928 = vdwg.mxu0
      %1929 = vrot.lane.b32.xlu0 %v1180, 112
      %v1930 = vpop.permute.xlu0 %1929
      %1931 = vrot.lane.b32.xlu0 %v1180, 80
      %v1932 = vpop.permute.xlu0 %1931
      %v1933 = vsel %vm1187, %v1930, 0
      %v1935 = vsel %vm1187, %v1932, 0
      %1937 = vmatprep.subr.mxu0 0.0
      %1938 = vmatpush1.xpose.msra.mxu0 %v1935
      %1939 = vmatprep.subr.mxu0 0.0
      %1940 = vmatpush1.xpose.msra.mxu0 0.0
      %1941 = vmatprep.subr.mxu0 0.0
      %1942 = vmatpush1.xpose.msra.mxu0 0.0
      %1943 = vmatprep.subr.mxu0 0.0
      %1944 = vmatpush1.xpose.msra.mxu0 0.0
      %1945 = vmatprep.subr.mxu0 0.0
      %1946 = vmatpush1.xpose.msra.mxu0 0.0
      %1947 = vmatprep.subr.mxu0 0.0
      %1948 = vmatpush1.xpose.msra.mxu0 0.0
      %1949 = vmatprep.subr.mxu0 0.0
      %1950 = vmatpush1.xpose.msra.mxu0 0.0
      %1951 = vmatprep.subr.mxu0 0.0
      %1952 = vmatpush1.xpose.msra.mxu0 0.0
      %1953 = vmatprep.subr.mxu0 0.0
      %1954 = vmatpush1.xpose.msra.mxu0 0.0
      %1955 = vmatprep.subr.mxu0 0.0
      %1956 = vmatpush1.xpose.msra.mxu0 0.0
      %1957 = vmatprep.subr.mxu0 0.0
      %1958 = vmatpush1.xpose.msra.mxu0 0.0
      %1959 = vmatprep.subr.mxu0 0.0
      %1960 = vmatpush1.xpose.msra.mxu0 0.0
      %1961 = vmatprep.subr.mxu0 0.0
      %1962 = vmatpush1.xpose.msra.mxu0 0.0
      %1963 = vmatprep.subr.mxu0 0.0
      %1964 = vmatpush1.xpose.msra.mxu0 0.0
      %1965 = vmatprep.subr.mxu0 0.0
      %1966 = vmatpush1.xpose.msra.mxu0 0.0
      %1967 = vmatprep.subr.mxu0 0.0
      %1968 = vmatpush1.xpose.msra.mxu0 0.0
      %1969 = vmatprep.subr.mxu0 0.0
      %1970 = vmatpush1.xpose.msra.mxu0 0.0
      %1971 = vmatprep.subr.mxu0 0.0
      %1972 = vmatpush1.xpose.msra.mxu0 0.0
      %1973 = vmatprep.subr.mxu0 0.0
      %1974 = vmatpush1.xpose.msra.mxu0 0.0
      %1975 = vmatprep.subr.mxu0 0.0
      %1976 = vmatpush1.xpose.msra.mxu0 0.0
      %1977 = vmatprep.subr.mxu0 0.0
      %1978 = vmatpush1.xpose.msra.mxu0 0.0
      %1979 = vmatprep.subr.mxu0 0.0
      %1980 = vmatpush1.xpose.msra.mxu0 0.0
      %1981 = vmatprep.subr.mxu0 0.0
      %1982 = vmatpush1.xpose.msra.mxu0 0.0
      %1983 = vmatprep.subr.mxu0 0.0
      %1984 = vmatpush1.xpose.msra.mxu0 0.0
      %1985 = vmatprep.subr.mxu0 0.0
      %1986 = vmatpush1.xpose.msra.mxu0 0.0
      %1987 = vmatprep.subr.mxu0 0.0
      %1988 = vmatpush1.xpose.msra.mxu0 0.0
      %1989 = vmatprep.subr.mxu0 0.0
      %1990 = vmatpush1.xpose.msra.mxu0 0.0
      %1991 = vmatprep.subr.mxu0 0.0
      %1992 = vmatpush1.xpose.msra.mxu0 0.0
      %1993 = vmatprep.subr.mxu0 0.0
      %1994 = vmatpush1.xpose.msra.mxu0 0.0
      %1995 = vmatprep.subr.mxu0 0.0
      %1996 = vmatpush1.xpose.msra.mxu0 0.0
      %1997 = vmatprep.subr.mxu0 0.0
      %1998 = vmatpush1.xpose.msra.mxu0 0.0
      %1999 = vmatprep.subr.mxu0 0.0
      %2000 = vmatpush1.xpose.msra.mxu0 0.0
      %2001 = vmatprep.mubr.f32.mxu0 0.0
      %2002 = vmatmul.mubr.f32.gmra.mrb[0].mxu0 %v1933
      %v2003 = vpop.f32.mrb[0].mxu0
      %v2004 = vadd.f32 0.0, %v2003
      %v2005 = vpop.f32.mrb[0].mxu0
      %2006 = vdwg.mxu0
      %v2007 = vmul.f32 %v1926, 0.35355338
      %v2008 = vmul.f32 %v2004, 0.35355338
      %v2009 = vadd.f32 %v2007, %v1183
      %v2010 = vadd.f32 %v2008, %v1183
      %v2011 = vsel %vm1187, %v2009, -inf
      %2012 = vmax.xlane.f32.xlu0 %v2011
      %v2013 = vpop.xlane.xlu0 %2012
      %v2014 = vsel %vm1187, %v2010, -inf
      %2015 = vmax.xlane.f32.xlu0 %v2014
      %v2016 = vpop.xlane.xlu0 %2015
      %v2017 = vsub.f32 %v2009, %v2013
      %v2018 = vsub.f32 %v2010, %v2016
      %v2019 = vmul.f32 %v2017, 1.442695
      %v2020 = vpow.pop %v2019
      %v2021 = vmul.f32 %v2018, 1.442695
      %v2022 = vpow.pop %v2021
      %v2023 = vsel %vm1187, %v2020, 0.0
      %2024 = vadd.xlane.f32.xlu0 %v2023
      %v2025 = vpop.xlane.xlu0 %2024
      %v2026 = vsel %vm1187, %v2022, 0.0
      %2027 = vadd.xlane.f32.xlu0 %v2026
      %v2028 = vpop.xlane.xlu0 %2027
      %v2029 = vrcp.pop %v2025
      %v2030 = vrcp.pop %v2028
      %v2031 = vmul.f32 %v2020, %v2029
      %v2032 = vmul.f32 %v2022, %v2030
      %2033 = vrot.lane.b32.xlu0 %v1175, 48
      %v2034 = vpop.permute.xlu0 %2033
      %v2037 = vsel %vm1187, %v2031, 0
      %2039 = vmatprep.subr.mxu0 0.0
      %2040 = vmatpush1.msra.mxu0 %v2034
      %2041 = vmatprep.subr.mxu0 0.0
      %2042 = vmatpush1.msra.mxu0 0.0
      %2043 = vmatprep.subr.mxu0 0.0
      %2044 = vmatpush1.msra.mxu0 0.0
      %2045 = vmatprep.subr.mxu0 0.0
      %2046 = vmatpush1.msra.mxu0 0.0
      %2047 = vmatprep.subr.mxu0 0.0
      %2048 = vmatpush1.msra.mxu0 0.0
      %2049 = vmatprep.subr.mxu0 0.0
      %2050 = vmatpush1.msra.mxu0 0.0
      %2051 = vmatprep.subr.mxu0 0.0
      %2052 = vmatpush1.msra.mxu0 0.0
      %2053 = vmatprep.subr.mxu0 0.0
      %2054 = vmatpush1.msra.mxu0 0.0
      %2055 = vmatprep.subr.mxu0 0.0
      %2056 = vmatpush1.msra.mxu0 0.0
      %2057 = vmatprep.subr.mxu0 0.0
      %2058 = vmatpush1.msra.mxu0 0.0
      %2059 = vmatprep.subr.mxu0 0.0
      %2060 = vmatpush1.msra.mxu0 0.0
      %2061 = vmatprep.subr.mxu0 0.0
      %2062 = vmatpush1.msra.mxu0 0.0
      %2063 = vmatprep.subr.mxu0 0.0
      %2064 = vmatpush1.msra.mxu0 0.0
      %2065 = vmatprep.subr.mxu0 0.0
      %2066 = vmatpush1.msra.mxu0 0.0
      %2067 = vmatprep.subr.mxu0 0.0
      %2068 = vmatpush1.msra.mxu0 0.0
      %2069 = vmatprep.subr.mxu0 0.0
      %2070 = vmatpush1.msra.mxu0 0.0
      %2071 = vmatprep.subr.mxu0 0.0
      %2072 = vmatpush1.msra.mxu0 0.0
      %2073 = vmatprep.subr.mxu0 0.0
      %2074 = vmatpush1.msra.mxu0 0.0
      %2075 = vmatprep.subr.mxu0 0.0
      %2076 = vmatpush1.msra.mxu0 0.0
      %2077 = vmatprep.subr.mxu0 0.0
      %2078 = vmatpush1.msra.mxu0 0.0
      %2079 = vmatprep.subr.mxu0 0.0
      %2080 = vmatpush1.msra.mxu0 0.0
      %2081 = vmatprep.subr.mxu0 0.0
      %2082 = vmatpush1.msra.mxu0 0.0
      %2083 = vmatprep.subr.mxu0 0.0
      %2084 = vmatpush1.msra.mxu0 0.0
      %2085 = vmatprep.subr.mxu0 0.0
      %2086 = vmatpush1.msra.mxu0 0.0
      %2087 = vmatprep.subr.mxu0 0.0
      %2088 = vmatpush1.msra.mxu0 0.0
      %2089 = vmatprep.subr.mxu0 0.0
      %2090 = vmatpush1.msra.mxu0 0.0
      %2091 = vmatprep.subr.mxu0 0.0
      %2092 = vmatpush1.msra.mxu0 0.0
      %2093 = vmatprep.subr.mxu0 0.0
      %2094 = vmatpush1.msra.mxu0 0.0
      %2095 = vmatprep.subr.mxu0 0.0
      %2096 = vmatpush1.msra.mxu0 0.0
      %2097 = vmatprep.subr.mxu0 0.0
      %2098 = vmatpush1.msra.mxu0 0.0
      %2099 = vmatprep.subr.mxu0 0.0
      %2100 = vmatpush1.msra.mxu0 0.0
      %2101 = vmatprep.subr.mxu0 0.0
      %2102 = vmatpush1.msra.mxu0 0.0
      %2103 = vmatprep.mubr.f32.mxu0 0.0
      %2104 = vmatmul.mubr.f32.gmra.mrb[0].mxu0 %v2037
      %v2105 = vpop.f32.mrb[0].mxu0
      %v2106 = vadd.f32 0.0, %v2105
      %v2107 = vpop.f32.mrb[0].mxu0
      %2108 = vdwg.mxu0
      %2109 = vrot.lane.b32.xlu0 %v1180, 48
      %v2110 = vpop.permute.xlu0 %2109
      %v2113 = vsel %vm1187, %v2032, 0
      %2115 = vmatprep.subr.mxu0 0.0
      %2116 = vmatpush1.msra.mxu0 %v2110
      %2117 = vmatprep.subr.mxu0 0.0
      %2118 = vmatpush1.msra.mxu0 0.0
      %2119 = vmatprep.subr.mxu0 0.0
      %2120 = vmatpush1.msra.mxu0 0.0
      %2121 = vmatprep.subr.mxu0 0.0
      %2122 = vmatpush1.msra.mxu0 0.0
      %2123 = vmatprep.subr.mxu0 0.0
      %2124 = vmatpush1.msra.mxu0 0.0
      %2125 = vmatprep.subr.mxu0 0.0
      %2126 = vmatpush1.msra.mxu0 0.0
      %2127 = vmatprep.subr.mxu0 0.0
      %2128 = vmatpush1.msra.mxu0 0.0
      %2129 = vmatprep.subr.mxu0 0.0
      %2130 = vmatpush1.msra.mxu0 0.0
      %2131 = vmatprep.subr.mxu0 0.0
      %2132 = vmatpush1.msra.mxu0 0.0
      %2133 = vmatprep.subr.mxu0 0.0
      %2134 = vmatpush1.msra.mxu0 0.0
      %2135 = vmatprep.subr.mxu0 0.0
      %2136 = vmatpush1.msra.mxu0 0.0
      %2137 = vmatprep.subr.mxu0 0.0
      %2138 = vmatpush1.msra.mxu0 0.0
      %2139 = vmatprep.subr.mxu0 0.0
      %2140 = vmatpush1.msra.mxu0 0.0
      %2141 = vmatprep.subr.mxu0 0.0
      %2142 = vmatpush1.msra.mxu0 0.0
      %2143 = vmatprep.subr.mxu0 0.0
      %2144 = vmatpush1.msra.mxu0 0.0
      %2145 = vmatprep.subr.mxu0 0.0
      %2146 = vmatpush1.msra.mxu0 0.0
      %2147 = vmatprep.subr.mxu0 0.0
      %2148 = vmatpush1.msra.mxu0 0.0
      %2149 = vmatprep.subr.mxu0 0.0
      %2150 = vmatpush1.msra.mxu0 0.0
      %2151 = vmatprep.subr.mxu0 0.0
      %2152 = vmatpush1.msra.mxu0 0.0
      %2153 = vmatprep.subr.mxu0 0.0
      %2154 = vmatpush1.msra.mxu0 0.0
      %2155 = vmatprep.subr.mxu0 0.0
      %2156 = vmatpush1.msra.mxu0 0.0
      %2157 = vmatprep.subr.mxu0 0.0
      %2158 = vmatpush1.msra.mxu0 0.0
      %2159 = vmatprep.subr.mxu0 0.0
      %2160 = vmatpush1.msra.mxu0 0.0
      %2161 = vmatprep.subr.mxu0 0.0
      %2162 = vmatpush1.msra.mxu0 0.0
      %2163 = vmatprep.subr.mxu0 0.0
      %2164 = vmatpush1.msra.mxu0 0.0
      %2165 = vmatprep.subr.mxu0 0.0
      %2166 = vmatpush1.msra.mxu0 0.0
      %2167 = vmatprep.subr.mxu0 0.0
      %2168 = vmatpush1.msra.mxu0 0.0
      %2169 = vmatprep.subr.mxu0 0.0
      %2170 = vmatpush1.msra.mxu0 0.0
      %2171 = vmatprep.subr.mxu0 0.0
      %2172 = vmatpush1.msra.mxu0 0.0
      %2173 = vmatprep.subr.mxu0 0.0
      %2174 = vmatpush1.msra.mxu0 0.0
      %2175 = vmatprep.subr.mxu0 0.0
      %2176 = vmatpush1.msra.mxu0 0.0
      %2177 = vmatprep.subr.mxu0 0.0
      %2178 = vmatpush1.msra.mxu0 0.0
      %2179 = vmatprep.mubr.f32.mxu0 0.0
      %2180 = vmatmul.mubr.f32.gmra.mrb[0].mxu0 %v2113
      %v2181 = vpop.f32.mrb[0].mxu0
      %v2182 = vadd.f32 0.0, %v2181
      %v2183 = vpop.f32.mrb[0].mxu0
      %2184 = vdwg.mxu0
      %2185 = vrot.lane.b32.xlu0 %v1175, 104
      %v2186 = vpop.permute.xlu0 %2185
      %2187 = vrot.lane.b32.xlu0 %v1175, 72
      %v2188 = vpop.permute.xlu0 %2187
      %v2189 = vsel %vm1187, %v2186, 0
      %v2191 = vsel %vm1187, %v2188, 0
      %2193 = vmatprep.subr.mxu0 0.0
      %2194 = vmatpush1.xpose.msra.mxu0 %v2191
      %2195 = vmatprep.subr.mxu0 0.0
      %2196 = vmatpush1.xpose.msra.mxu0 0.0
      %2197 = vmatprep.subr.mxu0 0.0
      %2198 = vmatpush1.xpose.msra.mxu0 0.0
      %2199 = vmatprep.subr.mxu0 0.0
      %2200 = vmatpush1.xpose.msra.mxu0 0.0
      %2201 = vmatprep.subr.mxu0 0.0
      %2202 = vmatpush1.xpose.msra.mxu0 0.0
      %2203 = vmatprep.subr.mxu0 0.0
      %2204 = vmatpush1.xpose.msra.mxu0 0.0
      %2205 = vmatprep.subr.mxu0 0.0
      %2206 = vmatpush1.xpose.msra.mxu0 0.0
      %2207 = vmatprep.subr.mxu0 0.0
      %2208 = vmatpush1.xpose.msra.mxu0 0.0
      %2209 = vmatprep.subr.mxu0 0.0
      %2210 = vmatpush1.xpose.msra.mxu0 0.0
      %2211 = vmatprep.subr.mxu0 0.0
      %2212 = vmatpush1.xpose.msra.mxu0 0.0
      %2213 = vmatprep.subr.mxu0 0.0
      %2214 = vmatpush1.xpose.msra.mxu0 0.0
      %2215 = vmatprep.subr.mxu0 0.0
      %2216 = vmatpush1.xpose.msra.mxu0 0.0
      %2217 = vmatprep.subr.mxu0 0.0
      %2218 = vmatpush1.xpose.msra.mxu0 0.0
      %2219 = vmatprep.subr.mxu0 0.0
      %2220 = vmatpush1.xpose.msra.mxu0 0.0
      %2221 = vmatprep.subr.mxu0 0.0
      %2222 = vmatpush1.xpose.msra.mxu0 0.0
      %2223 = vmatprep.subr.mxu0 0.0
      %2224 = vmatpush1.xpose.msra.mxu0 0.0
      %2225 = vmatprep.subr.mxu0 0.0
      %2226 = vmatpush1.xpose.msra.mxu0 0.0
      %2227 = vmatprep.subr.mxu0 0.0
      %2228 = vmatpush1.xpose.msra.mxu0 0.0
      %2229 = vmatprep.subr.mxu0 0.0
      %2230 = vmatpush1.xpose.msra.mxu0 0.0
      %2231 = vmatprep.subr.mxu0 0.0
      %2232 = vmatpush1.xpose.msra.mxu0 0.0
      %2233 = vmatprep.subr.mxu0 0.0
      %2234 = vmatpush1.xpose.msra.mxu0 0.0
      %2235 = vmatprep.subr.mxu0 0.0
      %2236 = vmatpush1.xpose.msra.mxu0 0.0
      %2237 = vmatprep.subr.mxu0 0.0
      %2238 = vmatpush1.xpose.msra.mxu0 0.0
      %2239 = vmatprep.subr.mxu0 0.0
      %2240 = vmatpush1.xpose.msra.mxu0 0.0
      %2241 = vmatprep.subr.mxu0 0.0
      %2242 = vmatpush1.xpose.msra.mxu0 0.0
      %2243 = vmatprep.subr.mxu0 0.0
      %2244 = vmatpush1.xpose.msra.mxu0 0.0
      %2245 = vmatprep.subr.mxu0 0.0
      %2246 = vmatpush1.xpose.msra.mxu0 0.0
      %2247 = vmatprep.subr.mxu0 0.0
      %2248 = vmatpush1.xpose.msra.mxu0 0.0
      %2249 = vmatprep.subr.mxu0 0.0
      %2250 = vmatpush1.xpose.msra.mxu0 0.0
      %2251 = vmatprep.subr.mxu0 0.0
      %2252 = vmatpush1.xpose.msra.mxu0 0.0
      %2253 = vmatprep.subr.mxu0 0.0
      %2254 = vmatpush1.xpose.msra.mxu0 0.0
      %2255 = vmatprep.subr.mxu0 0.0
      %2256 = vmatpush1.xpose.msra.mxu0 0.0
      %2257 = vmatprep.mubr.f32.mxu0 0.0
      %2258 = vmatmul.mubr.f32.gmra.mrb[0].mxu0 %v2189
      %v2259 = vpop.f32.mrb[0].mxu0
      %v2260 = vadd.f32 0.0, %v2259
      %v2261 = vpop.f32.mrb[0].mxu0
      %2262 = vdwg.mxu0
      %2263 = vrot.lane.b32.xlu0 %v1180, 104
      %v2264 = vpop.permute.xlu0 %2263
      %2265 = vrot.lane.b32.xlu0 %v1180, 72
      %v2266 = vpop.permute.xlu0 %2265
      %v2267 = vsel %vm1187, %v2264, 0
      %v2269 = vsel %vm1187, %v2266, 0
      %2271 = vmatprep.subr.mxu0 0.0
      %2272 = vmatpush1.xpose.msra.mxu0 %v2269
      %2273 = vmatprep.subr.mxu0 0.0
      %2274 = vmatpush1.xpose.msra.mxu0 0.0
      %2275 = vmatprep.subr.mxu0 0.0
      %2276 = vmatpush1.xpose.msra.mxu0 0.0
      %2277 = vmatprep.subr.mxu0 0.0
      %2278 = vmatpush1.xpose.msra.mxu0 0.0
      %2279 = vmatprep.subr.mxu0 0.0
      %2280 = vmatpush1.xpose.msra.mxu0 0.0
      %2281 = vmatprep.subr.mxu0 0.0
      %2282 = vmatpush1.xpose.msra.mxu0 0.0
      %2283 = vmatprep.subr.mxu0 0.0
      %2284 = vmatpush1.xpose.msra.mxu0 0.0
      %2285 = vmatprep.subr.mxu0 0.0
      %2286 = vmatpush1.xpose.msra.mxu0 0.0
      %2287 = vmatprep.subr.mxu0 0.0
      %2288 = vmatpush1.xpose.msra.mxu0 0.0
      %2289 = vmatprep.subr.mxu0 0.0
      %2290 = vmatpush1.xpose.msra.mxu0 0.0
      %2291 = vmatprep.subr.mxu0 0.0
      %2292 = vmatpush1.xpose.msra.mxu0 0.0
      %2293 = vmatprep.subr.mxu0 0.0
      %2294 = vmatpush1.xpose.msra.mxu0 0.0
      %2295 = vmatprep.subr.mxu0 0.0
      %2296 = vmatpush1.xpose.msra.mxu0 0.0
      %2297 = vmatprep.subr.mxu0 0.0
      %2298 = vmatpush1.xpose.msra.mxu0 0.0
      %2299 = vmatprep.subr.mxu0 0.0
      %2300 = vmatpush1.xpose.msra.mxu0 0.0
      %2301 = vmatprep.subr.mxu0 0.0
      %2302 = vmatpush1.xpose.msra.mxu0 0.0
      %2303 = vmatprep.subr.mxu0 0.0
      %2304 = vmatpush1.xpose.msra.mxu0 0.0
      %2305 = vmatprep.subr.mxu0 0.0
      %2306 = vmatpush1.xpose.msra.mxu0 0.0
      %2307 = vmatprep.subr.mxu0 0.0
      %2308 = vmatpush1.xpose.msra.mxu0 0.0
      %2309 = vmatprep.subr.mxu0 0.0
      %2310 = vmatpush1.xpose.msra.mxu0 0.0
      %2311 = vmatprep.subr.mxu0 0.0
      %2312 = vmatpush1.xpose.msra.mxu0 0.0
      %2313 = vmatprep.subr.mxu0 0.0
      %2314 = vmatpush1.xpose.msra.mxu0 0.0
      %2315 = vmatprep.subr.mxu0 0.0
      %2316 = vmatpush1.xpose.msra.mxu0 0.0
      %2317 = vmatprep.subr.mxu0 0.0
      %2318 = vmatpush1.xpose.msra.mxu0 0.0
      %2319 = vmatprep.subr.mxu0 0.0
      %2320 = vmatpush1.xpose.msra.mxu0 0.0
      %2321 = vmatprep.subr.mxu0 0.0
      %2322 = vmatpush1.xpose.msra.mxu0 0.0
      %2323 = vmatprep.subr.mxu0 0.0
      %2324 = vmatpush1.xpose.msra.mxu0 0.0
      %2325 = vmatprep.subr.mxu0 0.0
      %2326 = vmatpush1.xpose.msra.mxu0 0.0
      %2327 = vmatprep.subr.mxu0 0.0
      %2328 = vmatpush1.xpose.msra.mxu0 0.0
      %2329 = vmatprep.subr.mxu0 0.0
      %2330 = vmatpush1.xpose.msra.mxu0 0.0
      %2331 = vmatprep.subr.mxu0 0.0
      %2332 = vmatpush1.xpose.msra.mxu0 0.0
      %2333 = vmatprep.subr.mxu0 0.0
      %2334 = vmatpush1.xpose.msra.mxu0 0.0
      %2335 = vmatprep.mubr.f32.mxu0 0.0
      %2336 = vmatmul.mubr.f32.gmra.mrb[0].mxu0 %v2267
      %v2337 = vpop.f32.mrb[0].mxu0
      %v2338 = vadd.f32 0.0, %v2337
      %v2339 = vpop.f32.mrb[0].mxu0
      %2340 = vdwg.mxu0
      %v2341 = vmul.f32 %v2260, 0.35355338
      %v2342 = vmul.f32 %v2338, 0.35355338
      %v2343 = vadd.f32 %v2341, %v1183
      %v2344 = vadd.f32 %v2342, %v1183
      %v2345 = vsel %vm1187, %v2343, -inf
      %2346 = vmax.xlane.f32.xlu0 %v2345
      %v2347 = vpop.xlane.xlu0 %2346
      %v2348 = vsel %vm1187, %v2344, -inf
      %2349 = vmax.xlane.f32.xlu0 %v2348
      %v2350 = vpop.xlane.xlu0 %2349
      %v2351 = vsub.f32 %v2343, %v2347
      %v2352 = vsub.f32 %v2344, %v2350
      %v2353 = vmul.f32 %v2351, 1.442695
      %v2354 = vpow.pop %v2353
      %v2355 = vmul.f32 %v2352, 1.442695
      %v2356 = vpow.pop %v2355
      %v2357 = vsel %vm1187, %v2354, 0.0
      %2358 = vadd.xlane.f32.xlu0 %v2357
      %v2359 = vpop.xlane.xlu0 %2358
      %v2360 = vsel %vm1187, %v2356, 0.0
      %2361 = vadd.xlane.f32.xlu0 %v2360
      %v2362 = vpop.xlane.xlu0 %2361
      %v2363 = vrcp.pop %v2359
      %v2364 = vrcp.pop %v2362
      %v2365 = vmul.f32 %v2354, %v2363
      %v2366 = vmul.f32 %v2356, %v2364
      %2367 = vrot.lane.b32.xlu0 %v1175, 40
      %v2368 = vpop.permute.xlu0 %2367
      %v2371 = vsel %vm1187, %v2365, 0
      %2373 = vmatprep.subr.mxu0 0.0
      %2374 = vmatpush1.msra.mxu0 %v2368
      %2375 = vmatprep.subr.mxu0 0.0
      %2376 = vmatpush1.msra.mxu0 0.0
      %2377 = vmatprep.subr.mxu0 0.0
      %2378 = vmatpush1.msra.mxu0 0.0
      %2379 = vmatprep.subr.mxu0 0.0
      %2380 = vmatpush1.msra.mxu0 0.0
      %2381 = vmatprep.subr.mxu0 0.0
      %2382 = vmatpush1.msra.mxu0 0.0
      %2383 = vmatprep.subr.mxu0 0.0
      %2384 = vmatpush1.msra.mxu0 0.0
      %2385 = vmatprep.subr.mxu0 0.0
      %2386 = vmatpush1.msra.mxu0 0.0
      %2387 = vmatprep.subr.mxu0 0.0
      %2388 = vmatpush1.msra.mxu0 0.0
      %2389 = vmatprep.subr.mxu0 0.0
      %2390 = vmatpush1.msra.mxu0 0.0
      %2391 = vmatprep.subr.mxu0 0.0
      %2392 = vmatpush1.msra.mxu0 0.0
      %2393 = vmatprep.subr.mxu0 0.0
      %2394 = vmatpush1.msra.mxu0 0.0
      %2395 = vmatprep.subr.mxu0 0.0
      %2396 = vmatpush1.msra.mxu0 0.0
      %2397 = vmatprep.subr.mxu0 0.0
      %2398 = vmatpush1.msra.mxu0 0.0
      %2399 = vmatprep.subr.mxu0 0.0
      %2400 = vmatpush1.msra.mxu0 0.0
      %2401 = vmatprep.subr.mxu0 0.0
      %2402 = vmatpush1.msra.mxu0 0.0
      %2403 = vmatprep.subr.mxu0 0.0
      %2404 = vmatpush1.msra.mxu0 0.0
      %2405 = vmatprep.subr.mxu0 0.0
      %2406 = vmatpush1.msra.mxu0 0.0
      %2407 = vmatprep.subr.mxu0 0.0
      %2408 = vmatpush1.msra.mxu0 0.0
      %2409 = vmatprep.subr.mxu0 0.0
      %2410 = vmatpush1.msra.mxu0 0.0
      %2411 = vmatprep.subr.mxu0 0.0
      %2412 = vmatpush1.msra.mxu0 0.0
      %2413 = vmatprep.subr.mxu0 0.0
      %2414 = vmatpush1.msra.mxu0 0.0
      %2415 = vmatprep.subr.mxu0 0.0
      %2416 = vmatpush1.msra.mxu0 0.0
      %2417 = vmatprep.subr.mxu0 0.0
      %2418 = vmatpush1.msra.mxu0 0.0
      %2419 = vmatprep.subr.mxu0 0.0
      %2420 = vmatpush1.msra.mxu0 0.0
      %2421 = vmatprep.subr.mxu0 0.0
      %2422 = vmatpush1.msra.mxu0 0.0
      %2423 = vmatprep.subr.mxu0 0.0
      %2424 = vmatpush1.msra.mxu0 0.0
      %2425 = vmatprep.subr.mxu0 0.0
      %2426 = vmatpush1.msra.mxu0 0.0
      %2427 = vmatprep.subr.mxu0 0.0
      %2428 = vmatpush1.msra.mxu0 0.0
      %2429 = vmatprep.subr.mxu0 0.0
      %2430 = vmatpush1.msra.mxu0 0.0
      %2431 = vmatprep.subr.mxu0 0.0
      %2432 = vmatpush1.msra.mxu0 0.0
      %2433 = vmatprep.subr.mxu0 0.0
      %2434 = vmatpush1.msra.mxu0 0.0
      %2435 = vmatprep.subr.mxu0 0.0
      %2436 = vmatpush1.msra.mxu0 0.0
      %2437 = vmatprep.mubr.f32.mxu0 0.0
      %2438 = vmatmul.mubr.f32.gmra.mrb[0].mxu0 %v2371
      %v2439 = vpop.f32.mrb[0].mxu0
      %v2440 = vadd.f32 0.0, %v2439
      %v2441 = vpop.f32.mrb[0].mxu0
      %2442 = vdwg.mxu0
      %2443 = vrot.lane.b32.xlu0 %v1180, 40
      %v2444 = vpop.permute.xlu0 %2443
      %v2447 = vsel %vm1187, %v2366, 0
      %2449 = vmatprep.subr.mxu0 0.0
      %2450 = vmatpush1.msra.mxu0 %v2444
      %2451 = vmatprep.subr.mxu0 0.0
      %2452 = vmatpush1.msra.mxu0 0.0
      %2453 = vmatprep.subr.mxu0 0.0
      %2454 = vmatpush1.msra.mxu0 0.0
      %2455 = vmatprep.subr.mxu0 0.0
      %2456 = vmatpush1.msra.mxu0 0.0
      %2457 = vmatprep.subr.mxu0 0.0
      %2458 = vmatpush1.msra.mxu0 0.0
      %2459 = vmatprep.subr.mxu0 0.0
      %2460 = vmatpush1.msra.mxu0 0.0
      %2461 = vmatprep.subr.mxu0 0.0
      %2462 = vmatpush1.msra.mxu0 0.0
      %2463 = vmatprep.subr.mxu0 0.0
      %2464 = vmatpush1.msra.mxu0 0.0
      %2465 = vmatprep.subr.mxu0 0.0
      %2466 = vmatpush1.msra.mxu0 0.0
      %2467 = vmatprep.subr.mxu0 0.0
      %2468 = vmatpush1.msra.mxu0 0.0
      %2469 = vmatprep.subr.mxu0 0.0
      %2470 = vmatpush1.msra.mxu0 0.0
      %2471 = vmatprep.subr.mxu0 0.0
      %2472 = vmatpush1.msra.mxu0 0.0
      %2473 = vmatprep.subr.mxu0 0.0
      %2474 = vmatpush1.msra.mxu0 0.0
      %2475 = vmatprep.subr.mxu0 0.0
      %2476 = vmatpush1.msra.mxu0 0.0
      %2477 = vmatprep.subr.mxu0 0.0
      %2478 = vmatpush1.msra.mxu0 0.0
      %2479 = vmatprep.subr.mxu0 0.0
      %2480 = vmatpush1.msra.mxu0 0.0
      %2481 = vmatprep.subr.mxu0 0.0
      %2482 = vmatpush1.msra.mxu0 0.0
      %2483 = vmatprep.subr.mxu0 0.0
      %2484 = vmatpush1.msra.mxu0 0.0
      %2485 = vmatprep.subr.mxu0 0.0
      %2486 = vmatpush1.msra.mxu0 0.0
      %2487 = vmatprep.subr.mxu0 0.0
      %2488 = vmatpush1.msra.mxu0 0.0
      %2489 = vmatprep.subr.mxu0 0.0
      %2490 = vmatpush1.msra.mxu0 0.0
      %2491 = vmatprep.subr.mxu0 0.0
      %2492 = vmatpush1.msra.mxu0 0.0
      %2493 = vmatprep.subr.mxu0 0.0
      %2494 = vmatpush1.msra.mxu0 0.0
      %2495 = vmatprep.subr.mxu0 0.0
      %2496 = vmatpush1.msra.mxu0 0.0
      %2497 = vmatprep.subr.mxu0 0.0
      %2498 = vmatpush1.msra.mxu0 0.0
      %2499 = vmatprep.subr.mxu0 0.0
      %2500 = vmatpush1.msra.mxu0 0.0
      %2501 = vmatprep.subr.mxu0 0.0
      %2502 = vmatpush1.msra.mxu0 0.0
      %2503 = vmatprep.subr.mxu0 0.0
      %2504 = vmatpush1.msra.mxu0 0.0
      %2505 = vmatprep.subr.mxu0 0.0
      %2506 = vmatpush1.msra.mxu0 0.0
      %2507 = vmatprep.subr.mxu0 0.0
      %2508 = vmatpush1.msra.mxu0 0.0
      %2509 = vmatprep.subr.mxu0 0.0
      %2510 = vmatpush1.msra.mxu0 0.0
      %2511 = vmatprep.subr.mxu0 0.0
      %2512 = vmatpush1.msra.mxu0 0.0
      %2513 = vmatprep.mubr.f32.mxu0 0.0
      %2514 = vmatmul.mubr.f32.gmra.mrb[0].mxu0 %v2447
      %v2515 = vpop.f32.mrb[0].mxu0
      %v2516 = vadd.f32 0.0, %v2515
      %v2517 = vpop.f32.mrb[0].mxu0
      %2518 = vdwg.mxu0
      %2521 = vrot.lane.b32.xlu0 %v1772, 8
      %v2522 = vpop.permute.xlu0 %2521
      %2523 = vrot.lane.b32.xlu0 %v1848, 8
      %v2524 = vpop.permute.xlu0 %2523
      %2529 = vrot.lane.b32.xlu0 %v2106, 16
      %v2530 = vpop.permute.xlu0 %2529
      %2531 = vrot.lane.b32.xlu0 %v2182, 16
      %v2532 = vpop.permute.xlu0 %2531
      %2537 = vrot.lane.b32.xlu0 %v2440, 24
      %v2538 = vpop.permute.xlu0 %2537
      %2539 = vrot.lane.b32.xlu0 %v2516, 24
      %v2540 = vpop.permute.xlu0 %2539
      %v2543 = vsel %vm1187, %v1438, %v2522
      %v2544 = vsel %vm1187, %v1514, %v2524
      %vm2545 = vcmask 130048
      %v2546 = vsel %vm2545, %v2543, %v2530
      %v2547 = vsel %vm2545, %v2544, %v2532
      %vm2548 = vcmask 195584
      %v2549 = vsel %vm2548, %v2546, %v2538
      %v2550 = vsel %vm2548, %v2547, %v2540
      %v2551 = vld [vmem:[%s1017] sm:$0xff]
      %v2552 = vld [vmem:[%s1017 + $0x8] sm:$0xff]
      %v2553 = vld [vmem:[%s1017 + $0x10] sm:$0xff]
      %v2554 = vld [vmem:[%s1017 + $0x18] sm:$0xff]
      %v2555 = vld [vmem:[%s1020] sm:$0x1]
      %v2557 = vlaneseq
      %v2558 = vshrl.u32 %v2557, 7
      %v2559 = vsub.s32 0, %v2558
      %v2560 = vrot.slane %v2555, %v2559
      %v2563 = vsel %vm1101, %v2549, 0
      %v2566 = vsel %vm1101, %v2550, 0
      %2568 = vmatprep.subr.mxu0 0.0
      %2569 = vmatpush1.msra.mxu0 %v2551
      %2570 = vmatprep.subr.mxu0 0.0
      %2571 = vmatpush1.msra.mxu0 %v2552
      %2572 = vmatprep.subr.mxu0 0.0
      %2573 = vmatpush1.msra.mxu0 %v2553
      %2574 = vmatprep.subr.mxu0 0.0
      %2575 = vmatpush1.msra.mxu0 %v2554
      %2576 = vmatprep.subr.mxu0 0.0
      %2577 = vmatpush1.msra.mxu0 0.0
      %2578 = vmatprep.subr.mxu0 0.0
      %2579 = vmatpush1.msra.mxu0 0.0
      %2580 = vmatprep.subr.mxu0 0.0
      %2581 = vmatpush1.msra.mxu0 0.0
      %2582 = vmatprep.subr.mxu0 0.0
      %2583 = vmatpush1.msra.mxu0 0.0
      %2584 = vmatprep.subr.mxu0 0.0
      %2585 = vmatpush1.msra.mxu0 0.0
      %2586 = vmatprep.subr.mxu0 0.0
      %2587 = vmatpush1.msra.mxu0 0.0
      %2588 = vmatprep.subr.mxu0 0.0
      %2589 = vmatpush1.msra.mxu0 0.0
      %2590 = vmatprep.subr.mxu0 0.0
      %2591 = vmatpush1.msra.mxu0 0.0
      %2592 = vmatprep.subr.mxu0 0.0
      %2593 = vmatpush1.msra.mxu0 0.0
      %2594 = vmatprep.subr.mxu0 0.0
      %2595 = vmatpush1.msra.mxu0 0.0
      %2596 = vmatprep.subr.mxu0 0.0
      %2597 = vmatpush1.msra.mxu0 0.0
      %2598 = vmatprep.subr.mxu0 0.0
      %2599 = vmatpush1.msra.mxu0 0.0
      %2600 = vmatprep.subr.mxu0 0.0
      %2601 = vmatpush1.msra.mxu0 0.0
      %2602 = vmatprep.subr.mxu0 0.0
      %2603 = vmatpush1.msra.mxu0 0.0
      %2604 = vmatprep.subr.mxu0 0.0
      %2605 = vmatpush1.msra.mxu0 0.0
      %2606 = vmatprep.subr.mxu0 0.0
      %2607 = vmatpush1.msra.mxu0 0.0
      %2608 = vmatprep.subr.mxu0 0.0
      %2609 = vmatpush1.msra.mxu0 0.0
      %2610 = vmatprep.subr.mxu0 0.0
      %2611 = vmatpush1.msra.mxu0 0.0
      %2612 = vmatprep.subr.mxu0 0.0
      %2613 = vmatpush1.msra.mxu0 0.0
      %2614 = vmatprep.subr.mxu0 0.0
      %2615 = vmatpush1.msra.mxu0 0.0
      %2616 = vmatprep.subr.mxu0 0.0
      %2617 = vmatpush1.msra.mxu0 0.0
      %2618 = vmatprep.subr.mxu0 0.0
      %2619 = vmatpush1.msra.mxu0 0.0
      %2620 = vmatprep.subr.mxu0 0.0
      %2621 = vmatpush1.msra.mxu0 0.0
      %2622 = vmatprep.subr.mxu0 0.0
      %2623 = vmatpush1.msra.mxu0 0.0
      %2624 = vmatprep.subr.mxu0 0.0
      %2625 = vmatpush1.msra.mxu0 0.0
      %2626 = vmatprep.subr.mxu0 0.0
      %2627 = vmatpush1.msra.mxu0 0.0
      %2628 = vmatprep.subr.mxu0 0.0
      %2629 = vmatpush1.msra.mxu0 0.0
      %2630 = vmatprep.subr.mxu0 0.0
      %2631 = vmatpush1.msra.mxu0 0.0
      %2632 = vmatprep.mubr.f32.mxu0 0.0
      %2633 = vmatmul.mubr.f32.gmra.mrb[0].mxu0 %v2563
      %v2634 = vpop.f32.mrb[0].mxu0
      %v2635 = vadd.f32 %v2560, %v2634
      %v2636 = vpop.f32.mrb[0].mxu0
      %2637 = vmatprep.mubr.f32.mxu0 0.0
      %2638 = vmatmul.mubr.f32.gmra.mrb[0].mxu0 %v2566
      %v2639 = vpop.f32.mrb[0].mxu0
      %v2640 = vadd.f32 %v2560, %v2639
      %v2641 = vpop.f32.mrb[0].mxu0
      %2642 = vdwg.mxu0
      %v2643 = vadd.f32 %v1088, %v2635
      %v2644 = vadd.f32 %v1089, %v2640
      %v2645 = vld [vmem:[%s1023] sm:$0x1]
      %v2646 = vld [vmem:[%s1026] sm:$0x1]
      %v2647 = vsel %vm1101, %v2643, 0.0
      %2648 = vadd.xlane.f32.xlu0 %v2647
      %v2649 = vpop.xlane.xlu0 %2648
      %v2650 = vsel %vm1101, %v2644, 0.0
      %2651 = vadd.xlane.f32.xlu0 %v2650
      %v2652 = vpop.xlane.xlu0 %2651
      %v2653 = vrcp.pop 32.0
      %v2654 = vmul.f32 %v2649, %v2653
      %v2655 = vmul.f32 %v2652, %v2653
      %v2656 = vsub.f32 %v2643, %v2654
      %v2657 = vsub.f32 %v2644, %v2655
      %v2658 = vmul.f32 %v2656, %v2656
      %v2659 = vmul.f32 %v2657, %v2657
      %v2660 = vsel %vm1101, %v2658, 0.0
      %2661 = vadd.xlane.f32.xlu0 %v2660
      %v2662 = vpop.xlane.xlu0 %2661
      %v2663 = vsel %vm1101, %v2659, 0.0
      %2664 = vadd.xlane.f32.xlu0 %v2663
      %v2665 = vpop.xlane.xlu0 %2664
      %v2666 = vmul.f32 %v2662, %v2653
      %v2667 = vmul.f32 %v2665, %v2653
      %v2668 = vadd.f32 %v2666, 1e-05
      %v2669 = vadd.f32 %v2667, 1e-05
      %v2670 = vrsqrt.pop %v2668
      %v2671 = vrsqrt.pop %v2669
      %v2672 = vmul.f32 %v2656, %v2670
      %v2673 = vmul.f32 %v2657, %v2671
      %v2675 = vlaneseq
      %v2676 = vshrl.u32 %v2675, 7
      %v2677 = vsub.s32 0, %v2676
      %v2678 = vrot.slane %v2645, %v2677
      %v2680 = vmul.f32 %v2672, %v2678
      %v2681 = vmul.f32 %v2673, %v2678
      %v2683 = vlaneseq
      %v2684 = vshrl.u32 %v2683, 7
      %v2685 = vsub.s32 0, %v2684
      %v2686 = vrot.slane %v2646, %v2685
      %v2688 = vadd.f32 %v2680, %v2686
      %v2689 = vadd.f32 %v2681, %v2686
      %v2690 = vld [vmem:[%s1] sm:$0xff]
      %v2691 = vld [vmem:[%s1 + $0x8] sm:$0xff]
      %v2692 = vld [vmem:[%s1031] sm:$0xff]
      %v2693 = vld [vmem:[%s1031 + $0x8] sm:$0xff]
      %v2694 = vld [vmem:[%s1031 + $0x10] sm:$0xff]
      %v2695 = vld [vmem:[%s1031 + $0x18] sm:$0xff]
      %v2696 = vld [vmem:[%s1034] sm:$0x1]
      %v2698 = vlaneseq
      %v2699 = vshrl.u32 %v2698, 7
      %v2700 = vsub.s32 0, %v2699
      %v2701 = vrot.slane %v2696, %v2700
      %v2704 = vsel %vm1101, %v2688, 0
      %v2707 = vsel %vm1101, %v2689, 0
      %2709 = vmatprep.subr.mxu0 0.0
      %2710 = vmatpush1.msra.mxu0 %v2692
      %2711 = vmatprep.subr.mxu0 0.0
      %2712 = vmatpush1.msra.mxu0 %v2693
      %2713 = vmatprep.subr.mxu0 0.0
      %2714 = vmatpush1.msra.mxu0 %v2694
      %2715 = vmatprep.subr.mxu0 0.0
      %2716 = vmatpush1.msra.mxu0 %v2695
      %2717 = vmatprep.subr.mxu0 0.0
      %2718 = vmatpush1.msra.mxu0 0.0
      %2719 = vmatprep.subr.mxu0 0.0
      %2720 = vmatpush1.msra.mxu0 0.0
      %2721 = vmatprep.subr.mxu0 0.0
      %2722 = vmatpush1.msra.mxu0 0.0
      %2723 = vmatprep.subr.mxu0 0.0
      %2724 = vmatpush1.msra.mxu0 0.0
      %2725 = vmatprep.subr.mxu0 0.0
      %2726 = vmatpush1.msra.mxu0 0.0
      %2727 = vmatprep.subr.mxu0 0.0
      %2728 = vmatpush1.msra.mxu0 0.0
      %2729 = vmatprep.subr.mxu0 0.0
      %2730 = vmatpush1.msra.mxu0 0.0
      %2731 = vmatprep.subr.mxu0 0.0
      %2732 = vmatpush1.msra.mxu0 0.0
      %2733 = vmatprep.subr.mxu0 0.0
      %2734 = vmatpush1.msra.mxu0 0.0
      %2735 = vmatprep.subr.mxu0 0.0
      %2736 = vmatpush1.msra.mxu0 0.0
      %2737 = vmatprep.subr.mxu0 0.0
      %2738 = vmatpush1.msra.mxu0 0.0
      %2739 = vmatprep.subr.mxu0 0.0
      %2740 = vmatpush1.msra.mxu0 0.0
      %2741 = vmatprep.subr.mxu0 0.0
      %2742 = vmatpush1.msra.mxu0 0.0
      %2743 = vmatprep.subr.mxu0 0.0
      %2744 = vmatpush1.msra.mxu0 0.0
      %2745 = vmatprep.subr.mxu0 0.0
      %2746 = vmatpush1.msra.mxu0 0.0
      %2747 = vmatprep.subr.mxu0 0.0
      %2748 = vmatpush1.msra.mxu0 0.0
      %2749 = vmatprep.subr.mxu0 0.0
      %2750 = vmatpush1.msra.mxu0 0.0
      %2751 = vmatprep.subr.mxu0 0.0
      %2752 = vmatpush1.msra.mxu0 0.0
      %2753 = vmatprep.subr.mxu0 0.0
      %2754 = vmatpush1.msra.mxu0 0.0
      %2755 = vmatprep.subr.mxu0 0.0
      %2756 = vmatpush1.msra.mxu0 0.0
      %2757 = vmatprep.subr.mxu0 0.0
      %2758 = vmatpush1.msra.mxu0 0.0
      %2759 = vmatprep.subr.mxu0 0.0
      %2760 = vmatpush1.msra.mxu0 0.0
      %2761 = vmatprep.subr.mxu0 0.0
      %2762 = vmatpush1.msra.mxu0 0.0
      %2763 = vmatprep.subr.mxu0 0.0
      %2764 = vmatpush1.msra.mxu0 0.0
      %2765 = vmatprep.subr.mxu0 0.0
      %2766 = vmatpush1.msra.mxu0 0.0
      %2767 = vmatprep.subr.mxu0 0.0
      %2768 = vmatpush1.msra.mxu0 0.0
      %2769 = vmatprep.subr.mxu0 0.0
      %2770 = vmatpush1.msra.mxu0 0.0
      %2771 = vmatprep.subr.mxu0 0.0
      %2772 = vmatpush1.msra.mxu0 0.0
      %2773 = vmatprep.mubr.f32.mxu0 0.0
      %2774 = vmatmul.mubr.f32.gmra.mrb[0].mxu0 %v2704
      %v2775 = vpop.f32.mrb[0].mxu0
      %v2776 = vadd.f32 %v2701, %v2775
      %v2777 = vpop.f32.mrb[0].mxu0
      %2778 = vmatprep.mubr.f32.mxu0 0.0
      %2779 = vmatmul.mubr.f32.gmra.mrb[0].mxu0 %v2707
      %v2780 = vpop.f32.mrb[0].mxu0
      %v2781 = vadd.f32 %v2701, %v2780
      %v2782 = vpop.f32.mrb[0].mxu0
      %2783 = vdwg.mxu0
      %v2784 = vld [vmem:[%s1039] sm:$0xff]
      %v2785 = vld [vmem:[%s1039 + $0x8] sm:$0xff]
      %v2786 = vld [vmem:[%s1039 + $0x10] sm:$0xff]
      %v2787 = vld [vmem:[%s1039 + $0x18] sm:$0xff]
      %v2788 = vld [vmem:[%s1042] sm:$0x1]
      %v2790 = vlaneseq
      %v2791 = vshrl.u32 %v2790, 7
      %v2792 = vsub.s32 0, %v2791
      %v2793 = vrot.slane %v2788, %v2792
      %v2796 = vsel %vm1101, %v2690, 0
      %v2799 = vsel %vm1101, %v2691, 0
      %2801 = vmatprep.subr.mxu0 0.0
      %2802 = vmatpush1.msra.mxu0 %v2784
      %2803 = vmatprep.subr.mxu0 0.0
      %2804 = vmatpush1.msra.mxu0 %v2785
      %2805 = vmatprep.subr.mxu0 0.0
      %2806 = vmatpush1.msra.mxu0 %v2786
      %2807 = vmatprep.subr.mxu0 0.0
      %2808 = vmatpush1.msra.mxu0 %v2787
      %2809 = vmatprep.subr.mxu0 0.0
      %2810 = vmatpush1.msra.mxu0 0.0
      %2811 = vmatprep.subr.mxu0 0.0
      %2812 = vmatpush1.msra.mxu0 0.0
      %2813 = vmatprep.subr.mxu0 0.0
      %2814 = vmatpush1.msra.mxu0 0.0
      %2815 = vmatprep.subr.mxu0 0.0
      %2816 = vmatpush1.msra.mxu0 0.0
      %2817 = vmatprep.subr.mxu0 0.0
      %2818 = vmatpush1.msra.mxu0 0.0
      %2819 = vmatprep.subr.mxu0 0.0
      %2820 = vmatpush1.msra.mxu0 0.0
      %2821 = vmatprep.subr.mxu0 0.0
      %2822 = vmatpush1.msra.mxu0 0.0
      %2823 = vmatprep.subr.mxu0 0.0
      %2824 = vmatpush1.msra.mxu0 0.0
      %2825 = vmatprep.subr.mxu0 0.0
      %2826 = vmatpush1.msra.mxu0 0.0
      %2827 = vmatprep.subr.mxu0 0.0
      %2828 = vmatpush1.msra.mxu0 0.0
      %2829 = vmatprep.subr.mxu0 0.0
      %2830 = vmatpush1.msra.mxu0 0.0
      %2831 = vmatprep.subr.mxu0 0.0
      %2832 = vmatpush1.msra.mxu0 0.0
      %2833 = vmatprep.subr.mxu0 0.0
      %2834 = vmatpush1.msra.mxu0 0.0
      %2835 = vmatprep.subr.mxu0 0.0
      %2836 = vmatpush1.msra.mxu0 0.0
      %2837 = vmatprep.subr.mxu0 0.0
      %2838 = vmatpush1.msra.mxu0 0.0
      %2839 = vmatprep.subr.mxu0 0.0
      %2840 = vmatpush1.msra.mxu0 0.0
      %2841 = vmatprep.subr.mxu0 0.0
      %2842 = vmatpush1.msra.mxu0 0.0
      %2843 = vmatprep.subr.mxu0 0.0
      %2844 = vmatpush1.msra.mxu0 0.0
      %2845 = vmatprep.subr.mxu0 0.0
      %2846 = vmatpush1.msra.mxu0 0.0
      %2847 = vmatprep.subr.mxu0 0.0
      %2848 = vmatpush1.msra.mxu0 0.0
      %2849 = vmatprep.subr.mxu0 0.0
      %2850 = vmatpush1.msra.mxu0 0.0
      %2851 = vmatprep.subr.mxu0 0.0
      %2852 = vmatpush1.msra.mxu0 0.0
      %2853 = vmatprep.subr.mxu0 0.0
      %2854 = vmatpush1.msra.mxu0 0.0
      %2855 = vmatprep.subr.mxu0 0.0
      %2856 = vmatpush1.msra.mxu0 0.0
      %2857 = vmatprep.subr.mxu0 0.0
      %2858 = vmatpush1.msra.mxu0 0.0
      %2859 = vmatprep.subr.mxu0 0.0
      %2860 = vmatpush1.msra.mxu0 0.0
      %2861 = vmatprep.subr.mxu0 0.0
      %2862 = vmatpush1.msra.mxu0 0.0
      %2863 = vmatprep.subr.mxu0 0.0
      %2864 = vmatpush1.msra.mxu0 0.0
      %2865 = vmatprep.mubr.f32.mxu0 0.0
      %2866 = vmatmul.mubr.f32.gmra.mrb[0].mxu0 %v2796
      %v2867 = vpop.f32.mrb[0].mxu0
      %v2868 = vadd.f32 %v2793, %v2867
      %v2869 = vpop.f32.mrb[0].mxu0
      %2870 = vmatprep.mubr.f32.mxu0 0.0
      %2871 = vmatmul.mubr.f32.gmra.mrb[0].mxu0 %v2799
      %v2872 = vpop.f32.mrb[0].mxu0
      %v2873 = vadd.f32 %v2793, %v2872
      %v2874 = vpop.f32.mrb[0].mxu0
      %2875 = vdwg.mxu0
      %v2876 = vld [vmem:[%s3] sm:$0xff]
      %v2878 = vsel %vm1187, %v2776, 0
      %v2881 = vsel %vm1187, %v2868, 0
      %2883 = vmatprep.subr.mxu0 0.0
      %2884 = vmatpush1.xpose.msra.mxu0 %v2881
      %2885 = vmatprep.subr.mxu0 0.0
      %2886 = vmatpush1.xpose.msra.mxu0 0.0
      %2887 = vmatprep.subr.mxu0 0.0
      %2888 = vmatpush1.xpose.msra.mxu0 0.0
      %2889 = vmatprep.subr.mxu0 0.0
      %2890 = vmatpush1.xpose.msra.mxu0 0.0
      %2891 = vmatprep.subr.mxu0 0.0
      %2892 = vmatpush1.xpose.msra.mxu0 0.0
      %2893 = vmatprep.subr.mxu0 0.0
      %2894 = vmatpush1.xpose.msra.mxu0 0.0
      %2895 = vmatprep.subr.mxu0 0.0
      %2896 = vmatpush1.xpose.msra.mxu0 0.0
      %2897 = vmatprep.subr.mxu0 0.0
      %2898 = vmatpush1.xpose.msra.mxu0 0.0
      %2899 = vmatprep.subr.mxu0 0.0
      %2900 = vmatpush1.xpose.msra.mxu0 0.0
      %2901 = vmatprep.subr.mxu0 0.0
      %2902 = vmatpush1.xpose.msra.mxu0 0.0
      %2903 = vmatprep.subr.mxu0 0.0
      %2904 = vmatpush1.xpose.msra.mxu0 0.0
      %2905 = vmatprep.subr.mxu0 0.0
      %2906 = vmatpush1.xpose.msra.mxu0 0.0
      %2907 = vmatprep.subr.mxu0 0.0
      %2908 = vmatpush1.xpose.msra.mxu0 0.0
      %2909 = vmatprep.subr.mxu0 0.0
      %2910 = vmatpush1.xpose.msra.mxu0 0.0
      %2911 = vmatprep.subr.mxu0 0.0
      %2912 = vmatpush1.xpose.msra.mxu0 0.0
      %2913 = vmatprep.subr.mxu0 0.0
      %2914 = vmatpush1.xpose.msra.mxu0 0.0
      %2915 = vmatprep.subr.mxu0 0.0
      %2916 = vmatpush1.xpose.msra.mxu0 0.0
      %2917 = vmatprep.subr.mxu0 0.0
      %2918 = vmatpush1.xpose.msra.mxu0 0.0
      %2919 = vmatprep.subr.mxu0 0.0
      %2920 = vmatpush1.xpose.msra.mxu0 0.0
      %2921 = vmatprep.subr.mxu0 0.0
      %2922 = vmatpush1.xpose.msra.mxu0 0.0
      %2923 = vmatprep.subr.mxu0 0.0
      %2924 = vmatpush1.xpose.msra.mxu0 0.0
      %2925 = vmatprep.subr.mxu0 0.0
      %2926 = vmatpush1.xpose.msra.mxu0 0.0
      %2927 = vmatprep.subr.mxu0 0.0
      %2928 = vmatpush1.xpose.msra.mxu0 0.0
      %2929 = vmatprep.subr.mxu0 0.0
      %2930 = vmatpush1.xpose.msra.mxu0 0.0
      %2931 = vmatprep.subr.mxu0 0.0
      %2932 = vmatpush1.xpose.msra.mxu0 0.0
      %2933 = vmatprep.subr.mxu0 0.0
      %2934 = vmatpush1.xpose.msra.mxu0 0.0
      %2935 = vmatprep.subr.mxu0 0.0
      %2936 = vmatpush1.xpose.msra.mxu0 0.0
      %2937 = vmatprep.subr.mxu0 0.0
      %2938 = vmatpush1.xpose.msra.mxu0 0.0
      %2939 = vmatprep.subr.mxu0 0.0
      %2940 = vmatpush1.xpose.msra.mxu0 0.0
      %2941 = vmatprep.subr.mxu0 0.0
      %2942 = vmatpush1.xpose.msra.mxu0 0.0
      %2943 = vmatprep.subr.mxu0 0.0
      %2944 = vmatpush1.xpose.msra.mxu0 0.0
      %2945 = vmatprep.subr.mxu0 0.0
      %2946 = vmatpush1.xpose.msra.mxu0 0.0
      %2947 = vmatprep.mubr.f32.mxu0 0.0
      %2948 = vmatmul.mubr.f32.gmra.mrb[0].mxu0 %v2878
      %v2949 = vpop.f32.mrb[0].mxu0
      %v2950 = vadd.f32 0.0, %v2949
      %v2951 = vpop.f32.mrb[0].mxu0
      %2952 = vdwg.mxu0
      %v2954 = vsel %vm1187, %v2781, 0
      %v2957 = vsel %vm1187, %v2873, 0
      %2959 = vmatprep.subr.mxu0 0.0
      %2960 = vmatpush1.xpose.msra.mxu0 %v2957
      %2961 = vmatprep.subr.mxu0 0.0
      %2962 = vmatpush1.xpose.msra.mxu0 0.0
      %2963 = vmatprep.subr.mxu0 0.0
      %2964 = vmatpush1.xpose.msra.mxu0 0.0
      %2965 = vmatprep.subr.mxu0 0.0
      %2966 = vmatpush1.xpose.msra.mxu0 0.0
      %2967 = vmatprep.subr.mxu0 0.0
      %2968 = vmatpush1.xpose.msra.mxu0 0.0
      %2969 = vmatprep.subr.mxu0 0.0
      %2970 = vmatpush1.xpose.msra.mxu0 0.0
      %2971 = vmatprep.subr.mxu0 0.0
      %2972 = vmatpush1.xpose.msra.mxu0 0.0
      %2973 = vmatprep.subr.mxu0 0.0
      %2974 = vmatpush1.xpose.msra.mxu0 0.0
      %2975 = vmatprep.subr.mxu0 0.0
      %2976 = vmatpush1.xpose.msra.mxu0 0.0
      %2977 = vmatprep.subr.mxu0 0.0
      %2978 = vmatpush1.xpose.msra.mxu0 0.0
      %2979 = vmatprep.subr.mxu0 0.0
      %2980 = vmatpush1.xpose.msra.mxu0 0.0
      %2981 = vmatprep.subr.mxu0 0.0
      %2982 = vmatpush1.xpose.msra.mxu0 0.0
      %2983 = vmatprep.subr.mxu0 0.0
      %2984 = vmatpush1.xpose.msra.mxu0 0.0
      %2985 = vmatprep.subr.mxu0 0.0
      %2986 = vmatpush1.xpose.msra.mxu0 0.0
      %2987 = vmatprep.subr.mxu0 0.0
      %2988 = vmatpush1.xpose.msra.mxu0 0.0
      %2989 = vmatprep.subr.mxu0 0.0
      %2990 = vmatpush1.xpose.msra.mxu0 0.0
      %2991 = vmatprep.subr.mxu0 0.0
      %2992 = vmatpush1.xpose.msra.mxu0 0.0
      %2993 = vmatprep.subr.mxu0 0.0
      %2994 = vmatpush1.xpose.msra.mxu0 0.0
      %2995 = vmatprep.subr.mxu0 0.0
      %2996 = vmatpush1.xpose.msra.mxu0 0.0
      %2997 = vmatprep.subr.mxu0 0.0
      %2998 = vmatpush1.xpose.msra.mxu0 0.0
      %2999 = vmatprep.subr.mxu0 0.0
      %3000 = vmatpush1.xpose.msra.mxu0 0.0
      %3001 = vmatprep.subr.mxu0 0.0
      %3002 = vmatpush1.xpose.msra.mxu0 0.0
      %3003 = vmatprep.subr.mxu0 0.0
      %3004 = vmatpush1.xpose.msra.mxu0 0.0
      %3005 = vmatprep.subr.mxu0 0.0
      %3006 = vmatpush1.xpose.msra.mxu0 0.0
      %3007 = vmatprep.subr.mxu0 0.0
      %3008 = vmatpush1.xpose.msra.mxu0 0.0
      %3009 = vmatprep.subr.mxu0 0.0
      %3010 = vmatpush1.xpose.msra.mxu0 0.0
      %3011 = vmatprep.subr.mxu0 0.0
      %3012 = vmatpush1.xpose.msra.mxu0 0.0
      %3013 = vmatprep.subr.mxu0 0.0
      %3014 = vmatpush1.xpose.msra.mxu0 0.0
      %3015 = vmatprep.subr.mxu0 0.0
      %3016 = vmatpush1.xpose.msra.mxu0 0.0
      %3017 = vmatprep.subr.mxu0 0.0
      %3018 = vmatpush1.xpose.msra.mxu0 0.0
      %3019 = vmatprep.subr.mxu0 0.0
      %3020 = vmatpush1.xpose.msra.mxu0 0.0
      %3021 = vmatprep.subr.mxu0 0.0
      %3022 = vmatpush1.xpose.msra.mxu0 0.0
      %3023 = vmatprep.mubr.f32.mxu0 0.0
      %3024 = vmatmul.mubr.f32.gmra.mrb[0].mxu0 %v2954
      %v3025 = vpop.f32.mrb[0].mxu0
      %v3026 = vadd.f32 0.0, %v3025
      %v3027 = vpop.f32.mrb[0].mxu0
      %3028 = vdwg.mxu0
      %v3029 = vmul.f32 %v2950, 0.35355338
      %v3030 = vmul.f32 %v3026, 0.35355338
      %v3031 = vadd.f32 %v3029, %v2876
      %v3032 = vadd.f32 %v3030, %v2876
      %v3033 = vsel %vm1187, %v3031, -inf
      %3034 = vmax.xlane.f32.xlu0 %v3033
      %v3035 = vpop.xlane.xlu0 %3034
      %v3036 = vsel %vm1187, %v3032, -inf
      %3037 = vmax.xlane.f32.xlu0 %v3036
      %v3038 = vpop.xlane.xlu0 %3037
      %v3039 = vsub.f32 %v3031, %v3035
      %v3040 = vsub.f32 %v3032, %v3038
      %v3041 = vmul.f32 %v3039, 1.442695
      %v3042 = vpow.pop %v3041
      %v3043 = vmul.f32 %v3040, 1.442695
      %v3044 = vpow.pop %v3043
      %v3045 = vsel %vm1187, %v3042, 0.0
      %3046 = vadd.xlane.f32.xlu0 %v3045
      %v3047 = vpop.xlane.xlu0 %3046
      %v3048 = vsel %vm1187, %v3044, 0.0
      %3049 = vadd.xlane.f32.xlu0 %v3048
      %v3050 = vpop.xlane.xlu0 %3049
      %v3051 = vrcp.pop %v3047
      %v3052 = vrcp.pop %v3050
      %v3053 = vmul.f32 %v3042, %v3051
      %v3054 = vmul.f32 %v3044, %v3052
      %3055 = vrot.lane.b32.xlu0 %v2868, 96
      %v3056 = vpop.permute.xlu0 %3055
      %v3059 = vsel %vm1187, %v3053, 0
      %3061 = vmatprep.subr.mxu0 0.0
      %3062 = vmatpush1.msra.mxu0 %v3056
      %3063 = vmatprep.subr.mxu0 0.0
      %3064 = vmatpush1.msra.mxu0 0.0
      %3065 = vmatprep.subr.mxu0 0.0
      %3066 = vmatpush1.msra.mxu0 0.0
      %3067 = vmatprep.subr.mxu0 0.0
      %3068 = vmatpush1.msra.mxu0 0.0
      %3069 = vmatprep.subr.mxu0 0.0
      %3070 = vmatpush1.msra.mxu0 0.0
      %3071 = vmatprep.subr.mxu0 0.0
      %3072 = vmatpush1.msra.mxu0 0.0
      %3073 = vmatprep.subr.mxu0 0.0
      %3074 = vmatpush1.msra.mxu0 0.0
      %3075 = vmatprep.subr.mxu0 0.0
      %3076 = vmatpush1.msra.mxu0 0.0
      %3077 = vmatprep.subr.mxu0 0.0
      %3078 = vmatpush1.msra.mxu0 0.0
      %3079 = vmatprep.subr.mxu0 0.0
      %3080 = vmatpush1.msra.mxu0 0.0
      %3081 = vmatprep.subr.mxu0 0.0
      %3082 = vmatpush1.msra.mxu0 0.0
      %3083 = vmatprep.subr.mxu0 0.0
      %3084 = vmatpush1.msra.mxu0 0.0
      %3085 = vmatprep.subr.mxu0 0.0
      %3086 = vmatpush1.msra.mxu0 0.0
      %3087 = vmatprep.subr.mxu0 0.0
      %3088 = vmatpush1.msra.mxu0 0.0
      %3089 = vmatprep.subr.mxu0 0.0
      %3090 = vmatpush1.msra.mxu0 0.0
      %3091 = vmatprep.subr.mxu0 0.0
      %3092 = vmatpush1.msra.mxu0 0.0
      %3093 = vmatprep.subr.mxu0 0.0
      %3094 = vmatpush1.msra.mxu0 0.0
      %3095 = vmatprep.subr.mxu0 0.0
      %3096 = vmatpush1.msra.mxu0 0.0
      %3097 = vmatprep.subr.mxu0 0.0
      %3098 = vmatpush1.msra.mxu0 0.0
      %3099 = vmatprep.subr.mxu0 0.0
      %3100 = vmatpush1.msra.mxu0 0.0
      %3101 = vmatprep.subr.mxu0 0.0
      %3102 = vmatpush1.msra.mxu0 0.0
      %3103 = vmatprep.subr.mxu0 0.0
      %3104 = vmatpush1.msra.mxu0 0.0
      %3105 = vmatprep.subr.mxu0 0.0
      %3106 = vmatpush1.msra.mxu0 0.0
      %3107 = vmatprep.subr.mxu0 0.0
      %3108 = vmatpush1.msra.mxu0 0.0
      %3109 = vmatprep.subr.mxu0 0.0
      %3110 = vmatpush1.msra.mxu0 0.0
      %3111 = vmatprep.subr.mxu0 0.0
      %3112 = vmatpush1.msra.mxu0 0.0
      %3113 = vmatprep.subr.mxu0 0.0
      %3114 = vmatpush1.msra.mxu0 0.0
      %3115 = vmatprep.subr.mxu0 0.0
      %3116 = vmatpush1.msra.mxu0 0.0
      %3117 = vmatprep.subr.mxu0 0.0
      %3118 = vmatpush1.msra.mxu0 0.0
      %3119 = vmatprep.subr.mxu0 0.0
      %3120 = vmatpush1.msra.mxu0 0.0
      %3121 = vmatprep.subr.mxu0 0.0
      %3122 = vmatpush1.msra.mxu0 0.0
      %3123 = vmatprep.subr.mxu0 0.0
      %3124 = vmatpush1.msra.mxu0 0.0
      %3125 = vmatprep.mubr.f32.mxu0 0.0
      %3126 = vmatmul.mubr.f32.gmra.mrb[0].mxu0 %v3059
      %v3127 = vpop.f32.mrb[0].mxu0
      %v3128 = vadd.f32 0.0, %v3127
      %v3129 = vpop.f32.mrb[0].mxu0
      %3130 = vdwg.mxu0
      %3131 = vrot.lane.b32.xlu0 %v2873, 96
      %v3132 = vpop.permute.xlu0 %3131
      %v3135 = vsel %vm1187, %v3054, 0
      %3137 = vmatprep.subr.mxu0 0.0
      %3138 = vmatpush1.msra.mxu0 %v3132
      %3139 = vmatprep.subr.mxu0 0.0
      %3140 = vmatpush1.msra.mxu0 0.0
      %3141 = vmatprep.subr.mxu0 0.0
      %3142 = vmatpush1.msra.mxu0 0.0
      %3143 = vmatprep.subr.mxu0 0.0
      %3144 = vmatpush1.msra.mxu0 0.0
      %3145 = vmatprep.subr.mxu0 0.0
      %3146 = vmatpush1.msra.mxu0 0.0
      %3147 = vmatprep.subr.mxu0 0.0
      %3148 = vmatpush1.msra.mxu0 0.0
      %3149 = vmatprep.subr.mxu0 0.0
      %3150 = vmatpush1.msra.mxu0 0.0
      %3151 = vmatprep.subr.mxu0 0.0
      %3152 = vmatpush1.msra.mxu0 0.0
      %3153 = vmatprep.subr.mxu0 0.0
      %3154 = vmatpush1.msra.mxu0 0.0
      %3155 = vmatprep.subr.mxu0 0.0
      %3156 = vmatpush1.msra.mxu0 0.0
      %3157 = vmatprep.subr.mxu0 0.0
      %3158 = vmatpush1.msra.mxu0 0.0
      %3159 = vmatprep.subr.mxu0 0.0
      %3160 = vmatpush1.msra.mxu0 0.0
      %3161 = vmatprep.subr.mxu0 0.0
      %3162 = vmatpush1.msra.mxu0 0.0
      %3163 = vmatprep.subr.mxu0 0.0
      %3164 = vmatpush1.msra.mxu0 0.0
      %3165 = vmatprep.subr.mxu0 0.0
      %3166 = vmatpush1.msra.mxu0 0.0
      %3167 = vmatprep.subr.mxu0 0.0
      %3168 = vmatpush1.msra.mxu0 0.0
      %3169 = vmatprep.subr.mxu0 0.0
      %3170 = vmatpush1.msra.mxu0 0.0
      %3171 = vmatprep.subr.mxu0 0.0
      %3172 = vmatpush1.msra.mxu0 0.0
      %3173 = vmatprep.subr.mxu0 0.0
      %3174 = vmatpush1.msra.mxu0 0.0
      %3175 = vmatprep.subr.mxu0 0.0
      %3176 = vmatpush1.msra.mxu0 0.0
      %3177 = vmatprep.subr.mxu0 0.0
      %3178 = vmatpush1.msra.mxu0 0.0
      %3179 = vmatprep.subr.mxu0 0.0
      %3180 = vmatpush1.msra.mxu0 0.0
      %3181 = vmatprep.subr.mxu0 0.0
      %3182 = vmatpush1.msra.mxu0 0.0
      %3183 = vmatprep.subr.mxu0 0.0
      %3184 = vmatpush1.msra.mxu0 0.0
      %3185 = vmatprep.subr.mxu0 0.0
      %3186 = vmatpush1.msra.mxu0 0.0
      %3187 = vmatprep.subr.mxu0 0.0
      %3188 = vmatpush1.msra.mxu0 0.0
      %3189 = vmatprep.subr.mxu0 0.0
      %3190 = vmatpush1.msra.mxu0 0.0
      %3191 = vmatprep.subr.mxu0 0.0
      %3192 = vmatpush1.msra.mxu0 0.0
      %3193 = vmatprep.subr.mxu0 0.0
      %3194 = vmatpush1.msra.mxu0 0.0
      %3195 = vmatprep.subr.mxu0 0.0
      %3196 = vmatpush1.msra.mxu0 0.0
      %3197 = vmatprep.subr.mxu0 0.0
      %3198 = vmatpush1.msra.mxu0 0.0
      %3199 = vmatprep.subr.mxu0 0.0
      %3200 = vmatpush1.msra.mxu0 0.0
      %3201 = vmatprep.mubr.f32.mxu0 0.0
      %3202 = vmatmul.mubr.f32.gmra.mrb[0].mxu0 %v3135
      %v3203 = vpop.f32.mrb[0].mxu0
      %v3204 = vadd.f32 0.0, %v3203
      %v3205 = vpop.f32.mrb[0].mxu0
      %3206 = vdwg.mxu0
      %3207 = vrot.lane.b32.xlu0 %v2776, 120
      %v3208 = vpop.permute.xlu0 %3207
      %3209 = vrot.lane.b32.xlu0 %v2868, 120
      %v3210 = vpop.permute.xlu0 %3209
      %v3211 = vsel %vm1187, %v3208, 0
      %v3213 = vsel %vm1187, %v3210, 0
      %3215 = vmatprep.subr.mxu0 0.0
      %3216 = vmatpush1.xpose.msra.mxu0 %v3213
      %3217 = vmatprep.subr.mxu0 0.0
      %3218 = vmatpush1.xpose.msra.mxu0 0.0
      %3219 = vmatprep.subr.mxu0 0.0
      %3220 = vmatpush1.xpose.msra.mxu0 0.0
      %3221 = vmatprep.subr.mxu0 0.0
      %3222 = vmatpush1.xpose.msra.mxu0 0.0
      %3223 = vmatprep.subr.mxu0 0.0
      %3224 = vmatpush1.xpose.msra.mxu0 0.0
      %3225 = vmatprep.subr.mxu0 0.0
      %3226 = vmatpush1.xpose.msra.mxu0 0.0
      %3227 = vmatprep.subr.mxu0 0.0
      %3228 = vmatpush1.xpose.msra.mxu0 0.0
      %3229 = vmatprep.subr.mxu0 0.0
      %3230 = vmatpush1.xpose.msra.mxu0 0.0
      %3231 = vmatprep.subr.mxu0 0.0
      %3232 = vmatpush1.xpose.msra.mxu0 0.0
      %3233 = vmatprep.subr.mxu0 0.0
      %3234 = vmatpush1.xpose.msra.mxu0 0.0
      %3235 = vmatprep.subr.mxu0 0.0
      %3236 = vmatpush1.xpose.msra.mxu0 0.0
      %3237 = vmatprep.subr.mxu0 0.0
      %3238 = vmatpush1.xpose.msra.mxu0 0.0
      %3239 = vmatprep.subr.mxu0 0.0
      %3240 = vmatpush1.xpose.msra.mxu0 0.0
      %3241 = vmatprep.subr.mxu0 0.0
      %3242 = vmatpush1.xpose.msra.mxu0 0.0
      %3243 = vmatprep.subr.mxu0 0.0
      %3244 = vmatpush1.xpose.msra.mxu0 0.0
      %3245 = vmatprep.subr.mxu0 0.0
      %3246 = vmatpush1.xpose.msra.mxu0 0.0
      %3247 = vmatprep.subr.mxu0 0.0
      %3248 = vmatpush1.xpose.msra.mxu0 0.0
      %3249 = vmatprep.subr.mxu0 0.0
      %3250 = vmatpush1.xpose.msra.mxu0 0.0
      %3251 = vmatprep.subr.mxu0 0.0
      %3252 = vmatpush1.xpose.msra.mxu0 0.0
      %3253 = vmatprep.subr.mxu0 0.0
      %3254 = vmatpush1.xpose.msra.mxu0 0.0
      %3255 = vmatprep.subr.mxu0 0.0
      %3256 = vmatpush1.xpose.msra.mxu0 0.0
      %3257 = vmatprep.subr.mxu0 0.0
      %3258 = vmatpush1.xpose.msra.mxu0 0.0
      %3259 = vmatprep.subr.mxu0 0.0
      %3260 = vmatpush1.xpose.msra.mxu0 0.0
      %3261 = vmatprep.subr.mxu0 0.0
      %3262 = vmatpush1.xpose.msra.mxu0 0.0
      %3263 = vmatprep.subr.mxu0 0.0
      %3264 = vmatpush1.xpose.msra.mxu0 0.0
      %3265 = vmatprep.subr.mxu0 0.0
      %3266 = vmatpush1.xpose.msra.mxu0 0.0
      %3267 = vmatprep.subr.mxu0 0.0
      %3268 = vmatpush1.xpose.msra.mxu0 0.0
      %3269 = vmatprep.subr.mxu0 0.0
      %3270 = vmatpush1.xpose.msra.mxu0 0.0
      %3271 = vmatprep.subr.mxu0 0.0
      %3272 = vmatpush1.xpose.msra.mxu0 0.0
      %3273 = vmatprep.subr.mxu0 0.0
      %3274 = vmatpush1.xpose.msra.mxu0 0.0
      %3275 = vmatprep.subr.mxu0 0.0
      %3276 = vmatpush1.xpose.msra.mxu0 0.0
      %3277 = vmatprep.subr.mxu0 0.0
      %3278 = vmatpush1.xpose.msra.mxu0 0.0
      %3279 = vmatprep.mubr.f32.mxu0 0.0
      %3280 = vmatmul.mubr.f32.gmra.mrb[0].mxu0 %v3211
      %v3281 = vpop.f32.mrb[0].mxu0
      %v3282 = vadd.f32 0.0, %v3281
      %v3283 = vpop.f32.mrb[0].mxu0
      %3284 = vdwg.mxu0
      %3285 = vrot.lane.b32.xlu0 %v2781, 120
      %v3286 = vpop.permute.xlu0 %3285
      %3287 = vrot.lane.b32.xlu0 %v2873, 120
      %v3288 = vpop.permute.xlu0 %3287
      %v3289 = vsel %vm1187, %v3286, 0
      %v3291 = vsel %vm1187, %v3288, 0
      %3293 = vmatprep.subr.mxu0 0.0
      %3294 = vmatpush1.xpose.msra.mxu0 %v3291
      %3295 = vmatprep.subr.mxu0 0.0
      %3296 = vmatpush1.xpose.msra.mxu0 0.0
      %3297 = vmatprep.subr.mxu0 0.0
      %3298 = vmatpush1.xpose.msra.mxu0 0.0
      %3299 = vmatprep.subr.mxu0 0.0
      %3300 = vmatpush1.xpose.msra.mxu0 0.0
      %3301 = vmatprep.subr.mxu0 0.0
      %3302 = vmatpush1.xpose.msra.mxu0 0.0
      %3303 = vmatprep.subr.mxu0 0.0
      %3304 = vmatpush1.xpose.msra.mxu0 0.0
      %3305 = vmatprep.subr.mxu0 0.0
      %3306 = vmatpush1.xpose.msra.mxu0 0.0
      %3307 = vmatprep.subr.mxu0 0.0
      %3308 = vmatpush1.xpose.msra.mxu0 0.0
      %3309 = vmatprep.subr.mxu0 0.0
      %3310 = vmatpush1.xpose.msra.mxu0 0.0
      %3311 = vmatprep.subr.mxu0 0.0
      %3312 = vmatpush1.xpose.msra.mxu0 0.0
      %3313 = vmatprep.subr.mxu0 0.0
      %3314 = vmatpush1.xpose.msra.mxu0 0.0
      %3315 = vmatprep.subr.mxu0 0.0
      %3316 = vmatpush1.xpose.msra.mxu0 0.0
      %3317 = vmatprep.subr.mxu0 0.0
      %3318 = vmatpush1.xpose.msra.mxu0 0.0
      %3319 = vmatprep.subr.mxu0 0.0
      %3320 = vmatpush1.xpose.msra.mxu0 0.0
      %3321 = vmatprep.subr.mxu0 0.0
      %3322 = vmatpush1.xpose.msra.mxu0 0.0
      %3323 = vmatprep.subr.mxu0 0.0
      %3324 = vmatpush1.xpose.msra.mxu0 0.0
      %3325 = vmatprep.subr.mxu0 0.0
      %3326 = vmatpush1.xpose.msra.mxu0 0.0
      %3327 = vmatprep.subr.mxu0 0.0
      %3328 = vmatpush1.xpose.msra.mxu0 0.0
      %3329 = vmatprep.subr.mxu0 0.0
      %3330 = vmatpush1.xpose.msra.mxu0 0.0
      %3331 = vmatprep.subr.mxu0 0.0
      %3332 = vmatpush1.xpose.msra.mxu0 0.0
      %3333 = vmatprep.subr.mxu0 0.0
      %3334 = vmatpush1.xpose.msra.mxu0 0.0
      %3335 = vmatprep.subr.mxu0 0.0
      %3336 = vmatpush1.xpose.msra.mxu0 0.0
      %3337 = vmatprep.subr.mxu0 0.0
      %3338 = vmatpush1.xpose.msra.mxu0 0.0
      %3339 = vmatprep.subr.mxu0 0.0
      %3340 = vmatpush1.xpose.msra.mxu0 0.0
      %3341 = vmatprep.subr.mxu0 0.0
      %3342 = vmatpush1.xpose.msra.mxu0 0.0
      %3343 = vmatprep.subr.mxu0 0.0
      %3344 = vmatpush1.xpose.msra.mxu0 0.0
      %3345 = vmatprep.subr.mxu0 0.0
      %3346 = vmatpush1.xpose.msra.mxu0 0.0
      %3347 = vmatprep.subr.mxu0 0.0
      %3348 = vmatpush1.xpose.msra.mxu0 0.0
      %3349 = vmatprep.subr.mxu0 0.0
      %3350 = vmatpush1.xpose.msra.mxu0 0.0
      %3351 = vmatprep.subr.mxu0 0.0
      %3352 = vmatpush1.xpose.msra.mxu0 0.0
      %3353 = vmatprep.subr.mxu0 0.0
      %3354 = vmatpush1.xpose.msra.mxu0 0.0
      %3355 = vmatprep.subr.mxu0 0.0
      %3356 = vmatpush1.xpose.msra.mxu0 0.0
      %3357 = vmatprep.mubr.f32.mxu0 0.0
      %3358 = vmatmul.mubr.f32.gmra.mrb[0].mxu0 %v3289
      %v3359 = vpop.f32.mrb[0].mxu0
      %v3360 = vadd.f32 0.0, %v3359
      %v3361 = vpop.f32.mrb[0].mxu0
      %3362 = vdwg.mxu0
      %v3363 = vmul.f32 %v3282, 0.35355338
      %v3364 = vmul.f32 %v3360, 0.35355338
      %v3365 = vadd.f32 %v3363, %v2876
      %v3366 = vadd.f32 %v3364, %v2876
      %v3367 = vsel %vm1187, %v3365, -inf
      %3368 = vmax.xlane.f32.xlu0 %v3367
      %v3369 = vpop.xlane.xlu0 %3368
      %v3370 = vsel %vm1187, %v3366, -inf
      %3371 = vmax.xlane.f32.xlu0 %v3370
      %v3372 = vpop.xlane.xlu0 %3371
      %v3373 = vsub.f32 %v3365, %v3369
      %v3374 = vsub.f32 %v3366, %v3372
      %v3375 = vmul.f32 %v3373, 1.442695
      %v3376 = vpow.pop %v3375
      %v3377 = vmul.f32 %v3374, 1.442695
      %v3378 = vpow.pop %v3377
      %v3379 = vsel %vm1187, %v3376, 0.0
      %3380 = vadd.xlane.f32.xlu0 %v3379
      %v3381 = vpop.xlane.xlu0 %3380
      %v3382 = vsel %vm1187, %v3378, 0.0
      %3383 = vadd.xlane.f32.xlu0 %v3382
      %v3384 = vpop.xlane.xlu0 %3383
      %v3385 = vrcp.pop %v3381
      %v3386 = vrcp.pop %v3384
      %v3387 = vmul.f32 %v3376, %v3385
      %v3388 = vmul.f32 %v3378, %v3386
      %3389 = vrot.lane.b32.xlu0 %v2868, 88
      %v3390 = vpop.permute.xlu0 %3389
      %v3393 = vsel %vm1187, %v3387, 0
      %3395 = vmatprep.subr.mxu0 0.0
      %3396 = vmatpush1.msra.mxu0 %v3390
      %3397 = vmatprep.subr.mxu0 0.0
      %3398 = vmatpush1.msra.mxu0 0.0
      %3399 = vmatprep.subr.mxu0 0.0
      %3400 = vmatpush1.msra.mxu0 0.0
      %3401 = vmatprep.subr.mxu0 0.0
      %3402 = vmatpush1.msra.mxu0 0.0
      %3403 = vmatprep.subr.mxu0 0.0
      %3404 = vmatpush1.msra.mxu0 0.0
      %3405 = vmatprep.subr.mxu0 0.0
      %3406 = vmatpush1.msra.mxu0 0.0
      %3407 = vmatprep.subr.mxu0 0.0
      %3408 = vmatpush1.msra.mxu0 0.0
      %3409 = vmatprep.subr.mxu0 0.0
      %3410 = vmatpush1.msra.mxu0 0.0
      %3411 = vmatprep.subr.mxu0 0.0
      %3412 = vmatpush1.msra.mxu0 0.0
      %3413 = vmatprep.subr.mxu0 0.0
      %3414 = vmatpush1.msra.mxu0 0.0
      %3415 = vmatprep.subr.mxu0 0.0
      %3416 = vmatpush1.msra.mxu0 0.0
      %3417 = vmatprep.subr.mxu0 0.0
      %3418 = vmatpush1.msra.mxu0 0.0
      %3419 = vmatprep.subr.mxu0 0.0
      %3420 = vmatpush1.msra.mxu0 0.0
      %3421 = vmatprep.subr.mxu0 0.0
      %3422 = vmatpush1.msra.mxu0 0.0
      %3423 = vmatprep.subr.mxu0 0.0
      %3424 = vmatpush1.msra.mxu0 0.0
      %3425 = vmatprep.subr.mxu0 0.0
      %3426 = vmatpush1.msra.mxu0 0.0
      %3427 = vmatprep.subr.mxu0 0.0
      %3428 = vmatpush1.msra.mxu0 0.0
      %3429 = vmatprep.subr.mxu0 0.0
      %3430 = vmatpush1.msra.mxu0 0.0
      %3431 = vmatprep.subr.mxu0 0.0
      %3432 = vmatpush1.msra.mxu0 0.0
      %3433 = vmatprep.subr.mxu0 0.0
      %3434 = vmatpush1.msra.mxu0 0.0
      %3435 = vmatprep.subr.mxu0 0.0
      %3436 = vmatpush1.msra.mxu0 0.0
      %3437 = vmatprep.subr.mxu0 0.0
      %3438 = vmatpush1.msra.mxu0 0.0
      %3439 = vmatprep.subr.mxu0 0.0
      %3440 = vmatpush1.msra.mxu0 0.0
      %3441 = vmatprep.subr.mxu0 0.0
      %3442 = vmatpush1.msra.mxu0 0.0
      %3443 = vmatprep.subr.mxu0 0.0
      %3444 = vmatpush1.msra.mxu0 0.0
      %3445 = vmatprep.subr.mxu0 0.0
      %3446 = vmatpush1.msra.mxu0 0.0
      %3447 = vmatprep.subr.mxu0 0.0
      %3448 = vmatpush1.msra.mxu0 0.0
      %3449 = vmatprep.subr.mxu0 0.0
      %3450 = vmatpush1.msra.mxu0 0.0
      %3451 = vmatprep.subr.mxu0 0.0
      %3452 = vmatpush1.msra.mxu0 0.0
      %3453 = vmatprep.subr.mxu0 0.0
      %3454 = vmatpush1.msra.mxu0 0.0
      %3455 = vmatprep.subr.mxu0 0.0
      %3456 = vmatpush1.msra.mxu0 0.0
      %3457 = vmatprep.subr.mxu0 0.0
      %3458 = vmatpush1.msra.mxu0 0.0
      %3459 = vmatprep.mubr.f32.mxu0 0.0
      %3460 = vmatmul.mubr.f32.gmra.mrb[0].mxu0 %v3393
      %v3461 = vpop.f32.mrb[0].mxu0
      %v3462 = vadd.f32 0.0, %v3461
      %v3463 = vpop.f32.mrb[0].mxu0
      %3464 = vdwg.mxu0
      %3465 = vrot.lane.b32.xlu0 %v2873, 88
      %v3466 = vpop.permute.xlu0 %3465
      %v3469 = vsel %vm1187, %v3388, 0
      %3471 = vmatprep.subr.mxu0 0.0
      %3472 = vmatpush1.msra.mxu0 %v3466
      %3473 = vmatprep.subr.mxu0 0.0
      %3474 = vmatpush1.msra.mxu0 0.0
      %3475 = vmatprep.subr.mxu0 0.0
      %3476 = vmatpush1.msra.mxu0 0.0
      %3477 = vmatprep.subr.mxu0 0.0
      %3478 = vmatpush1.msra.mxu0 0.0
      %3479 = vmatprep.subr.mxu0 0.0
      %3480 = vmatpush1.msra.mxu0 0.0
      %3481 = vmatprep.subr.mxu0 0.0
      %3482 = vmatpush1.msra.mxu0 0.0
      %3483 = vmatprep.subr.mxu0 0.0
      %3484 = vmatpush1.msra.mxu0 0.0
      %3485 = vmatprep.subr.mxu0 0.0
      %3486 = vmatpush1.msra.mxu0 0.0
      %3487 = vmatprep.subr.mxu0 0.0
      %3488 = vmatpush1.msra.mxu0 0.0
      %3489 = vmatprep.subr.mxu0 0.0
      %3490 = vmatpush1.msra.mxu0 0.0
      %3491 = vmatprep.subr.mxu0 0.0
      %3492 = vmatpush1.msra.mxu0 0.0
      %3493 = vmatprep.subr.mxu0 0.0
      %3494 = vmatpush1.msra.mxu0 0.0
      %3495 = vmatprep.subr.mxu0 0.0
      %3496 = vmatpush1.msra.mxu0 0.0
      %3497 = vmatprep.subr.mxu0 0.0
      %3498 = vmatpush1.msra.mxu0 0.0
      %3499 = vmatprep.subr.mxu0 0.0
      %3500 = vmatpush1.msra.mxu0 0.0
      %3501 = vmatprep.subr.mxu0 0.0
      %3502 = vmatpush1.msra.mxu0 0.0
      %3503 = vmatprep.subr.mxu0 0.0
      %3504 = vmatpush1.msra.mxu0 0.0
      %3505 = vmatprep.subr.mxu0 0.0
      %3506 = vmatpush1.msra.mxu0 0.0
      %3507 = vmatprep.subr.mxu0 0.0
      %3508 = vmatpush1.msra.mxu0 0.0
      %3509 = vmatprep.subr.mxu0 0.0
      %3510 = vmatpush1.msra.mxu0 0.0
      %3511 = vmatprep.subr.mxu0 0.0
      %3512 = vmatpush1.msra.mxu0 0.0
      %3513 = vmatprep.subr.mxu0 0.0
      %3514 = vmatpush1.msra.mxu0 0.0
      %3515 = vmatprep.subr.mxu0 0.0
      %3516 = vmatpush1.msra.mxu0 0.0
      %3517 = vmatprep.subr.mxu0 0.0
      %3518 = vmatpush1.msra.mxu0 0.0
      %3519 = vmatprep.subr.mxu0 0.0
      %3520 = vmatpush1.msra.mxu0 0.0
      %3521 = vmatprep.subr.mxu0 0.0
      %3522 = vmatpush1.msra.mxu0 0.0
      %3523 = vmatprep.subr.mxu0 0.0
      %3524 = vmatpush1.msra.mxu0 0.0
      %3525 = vmatprep.subr.mxu0 0.0
      %3526 = vmatpush1.msra.mxu0 0.0
      %3527 = vmatprep.subr.mxu0 0.0
      %3528 = vmatpush1.msra.mxu0 0.0
      %3529 = vmatprep.subr.mxu0 0.0
      %3530 = vmatpush1.msra.mxu0 0.0
      %3531 = vmatprep.subr.mxu0 0.0
      %3532 = vmatpush1.msra.mxu0 0.0
      %3533 = vmatprep.subr.mxu0 0.0
      %3534 = vmatpush1.msra.mxu0 0.0
      %3535 = vmatprep.mubr.f32.mxu0 0.0
      %3536 = vmatmul.mubr.f32.gmra.mrb[0].mxu0 %v3469
      %v3537 = vpop.f32.mrb[0].mxu0
      %v3538 = vadd.f32 0.0, %v3537
      %v3539 = vpop.f32.mrb[0].mxu0
      %3540 = vdwg.mxu0
      %3541 = vrot.lane.b32.xlu0 %v2776, 112
      %v3542 = vpop.permute.xlu0 %3541
      %3543 = vrot.lane.b32.xlu0 %v2868, 112
      %v3544 = vpop.permute.xlu0 %3543
      %v3545 = vsel %vm1187, %v3542, 0
      %v3547 = vsel %vm1187, %v3544, 0
      %3549 = vmatprep.subr.mxu0 0.0
      %3550 = vmatpush1.xpose.msra.mxu0 %v3547
      %3551 = vmatprep.subr.mxu0 0.0
      %3552 = vmatpush1.xpose.msra.mxu0 0.0
      %3553 = vmatprep.subr.mxu0 0.0
      %3554 = vmatpush1.xpose.msra.mxu0 0.0
      %3555 = vmatprep.subr.mxu0 0.0
      %3556 = vmatpush1.xpose.msra.mxu0 0.0
      %3557 = vmatprep.subr.mxu0 0.0
      %3558 = vmatpush1.xpose.msra.mxu0 0.0
      %3559 = vmatprep.subr.mxu0 0.0
      %3560 = vmatpush1.xpose.msra.mxu0 0.0
      %3561 = vmatprep.subr.mxu0 0.0
      %3562 = vmatpush1.xpose.msra.mxu0 0.0
      %3563 = vmatprep.subr.mxu0 0.0
      %3564 = vmatpush1.xpose.msra.mxu0 0.0
      %3565 = vmatprep.subr.mxu0 0.0
      %3566 = vmatpush1.xpose.msra.mxu0 0.0
      %3567 = vmatprep.subr.mxu0 0.0
      %3568 = vmatpush1.xpose.msra.mxu0 0.0
      %3569 = vmatprep.subr.mxu0 0.0
      %3570 = vmatpush1.xpose.msra.mxu0 0.0
      %3571 = vmatprep.subr.mxu0 0.0
      %3572 = vmatpush1.xpose.msra.mxu0 0.0
      %3573 = vmatprep.subr.mxu0 0.0
      %3574 = vmatpush1.xpose.msra.mxu0 0.0
      %3575 = vmatprep.subr.mxu0 0.0
      %3576 = vmatpush1.xpose.msra.mxu0 0.0
      %3577 = vmatprep.subr.mxu0 0.0
      %3578 = vmatpush1.xpose.msra.mxu0 0.0
      %3579 = vmatprep.subr.mxu0 0.0
      %3580 = vmatpush1.xpose.msra.mxu0 0.0
      %3581 = vmatprep.subr.mxu0 0.0
      %3582 = vmatpush1.xpose.msra.mxu0 0.0
      %3583 = vmatprep.subr.mxu0 0.0
      %3584 = vmatpush1.xpose.msra.mxu0 0.0
      %3585 = vmatprep.subr.mxu0 0.0
      %3586 = vmatpush1.xpose.msra.mxu0 0.0
      %3587 = vmatprep.subr.mxu0 0.0
      %3588 = vmatpush1.xpose.msra.mxu0 0.0
      %3589 = vmatprep.subr.mxu0 0.0
      %3590 = vmatpush1.xpose.msra.mxu0 0.0
      %3591 = vmatprep.subr.mxu0 0.0
      %3592 = vmatpush1.xpose.msra.mxu0 0.0
      %3593 = vmatprep.subr.mxu0 0.0
      %3594 = vmatpush1.xpose.msra.mxu0 0.0
      %3595 = vmatprep.subr.mxu0 0.0
      %3596 = vmatpush1.xpose.msra.mxu0 0.0
      %3597 = vmatprep.subr.mxu0 0.0
      %3598 = vmatpush1.xpose.msra.mxu0 0.0
      %3599 = vmatprep.subr.mxu0 0.0
      %3600 = vmatpush1.xpose.msra.mxu0 0.0
      %3601 = vmatprep.subr.mxu0 0.0
      %3602 = vmatpush1.xpose.msra.mxu0 0.0
      %3603 = vmatprep.subr.mxu0 0.0
      %3604 = vmatpush1.xpose.msra.mxu0 0.0
      %3605 = vmatprep.subr.mxu0 0.0
      %3606 = vmatpush1.xpose.msra.mxu0 0.0
      %3607 = vmatprep.subr.mxu0 0.0
      %3608 = vmatpush1.xpose.msra.mxu0 0.0
      %3609 = vmatprep.subr.mxu0 0.0
      %3610 = vmatpush1.xpose.msra.mxu0 0.0
      %3611 = vmatprep.subr.mxu0 0.0
      %3612 = vmatpush1.xpose.msra.mxu0 0.0
      %3613 = vmatprep.mubr.f32.mxu0 0.0
      %3614 = vmatmul.mubr.f32.gmra.mrb[0].mxu0 %v3545
      %v3615 = vpop.f32.mrb[0].mxu0
      %v3616 = vadd.f32 0.0, %v3615
      %v3617 = vpop.f32.mrb[0].mxu0
      %3618 = vdwg.mxu0
      %3619 = vrot.lane.b32.xlu0 %v2781, 112
      %v3620 = vpop.permute.xlu0 %3619
      %3621 = vrot.lane.b32.xlu0 %v2873, 112
      %v3622 = vpop.permute.xlu0 %3621
      %v3623 = vsel %vm1187, %v3620, 0
      %v3625 = vsel %vm1187, %v3622, 0
      %3627 = vmatprep.subr.mxu0 0.0
      %3628 = vmatpush1.xpose.msra.mxu0 %v3625
      %3629 = vmatprep.subr.mxu0 0.0
      %3630 = vmatpush1.xpose.msra.mxu0 0.0
      %3631 = vmatprep.subr.mxu0 0.0
      %3632 = vmatpush1.xpose.msra.mxu0 0.0
      %3633 = vmatprep.subr.mxu0 0.0
      %3634 = vmatpush1.xpose.msra.mxu0 0.0
      %3635 = vmatprep.subr.mxu0 0.0
      %3636 = vmatpush1.xpose.msra.mxu0 0.0
      %3637 = vmatprep.subr.mxu0 0.0
      %3638 = vmatpush1.xpose.msra.mxu0 0.0
      %3639 = vmatprep.subr.mxu0 0.0
      %3640 = vmatpush1.xpose.msra.mxu0 0.0
      %3641 = vmatprep.subr.mxu0 0.0
      %3642 = vmatpush1.xpose.msra.mxu0 0.0
      %3643 = vmatprep.subr.mxu0 0.0
      %3644 = vmatpush1.xpose.msra.mxu0 0.0
      %3645 = vmatprep.subr.mxu0 0.0
      %3646 = vmatpush1.xpose.msra.mxu0 0.0
      %3647 = vmatprep.subr.mxu0 0.0
      %3648 = vmatpush1.xpose.msra.mxu0 0.0
      %3649 = vmatprep.subr.mxu0 0.0
      %3650 = vmatpush1.xpose.msra.mxu0 0.0
      %3651 = vmatprep.subr.mxu0 0.0
      %3652 = vmatpush1.xpose.msra.mxu0 0.0
      %3653 = vmatprep.subr.mxu0 0.0
      %3654 = vmatpush1.xpose.msra.mxu0 0.0
      %3655 = vmatprep.subr.mxu0 0.0
      %3656 = vmatpush1.xpose.msra.mxu0 0.0
      %3657 = vmatprep.subr.mxu0 0.0
      %3658 = vmatpush1.xpose.msra.mxu0 0.0
      %3659 = vmatprep.subr.mxu0 0.0
      %3660 = vmatpush1.xpose.msra.mxu0 0.0
      %3661 = vmatprep.subr.mxu0 0.0
      %3662 = vmatpush1.xpose.msra.mxu0 0.0
      %3663 = vmatprep.subr.mxu0 0.0
      %3664 = vmatpush1.xpose.msra.mxu0 0.0
      %3665 = vmatprep.subr.mxu0 0.0
      %3666 = vmatpush1.xpose.msra.mxu0 0.0
      %3667 = vmatprep.subr.mxu0 0.0
      %3668 = vmatpush1.xpose.msra.mxu0 0.0
      %3669 = vmatprep.subr.mxu0 0.0
      %3670 = vmatpush1.xpose.msra.mxu0 0.0
      %3671 = vmatprep.subr.mxu0 0.0
      %3672 = vmatpush1.xpose.msra.mxu0 0.0
      %3673 = vmatprep.subr.mxu0 0.0
      %3674 = vmatpush1.xpose.msra.mxu0 0.0
      %3675 = vmatprep.subr.mxu0 0.0
      %3676 = vmatpush1.xpose.msra.mxu0 0.0
      %3677 = vmatprep.subr.mxu0 0.0
      %3678 = vmatpush1.xpose.msra.mxu0 0.0
      %3679 = vmatprep.subr.mxu0 0.0
      %3680 = vmatpush1.xpose.msra.mxu0 0.0
      %3681 = vmatprep.subr.mxu0 0.0
      %3682 = vmatpush1.xpose.msra.mxu0 0.0
      %3683 = vmatprep.subr.mxu0 0.0
      %3684 = vmatpush1.xpose.msra.mxu0 0.0
      %3685 = vmatprep.subr.mxu0 0.0
      %3686 = vmatpush1.xpose.msra.mxu0 0.0
      %3687 = vmatprep.subr.mxu0 0.0
      %3688 = vmatpush1.xpose.msra.mxu0 0.0
      %3689 = vmatprep.subr.mxu0 0.0
      %3690 = vmatpush1.xpose.msra.mxu0 0.0
      %3691 = vmatprep.mubr.f32.mxu0 0.0
      %3692 = vmatmul.mubr.f32.gmra.mrb[0].mxu0 %v3623
      %v3693 = vpop.f32.mrb[0].mxu0
      %v3694 = vadd.f32 0.0, %v3693
      %v3695 = vpop.f32.mrb[0].mxu0
      %3696 = vdwg.mxu0
      %v3697 = vmul.f32 %v3616, 0.35355338
      %v3698 = vmul.f32 %v3694, 0.35355338
      %v3699 = vadd.f32 %v3697, %v2876
      %v3700 = vadd.f32 %v3698, %v2876
      %v3701 = vsel %vm1187, %v3699, -inf
      %3702 = vmax.xlane.f32.xlu0 %v3701
      %v3703 = vpop.xlane.xlu0 %3702
      %v3704 = vsel %vm1187, %v3700, -inf
      %3705 = vmax.xlane.f32.xlu0 %v3704
      %v3706 = vpop.xlane.xlu0 %3705
      %v3707 = vsub.f32 %v3699, %v3703
      %v3708 = vsub.f32 %v3700, %v3706
      %v3709 = vmul.f32 %v3707, 1.442695
      %v3710 = vpow.pop %v3709
      %v3711 = vmul.f32 %v3708, 1.442695
      %v3712 = vpow.pop %v3711
      %v3713 = vsel %vm1187, %v3710, 0.0
      %3714 = vadd.xlane.f32.xlu0 %v3713
      %v3715 = vpop.xlane.xlu0 %3714
      %v3716 = vsel %vm1187, %v3712, 0.0
      %3717 = vadd.xlane.f32.xlu0 %v3716
      %v3718 = vpop.xlane.xlu0 %3717
      %v3719 = vrcp.pop %v3715
      %v3720 = vrcp.pop %v3718
      %v3721 = vmul.f32 %v3710, %v3719
      %v3722 = vmul.f32 %v3712, %v3720
      %3723 = vrot.lane.b32.xlu0 %v2868, 80
      %v3724 = vpop.permute.xlu0 %3723
      %v3727 = vsel %vm1187, %v3721, 0
      %3729 = vmatprep.subr.mxu0 0.0
      %3730 = vmatpush1.msra.mxu0 %v3724
      %3731 = vmatprep.subr.mxu0 0.0
      %3732 = vmatpush1.msra.mxu0 0.0
      %3733 = vmatprep.subr.mxu0 0.0
      %3734 = vmatpush1.msra.mxu0 0.0
      %3735 = vmatprep.subr.mxu0 0.0
      %3736 = vmatpush1.msra.mxu0 0.0
      %3737 = vmatprep.subr.mxu0 0.0
      %3738 = vmatpush1.msra.mxu0 0.0
      %3739 = vmatprep.subr.mxu0 0.0
      %3740 = vmatpush1.msra.mxu0 0.0
      %3741 = vmatprep.subr.mxu0 0.0
      %3742 = vmatpush1.msra.mxu0 0.0
      %3743 = vmatprep.subr.mxu0 0.0
      %3744 = vmatpush1.msra.mxu0 0.0
      %3745 = vmatprep.subr.mxu0 0.0
      %3746 = vmatpush1.msra.mxu0 0.0
      %3747 = vmatprep.subr.mxu0 0.0
      %3748 = vmatpush1.msra.mxu0 0.0
      %3749 = vmatprep.subr.mxu0 0.0
      %3750 = vmatpush1.msra.mxu0 0.0
      %3751 = vmatprep.subr.mxu0 0.0
      %3752 = vmatpush1.msra.mxu0 0.0
      %3753 = vmatprep.subr.mxu0 0.0
      %3754 = vmatpush1.msra.mxu0 0.0
      %3755 = vmatprep.subr.mxu0 0.0
      %3756 = vmatpush1.msra.mxu0 0.0
      %3757 = vmatprep.subr.mxu0 0.0
      %3758 = vmatpush1.msra.mxu0 0.0
      %3759 = vmatprep.subr.mxu0 0.0
      %3760 = vmatpush1.msra.mxu0 0.0
      %3761 = vmatprep.subr.mxu0 0.0
      %3762 = vmatpush1.msra.mxu0 0.0
      %3763 = vmatprep.subr.mxu0 0.0
      %3764 = vmatpush1.msra.mxu0 0.0
      %3765 = vmatprep.subr.mxu0 0.0
      %3766 = vmatpush1.msra.mxu0 0.0
      %3767 = vmatprep.subr.mxu0 0.0
      %3768 = vmatpush1.msra.mxu0 0.0
      %3769 = vmatprep.subr.mxu0 0.0
      %3770 = vmatpush1.msra.mxu0 0.0
      %3771 = vmatprep.subr.mxu0 0.0
      %3772 = vmatpush1.msra.mxu0 0.0
      %3773 = vmatprep.subr.mxu0 0.0
      %3774 = vmatpush1.msra.mxu0 0.0
      %3775 = vmatprep.subr.mxu0 0.0
      %3776 = vmatpush1.msra.mxu0 0.0
      %3777 = vmatprep.subr.mxu0 0.0
      %3778 = vmatpush1.msra.mxu0 0.0
      %3779 = vmatprep.subr.mxu0 0.0
      %3780 = vmatpush1.msra.mxu0 0.0
      %3781 = vmatprep.subr.mxu0 0.0
      %3782 = vmatpush1.msra.mxu0 0.0
      %3783 = vmatprep.subr.mxu0 0.0
      %3784 = vmatpush1.msra.mxu0 0.0
      %3785 = vmatprep.subr.mxu0 0.0
      %3786 = vmatpush1.msra.mxu0 0.0
      %3787 = vmatprep.subr.mxu0 0.0
      %3788 = vmatpush1.msra.mxu0 0.0
      %3789 = vmatprep.subr.mxu0 0.0
      %3790 = vmatpush1.msra.mxu0 0.0
      %3791 = vmatprep.subr.mxu0 0.0
      %3792 = vmatpush1.msra.mxu0 0.0
      %3793 = vmatprep.mubr.f32.mxu0 0.0
      %3794 = vmatmul.mubr.f32.gmra.mrb[0].mxu0 %v3727
      %v3795 = vpop.f32.mrb[0].mxu0
      %v3796 = vadd.f32 0.0, %v3795
      %v3797 = vpop.f32.mrb[0].mxu0
      %3798 = vdwg.mxu0
      %3799 = vrot.lane.b32.xlu0 %v2873, 80
      %v3800 = vpop.permute.xlu0 %3799
      %v3803 = vsel %vm1187, %v3722, 0
      %3805 = vmatprep.subr.mxu0 0.0
      %3806 = vmatpush1.msra.mxu0 %v3800
      %3807 = vmatprep.subr.mxu0 0.0
      %3808 = vmatpush1.msra.mxu0 0.0
      %3809 = vmatprep.subr.mxu0 0.0
      %3810 = vmatpush1.msra.mxu0 0.0
      %3811 = vmatprep.subr.mxu0 0.0
      %3812 = vmatpush1.msra.mxu0 0.0
      %3813 = vmatprep.subr.mxu0 0.0
      %3814 = vmatpush1.msra.mxu0 0.0
      %3815 = vmatprep.subr.mxu0 0.0
      %3816 = vmatpush1.msra.mxu0 0.0
      %3817 = vmatprep.subr.mxu0 0.0
      %3818 = vmatpush1.msra.mxu0 0.0
      %3819 = vmatprep.subr.mxu0 0.0
      %3820 = vmatpush1.msra.mxu0 0.0
      %3821 = vmatprep.subr.mxu0 0.0
      %3822 = vmatpush1.msra.mxu0 0.0
      %3823 = vmatprep.subr.mxu0 0.0
      %3824 = vmatpush1.msra.mxu0 0.0
      %3825 = vmatprep.subr.mxu0 0.0
      %3826 = vmatpush1.msra.mxu0 0.0
      %3827 = vmatprep.subr.mxu0 0.0
      %3828 = vmatpush1.msra.mxu0 0.0
      %3829 = vmatprep.subr.mxu0 0.0
      %3830 = vmatpush1.msra.mxu0 0.0
      %3831 = vmatprep.subr.mxu0 0.0
      %3832 = vmatpush1.msra.mxu0 0.0
      %3833 = vmatprep.subr.mxu0 0.0
      %3834 = vmatpush1.msra.mxu0 0.0
      %3835 = vmatprep.subr.mxu0 0.0
      %3836 = vmatpush1.msra.mxu0 0.0
      %3837 = vmatprep.subr.mxu0 0.0
      %3838 = vmatpush1.msra.mxu0 0.0
      %3839 = vmatprep.subr.mxu0 0.0
      %3840 = vmatpush1.msra.mxu0 0.0
      %3841 = vmatprep.subr.mxu0 0.0
      %3842 = vmatpush1.msra.mxu0 0.0
      %3843 = vmatprep.subr.mxu0 0.0
      %3844 = vmatpush1.msra.mxu0 0.0
      %3845 = vmatprep.subr.mxu0 0.0
      %3846 = vmatpush1.msra.mxu0 0.0
      %3847 = vmatprep.subr.mxu0 0.0
      %3848 = vmatpush1.msra.mxu0 0.0
      %3849 = vmatprep.subr.mxu0 0.0
      %3850 = vmatpush1.msra.mxu0 0.0
      %3851 = vmatprep.subr.mxu0 0.0
      %3852 = vmatpush1.msra.mxu0 0.0
      %3853 = vmatprep.subr.mxu0 0.0
      %3854 = vmatpush1.msra.mxu0 0.0
      %3855 = vmatprep.subr.mxu0 0.0
      %3856 = vmatpush1.msra.mxu0 0.0
      %3857 = vmatprep.subr.mxu0 0.0
      %3858 = vmatpush1.msra.mxu0 0.0
      %3859 = vmatprep.subr.mxu0 0.0
      %3860 = vmatpush1.msra.mxu0 0.0
      %3861 = vmatprep.subr.mxu0 0.0
      %3862 = vmatpush1.msra.mxu0 0.0
      %3863 = vmatprep.subr.mxu0 0.0
      %3864 = vmatpush1.msra.mxu0 0.0
      %3865 = vmatprep.subr.mxu0 0.0
      %3866 = vmatpush1.msra.mxu0 0.0
      %3867 = vmatprep.subr.mxu0 0.0
      %3868 = vmatpush1.msra.mxu0 0.0
      %3869 = vmatprep.mubr.f32.mxu0 0.0
      %3870 = vmatmul.mubr.f32.gmra.mrb[0].mxu0 %v3803
      %v3871 = vpop.f32.mrb[0].mxu0
      %v3872 = vadd.f32 0.0, %v3871
      %v3873 = vpop.f32.mrb[0].mxu0
      %3874 = vdwg.mxu0
      %3875 = vrot.lane.b32.xlu0 %v2776, 104
      %v3876 = vpop.permute.xlu0 %3875
      %3877 = vrot.lane.b32.xlu0 %v2868, 104
      %v3878 = vpop.permute.xlu0 %3877
      %v3879 = vsel %vm1187, %v3876, 0
      %v3881 = vsel %vm1187, %v3878, 0
      %3883 = vmatprep.subr.mxu0 0.0
      %3884 = vmatpush1.xpose.msra.mxu0 %v3881
      %3885 = vmatprep.subr.mxu0 0.0
      %3886 = vmatpush1.xpose.msra.mxu0 0.0
      %3887 = vmatprep.subr.mxu0 0.0
      %3888 = vmatpush1.xpose.msra.mxu0 0.0
      %3889 = vmatprep.subr.mxu0 0.0
      %3890 = vmatpush1.xpose.msra.mxu0 0.0
      %3891 = vmatprep.subr.mxu0 0.0
      %3892 = vmatpush1.xpose.msra.mxu0 0.0
      %3893 = vmatprep.subr.mxu0 0.0
      %3894 = vmatpush1.xpose.msra.mxu0 0.0
      %3895 = vmatprep.subr.mxu0 0.0
      %3896 = vmatpush1.xpose.msra.mxu0 0.0
      %3897 = vmatprep.subr.mxu0 0.0
      %3898 = vmatpush1.xpose.msra.mxu0 0.0
      %3899 = vmatprep.subr.mxu0 0.0
      %3900 = vmatpush1.xpose.msra.mxu0 0.0
      %3901 = vmatprep.subr.mxu0 0.0
      %3902 = vmatpush1.xpose.msra.mxu0 0.0
      %3903 = vmatprep.subr.mxu0 0.0
      %3904 = vmatpush1.xpose.msra.mxu0 0.0
      %3905 = vmatprep.subr.mxu0 0.0
      %3906 = vmatpush1.xpose.msra.mxu0 0.0
      %3907 = vmatprep.subr.mxu0 0.0
      %3908 = vmatpush1.xpose.msra.mxu0 0.0
      %3909 = vmatprep.subr.mxu0 0.0
      %3910 = vmatpush1.xpose.msra.mxu0 0.0
      %3911 = vmatprep.subr.mxu0 0.0
      %3912 = vmatpush1.xpose.msra.mxu0 0.0
      %3913 = vmatprep.subr.mxu0 0.0
      %3914 = vmatpush1.xpose.msra.mxu0 0.0
      %3915 = vmatprep.subr.mxu0 0.0
      %3916 = vmatpush1.xpose.msra.mxu0 0.0
      %3917 = vmatprep.subr.mxu0 0.0
      %3918 = vmatpush1.xpose.msra.mxu0 0.0
      %3919 = vmatprep.subr.mxu0 0.0
      %3920 = vmatpush1.xpose.msra.mxu0 0.0
      %3921 = vmatprep.subr.mxu0 0.0
      %3922 = vmatpush1.xpose.msra.mxu0 0.0
      %3923 = vmatprep.subr.mxu0 0.0
      %3924 = vmatpush1.xpose.msra.mxu0 0.0
      %3925 = vmatprep.subr.mxu0 0.0
      %3926 = vmatpush1.xpose.msra.mxu0 0.0
      %3927 = vmatprep.subr.mxu0 0.0
      %3928 = vmatpush1.xpose.msra.mxu0 0.0
      %3929 = vmatprep.subr.mxu0 0.0
      %3930 = vmatpush1.xpose.msra.mxu0 0.0
      %3931 = vmatprep.subr.mxu0 0.0
      %3932 = vmatpush1.xpose.msra.mxu0 0.0
      %3933 = vmatprep.subr.mxu0 0.0
      %3934 = vmatpush1.xpose.msra.mxu0 0.0
      %3935 = vmatprep.subr.mxu0 0.0
      %3936 = vmatpush1.xpose.msra.mxu0 0.0
      %3937 = vmatprep.subr.mxu0 0.0
      %3938 = vmatpush1.xpose.msra.mxu0 0.0
      %3939 = vmatprep.subr.mxu0 0.0
      %3940 = vmatpush1.xpose.msra.mxu0 0.0
      %3941 = vmatprep.subr.mxu0 0.0
      %3942 = vmatpush1.xpose.msra.mxu0 0.0
      %3943 = vmatprep.subr.mxu0 0.0
      %3944 = vmatpush1.xpose.msra.mxu0 0.0
      %3945 = vmatprep.subr.mxu0 0.0
      %3946 = vmatpush1.xpose.msra.mxu0 0.0
      %3947 = vmatprep.mubr.f32.mxu0 0.0
      %3948 = vmatmul.mubr.f32.gmra.mrb[0].mxu0 %v3879
      %v3949 = vpop.f32.mrb[0].mxu0
      %v3950 = vadd.f32 0.0, %v3949
      %v3951 = vpop.f32.mrb[0].mxu0
      %3952 = vdwg.mxu0
      %3953 = vrot.lane.b32.xlu0 %v2781, 104
      %v3954 = vpop.permute.xlu0 %3953
      %3955 = vrot.lane.b32.xlu0 %v2873, 104
      %v3956 = vpop.permute.xlu0 %3955
      %v3957 = vsel %vm1187, %v3954, 0
      %v3959 = vsel %vm1187, %v3956, 0
      %3961 = vmatprep.subr.mxu0 0.0
      %3962 = vmatpush1.xpose.msra.mxu0 %v3959
      %3963 = vmatprep.subr.mxu0 0.0
      %3964 = vmatpush1.xpose.msra.mxu0 0.0
      %3965 = vmatprep.subr.mxu0 0.0
      %3966 = vmatpush1.xpose.msra.mxu0 0.0
      %3967 = vmatprep.subr.mxu0 0.0
      %3968 = vmatpush1.xpose.msra.mxu0 0.0
      %3969 = vmatprep.subr.mxu0 0.0
      %3970 = vmatpush1.xpose.msra.mxu0 0.0
      %3971 = vmatprep.subr.mxu0 0.0
      %3972 = vmatpush1.xpose.msra.mxu0 0.0
      %3973 = vmatprep.subr.mxu0 0.0
      %3974 = vmatpush1.xpose.msra.mxu0 0.0
      %3975 = vmatprep.subr.mxu0 0.0
      %3976 = vmatpush1.xpose.msra.mxu0 0.0
      %3977 = vmatprep.subr.mxu0 0.0
      %3978 = vmatpush1.xpose.msra.mxu0 0.0
      %3979 = vmatprep.subr.mxu0 0.0
      %3980 = vmatpush1.xpose.msra.mxu0 0.0
      %3981 = vmatprep.subr.mxu0 0.0
      %3982 = vmatpush1.xpose.msra.mxu0 0.0
      %3983 = vmatprep.subr.mxu0 0.0
      %3984 = vmatpush1.xpose.msra.mxu0 0.0
      %3985 = vmatprep.subr.mxu0 0.0
      %3986 = vmatpush1.xpose.msra.mxu0 0.0
      %3987 = vmatprep.subr.mxu0 0.0
      %3988 = vmatpush1.xpose.msra.mxu0 0.0
      %3989 = vmatprep.subr.mxu0 0.0
      %3990 = vmatpush1.xpose.msra.mxu0 0.0
      %3991 = vmatprep.subr.mxu0 0.0
      %3992 = vmatpush1.xpose.msra.mxu0 0.0
      %3993 = vmatprep.subr.mxu0 0.0
      %3994 = vmatpush1.xpose.msra.mxu0 0.0
      %3995 = vmatprep.subr.mxu0 0.0
      %3996 = vmatpush1.xpose.msra.mxu0 0.0
      %3997 = vmatprep.subr.mxu0 0.0
      %3998 = vmatpush1.xpose.msra.mxu0 0.0
      %3999 = vmatprep.subr.mxu0 0.0
      %4000 = vmatpush1.xpose.msra.mxu0 0.0
      %4001 = vmatprep.subr.mxu0 0.0
      %4002 = vmatpush1.xpose.msra.mxu0 0.0
      %4003 = vmatprep.subr.mxu0 0.0
      %4004 = vmatpush1.xpose.msra.mxu0 0.0
      %4005 = vmatprep.subr.mxu0 0.0
      %4006 = vmatpush1.xpose.msra.mxu0 0.0
      %4007 = vmatprep.subr.mxu0 0.0
      %4008 = vmatpush1.xpose.msra.mxu0 0.0
      %4009 = vmatprep.subr.mxu0 0.0
      %4010 = vmatpush1.xpose.msra.mxu0 0.0
      %4011 = vmatprep.subr.mxu0 0.0
      %4012 = vmatpush1.xpose.msra.mxu0 0.0
      %4013 = vmatprep.subr.mxu0 0.0
      %4014 = vmatpush1.xpose.msra.mxu0 0.0
      %4015 = vmatprep.subr.mxu0 0.0
      %4016 = vmatpush1.xpose.msra.mxu0 0.0
      %4017 = vmatprep.subr.mxu0 0.0
      %4018 = vmatpush1.xpose.msra.mxu0 0.0
      %4019 = vmatprep.subr.mxu0 0.0
      %4020 = vmatpush1.xpose.msra.mxu0 0.0
      %4021 = vmatprep.subr.mxu0 0.0
      %4022 = vmatpush1.xpose.msra.mxu0 0.0
      %4023 = vmatprep.subr.mxu0 0.0
      %4024 = vmatpush1.xpose.msra.mxu0 0.0
      %4025 = vmatprep.mubr.f32.mxu0 0.0
      %4026 = vmatmul.mubr.f32.gmra.mrb[0].mxu0 %v3957
      %v4027 = vpop.f32.mrb[0].mxu0
      %v4028 = vadd.f32 0.0, %v4027
      %v4029 = vpop.f32.mrb[0].mxu0
      %4030 = vdwg.mxu0
      %v4031 = vmul.f32 %v3950, 0.35355338
      %v4032 = vmul.f32 %v4028, 0.35355338
      %v4033 = vadd.f32 %v4031, %v2876
      %v4034 = vadd.f32 %v4032, %v2876
      %v4035 = vsel %vm1187, %v4033, -inf
      %4036 = vmax.xlane.f32.xlu0 %v4035
      %v4037 = vpop.xlane.xlu0 %4036
      %v4038 = vsel %vm1187, %v4034, -inf
      %4039 = vmax.xlane.f32.xlu0 %v4038
      %v4040 = vpop.xlane.xlu0 %4039
      %v4041 = vsub.f32 %v4033, %v4037
      %v4042 = vsub.f32 %v4034, %v4040
      %v4043 = vmul.f32 %v4041, 1.442695
      %v4044 = vpow.pop %v4043
      %v4045 = vmul.f32 %v4042, 1.442695
      %v4046 = vpow.pop %v4045
      %v4047 = vsel %vm1187, %v4044, 0.0
      %4048 = vadd.xlane.f32.xlu0 %v4047
      %v4049 = vpop.xlane.xlu0 %4048
      %v4050 = vsel %vm1187, %v4046, 0.0
      %4051 = vadd.xlane.f32.xlu0 %v4050
      %v4052 = vpop.xlane.xlu0 %4051
      %v4053 = vrcp.pop %v4049
      %v4054 = vrcp.pop %v4052
      %v4055 = vmul.f32 %v4044, %v4053
      %v4056 = vmul.f32 %v4046, %v4054
      %4057 = vrot.lane.b32.xlu0 %v2868, 72
      %v4058 = vpop.permute.xlu0 %4057
      %v4061 = vsel %vm1187, %v4055, 0
      %4063 = vmatprep.subr.mxu0 0.0
      %4064 = vmatpush1.msra.mxu0 %v4058
      %4065 = vmatprep.subr.mxu0 0.0
      %4066 = vmatpush1.msra.mxu0 0.0
      %4067 = vmatprep.subr.mxu0 0.0
      %4068 = vmatpush1.msra.mxu0 0.0
      %4069 = vmatprep.subr.mxu0 0.0
      %4070 = vmatpush1.msra.mxu0 0.0
      %4071 = vmatprep.subr.mxu0 0.0
      %4072 = vmatpush1.msra.mxu0 0.0
      %4073 = vmatprep.subr.mxu0 0.0
      %4074 = vmatpush1.msra.mxu0 0.0
      %4075 = vmatprep.subr.mxu0 0.0
      %4076 = vmatpush1.msra.mxu0 0.0
      %4077 = vmatprep.subr.mxu0 0.0
      %4078 = vmatpush1.msra.mxu0 0.0
      %4079 = vmatprep.subr.mxu0 0.0
      %4080 = vmatpush1.msra.mxu0 0.0
      %4081 = vmatprep.subr.mxu0 0.0
      %4082 = vmatpush1.msra.mxu0 0.0
      %4083 = vmatprep.subr.mxu0 0.0
      %4084 = vmatpush1.msra.mxu0 0.0
      %4085 = vmatprep.subr.mxu0 0.0
      %4086 = vmatpush1.msra.mxu0 0.0
      %4087 = vmatprep.subr.mxu0 0.0
      %4088 = vmatpush1.msra.mxu0 0.0
      %4089 = vmatprep.subr.mxu0 0.0
      %4090 = vmatpush1.msra.mxu0 0.0
      %4091 = vmatprep.subr.mxu0 0.0
      %4092 = vmatpush1.msra.mxu0 0.0
      %4093 = vmatprep.subr.mxu0 0.0
      %4094 = vmatpush1.msra.mxu0 0.0
      %4095 = vmatprep.subr.mxu0 0.0
      %4096 = vmatpush1.msra.mxu0 0.0
      %4097 = vmatprep.subr.mxu0 0.0
      %4098 = vmatpush1.msra.mxu0 0.0
      %4099 = vmatprep.subr.mxu0 0.0
      %4100 = vmatpush1.msra.mxu0 0.0
      %4101 = vmatprep.subr.mxu0 0.0
      %4102 = vmatpush1.msra.mxu0 0.0
      %4103 = vmatprep.subr.mxu0 0.0
      %4104 = vmatpush1.msra.mxu0 0.0
      %4105 = vmatprep.subr.mxu0 0.0
      %4106 = vmatpush1.msra.mxu0 0.0
      %4107 = vmatprep.subr.mxu0 0.0
      %4108 = vmatpush1.msra.mxu0 0.0
      %4109 = vmatprep.subr.mxu0 0.0
      %4110 = vmatpush1.msra.mxu0 0.0
      %4111 = vmatprep.subr.mxu0 0.0
      %4112 = vmatpush1.msra.mxu0 0.0
      %4113 = vmatprep.subr.mxu0 0.0
      %4114 = vmatpush1.msra.mxu0 0.0
      %4115 = vmatprep.subr.mxu0 0.0
      %4116 = vmatpush1.msra.mxu0 0.0
      %4117 = vmatprep.subr.mxu0 0.0
      %4118 = vmatpush1.msra.mxu0 0.0
      %4119 = vmatprep.subr.mxu0 0.0
      %4120 = vmatpush1.msra.mxu0 0.0
      %4121 = vmatprep.subr.mxu0 0.0
      %4122 = vmatpush1.msra.mxu0 0.0
      %4123 = vmatprep.subr.mxu0 0.0
      %4124 = vmatpush1.msra.mxu0 0.0
      %4125 = vmatprep.subr.mxu0 0.0
      %4126 = vmatpush1.msra.mxu0 0.0
      %4127 = vmatprep.mubr.f32.mxu0 0.0
      %4128 = vmatmul.mubr.f32.gmra.mrb[0].mxu0 %v4061
      %v4129 = vpop.f32.mrb[0].mxu0
      %v4130 = vadd.f32 0.0, %v4129
      %v4131 = vpop.f32.mrb[0].mxu0
      %4132 = vdwg.mxu0
      %4133 = vrot.lane.b32.xlu0 %v2873, 72
      %v4134 = vpop.permute.xlu0 %4133
      %v4137 = vsel %vm1187, %v4056, 0
      %4139 = vmatprep.subr.mxu0 0.0
      %4140 = vmatpush1.msra.mxu0 %v4134
      %4141 = vmatprep.subr.mxu0 0.0
      %4142 = vmatpush1.msra.mxu0 0.0
      %4143 = vmatprep.subr.mxu0 0.0
      %4144 = vmatpush1.msra.mxu0 0.0
      %4145 = vmatprep.subr.mxu0 0.0
      %4146 = vmatpush1.msra.mxu0 0.0
      %4147 = vmatprep.subr.mxu0 0.0
      %4148 = vmatpush1.msra.mxu0 0.0
      %4149 = vmatprep.subr.mxu0 0.0
      %4150 = vmatpush1.msra.mxu0 0.0
      %4151 = vmatprep.subr.mxu0 0.0
      %4152 = vmatpush1.msra.mxu0 0.0
      %4153 = vmatprep.subr.mxu0 0.0
      %4154 = vmatpush1.msra.mxu0 0.0
      %4155 = vmatprep.subr.mxu0 0.0
      %4156 = vmatpush1.msra.mxu0 0.0
      %4157 = vmatprep.subr.mxu0 0.0
      %4158 = vmatpush1.msra.mxu0 0.0
      %4159 = vmatprep.subr.mxu0 0.0
      %4160 = vmatpush1.msra.mxu0 0.0
      %4161 = vmatprep.subr.mxu0 0.0
      %4162 = vmatpush1.msra.mxu0 0.0
      %4163 = vmatprep.subr.mxu0 0.0
      %4164 = vmatpush1.msra.mxu0 0.0
      %4165 = vmatprep.subr.mxu0 0.0
      %4166 = vmatpush1.msra.mxu0 0.0
      %4167 = vmatprep.subr.mxu0 0.0
      %4168 = vmatpush1.msra.mxu0 0.0
      %4169 = vmatprep.subr.mxu0 0.0
      %4170 = vmatpush1.msra.mxu0 0.0
      %4171 = vmatprep.subr.mxu0 0.0
      %4172 = vmatpush1.msra.mxu0 0.0
      %4173 = vmatprep.subr.mxu0 0.0
      %4174 = vmatpush1.msra.mxu0 0.0
      %4175 = vmatprep.subr.mxu0 0.0
      %4176 = vmatpush1.msra.mxu0 0.0
      %4177 = vmatprep.subr.mxu0 0.0
      %4178 = vmatpush1.msra.mxu0 0.0
      %4179 = vmatprep.subr.mxu0 0.0
      %4180 = vmatpush1.msra.mxu0 0.0
      %4181 = vmatprep.subr.mxu0 0.0
      %4182 = vmatpush1.msra.mxu0 0.0
      %4183 = vmatprep.subr.mxu0 0.0
      %4184 = vmatpush1.msra.mxu0 0.0
      %4185 = vmatprep.subr.mxu0 0.0
      %4186 = vmatpush1.msra.mxu0 0.0
      %4187 = vmatprep.subr.mxu0 0.0
      %4188 = vmatpush1.msra.mxu0 0.0
      %4189 = vmatprep.subr.mxu0 0.0
      %4190 = vmatpush1.msra.mxu0 0.0
      %4191 = vmatprep.subr.mxu0 0.0
      %4192 = vmatpush1.msra.mxu0 0.0
      %4193 = vmatprep.subr.mxu0 0.0
      %4194 = vmatpush1.msra.mxu0 0.0
      %4195 = vmatprep.subr.mxu0 0.0
      %4196 = vmatpush1.msra.mxu0 0.0
      %4197 = vmatprep.subr.mxu0 0.0
      %4198 = vmatpush1.msra.mxu0 0.0
      %4199 = vmatprep.subr.mxu0 0.0
      %4200 = vmatpush1.msra.mxu0 0.0
      %4201 = vmatprep.subr.mxu0 0.0
      %4202 = vmatpush1.msra.mxu0 0.0
      %4203 = vmatprep.mubr.f32.mxu0 0.0
      %4204 = vmatmul.mubr.f32.gmra.mrb[0].mxu0 %v4137
      %v4205 = vpop.f32.mrb[0].mxu0
      %v4206 = vadd.f32 0.0, %v4205
      %v4207 = vpop.f32.mrb[0].mxu0
      %4208 = vdwg.mxu0
      %4211 = vrot.lane.b32.xlu0 %v3462, 8
      %v4212 = vpop.permute.xlu0 %4211
      %4213 = vrot.lane.b32.xlu0 %v3538, 8
      %v4214 = vpop.permute.xlu0 %4213
      %4219 = vrot.lane.b32.xlu0 %v3796, 16
      %v4220 = vpop.permute.xlu0 %4219
      %4221 = vrot.lane.b32.xlu0 %v3872, 16
      %v4222 = vpop.permute.xlu0 %4221
      %4227 = vrot.lane.b32.xlu0 %v4130, 24
      %v4228 = vpop.permute.xlu0 %4227
      %4229 = vrot.lane.b32.xlu0 %v4206, 24
      %v4230 = vpop.permute.xlu0 %4229
      %v4233 = vsel %vm1187, %v3128, %v4212
      %v4234 = vsel %vm1187, %v3204, %v4214
      %v4235 = vsel %vm2545, %v4233, %v4220
      %v4236 = vsel %vm2545, %v4234, %v4222
      %v4237 = vsel %vm2548, %v4235, %v4228
      %v4238 = vsel %vm2548, %v4236, %v4230
      %v4239 = vld [vmem:[%s1047] sm:$0xff]
      %v4240 = vld [vmem:[%s1047 + $0x8] sm:$0xff]
      %v4241 = vld [vmem:[%s1047 + $0x10] sm:$0xff]
      %v4242 = vld [vmem:[%s1047 + $0x18] sm:$0xff]
      %v4243 = vld [vmem:[%s1050] sm:$0x1]
      %v4245 = vlaneseq
      %v4246 = vshrl.u32 %v4245, 7
      %v4247 = vsub.s32 0, %v4246
      %v4248 = vrot.slane %v4243, %v4247
      %v4251 = vsel %vm1101, %v4237, 0
      %v4254 = vsel %vm1101, %v4238, 0
      %4256 = vmatprep.subr.mxu0 0.0
      %4257 = vmatpush1.msra.mxu0 %v4239
      %4258 = vmatprep.subr.mxu0 0.0
      %4259 = vmatpush1.msra.mxu0 %v4240
      %4260 = vmatprep.subr.mxu0 0.0
      %4261 = vmatpush1.msra.mxu0 %v4241
      %4262 = vmatprep.subr.mxu0 0.0
      %4263 = vmatpush1.msra.mxu0 %v4242
      %4264 = vmatprep.subr.mxu0 0.0
      %4265 = vmatpush1.msra.mxu0 0.0
      %4266 = vmatprep.subr.mxu0 0.0
      %4267 = vmatpush1.msra.mxu0 0.0
      %4268 = vmatprep.subr.mxu0 0.0
      %4269 = vmatpush1.msra.mxu0 0.0
      %4270 = vmatprep.subr.mxu0 0.0
      %4271 = vmatpush1.msra.mxu0 0.0
      %4272 = vmatprep.subr.mxu0 0.0
      %4273 = vmatpush1.msra.mxu0 0.0
      %4274 = vmatprep.subr.mxu0 0.0
      %4275 = vmatpush1.msra.mxu0 0.0
      %4276 = vmatprep.subr.mxu0 0.0
      %4277 = vmatpush1.msra.mxu0 0.0
      %4278 = vmatprep.subr.mxu0 0.0
      %4279 = vmatpush1.msra.mxu0 0.0
      %4280 = vmatprep.subr.mxu0 0.0
      %4281 = vmatpush1.msra.mxu0 0.0
      %4282 = vmatprep.subr.mxu0 0.0
      %4283 = vmatpush1.msra.mxu0 0.0
      %4284 = vmatprep.subr.mxu0 0.0
      %4285 = vmatpush1.msra.mxu0 0.0
      %4286 = vmatprep.subr.mxu0 0.0
      %4287 = vmatpush1.msra.mxu0 0.0
      %4288 = vmatprep.subr.mxu0 0.0
      %4289 = vmatpush1.msra.mxu0 0.0
      %4290 = vmatprep.subr.mxu0 0.0
      %4291 = vmatpush1.msra.mxu0 0.0
      %4292 = vmatprep.subr.mxu0 0.0
      %4293 = vmatpush1.msra.mxu0 0.0
      %4294 = vmatprep.subr.mxu0 0.0
      %4295 = vmatpush1.msra.mxu0 0.0
      %4296 = vmatprep.subr.mxu0 0.0
      %4297 = vmatpush1.msra.mxu0 0.0
      %4298 = vmatprep.subr.mxu0 0.0
      %4299 = vmatpush1.msra.mxu0 0.0
      %4300 = vmatprep.subr.mxu0 0.0
      %4301 = vmatpush1.msra.mxu0 0.0
      %4302 = vmatprep.subr.mxu0 0.0
      %4303 = vmatpush1.msra.mxu0 0.0
      %4304 = vmatprep.subr.mxu0 0.0
      %4305 = vmatpush1.msra.mxu0 0.0
      %4306 = vmatprep.subr.mxu0 0.0
      %4307 = vmatpush1.msra.mxu0 0.0
      %4308 = vmatprep.subr.mxu0 0.0
      %4309 = vmatpush1.msra.mxu0 0.0
      %4310 = vmatprep.subr.mxu0 0.0
      %4311 = vmatpush1.msra.mxu0 0.0
      %4312 = vmatprep.subr.mxu0 0.0
      %4313 = vmatpush1.msra.mxu0 0.0
      %4314 = vmatprep.subr.mxu0 0.0
      %4315 = vmatpush1.msra.mxu0 0.0
      %4316 = vmatprep.subr.mxu0 0.0
      %4317 = vmatpush1.msra.mxu0 0.0
      %4318 = vmatprep.subr.mxu0 0.0
      %4319 = vmatpush1.msra.mxu0 0.0
      %4320 = vmatprep.mubr.f32.mxu0 0.0
      %4321 = vmatmul.mubr.f32.gmra.mrb[0].mxu0 %v4251
      %v4322 = vpop.f32.mrb[0].mxu0
      %v4323 = vadd.f32 %v4248, %v4322
      %v4324 = vpop.f32.mrb[0].mxu0
      %4325 = vmatprep.mubr.f32.mxu0 0.0
      %4326 = vmatmul.mubr.f32.gmra.mrb[0].mxu0 %v4254
      %v4327 = vpop.f32.mrb[0].mxu0
      %v4328 = vadd.f32 %v4248, %v4327
      %v4329 = vpop.f32.mrb[0].mxu0
      %4330 = vdwg.mxu0
      %v4331 = vadd.f32 %v2688, %v4323
      %v4332 = vadd.f32 %v2689, %v4328
      %v4333 = vld [vmem:[%s1053] sm:$0x1]
      %v4334 = vld [vmem:[%s1056] sm:$0x1]
      %v4335 = vsel %vm1101, %v4331, 0.0
      %4336 = vadd.xlane.f32.xlu0 %v4335
      %v4337 = vpop.xlane.xlu0 %4336
      %v4338 = vsel %vm1101, %v4332, 0.0
      %4339 = vadd.xlane.f32.xlu0 %v4338
      %v4340 = vpop.xlane.xlu0 %4339
      %v4341 = vmul.f32 %v4337, %v2653
      %v4342 = vmul.f32 %v4340, %v2653
      %v4343 = vsub.f32 %v4331, %v4341
      %v4344 = vsub.f32 %v4332, %v4342
      %v4345 = vmul.f32 %v4343, %v4343
      %v4346 = vmul.f32 %v4344, %v4344
      %v4347 = vsel %vm1101, %v4345, 0.0
      %4348 = vadd.xlane.f32.xlu0 %v4347
      %v4349 = vpop.xlane.xlu0 %4348
      %v4350 = vsel %vm1101, %v4346, 0.0
      %4351 = vadd.xlane.f32.xlu0 %v4350
      %v4352 = vpop.xlane.xlu0 %4351
      %v4353 = vmul.f32 %v4349, %v2653
      %v4354 = vmul.f32 %v4352, %v2653
      %v4355 = vadd.f32 %v4353, 1e-05
      %v4356 = vadd.f32 %v4354, 1e-05
      %v4357 = vrsqrt.pop %v4355
      %v4358 = vrsqrt.pop %v4356
      %v4359 = vmul.f32 %v4343, %v4357
      %v4360 = vmul.f32 %v4344, %v4358
      %v4362 = vlaneseq
      %v4363 = vshrl.u32 %v4362, 7
      %v4364 = vsub.s32 0, %v4363
      %v4365 = vrot.slane %v4333, %v4364
      %v4367 = vmul.f32 %v4359, %v4365
      %v4368 = vmul.f32 %v4360, %v4365
      %v4370 = vlaneseq
      %v4371 = vshrl.u32 %v4370, 7
      %v4372 = vsub.s32 0, %v4371
      %v4373 = vrot.slane %v4334, %v4372
      %v4375 = vadd.f32 %v4367, %v4373
      %v4376 = vadd.f32 %v4368, %v4373
      %v4377 = vld [vmem:[%s1061] sm:$0xff]
      %v4378 = vld [vmem:[%s1061 + $0x8] sm:$0xff]
      %v4379 = vld [vmem:[%s1061 + $0x10] sm:$0xff]
      %v4380 = vld [vmem:[%s1061 + $0x18] sm:$0xff]
      %v4381 = vld [vmem:[%s1064] sm:$0x1]
      %v4383 = vlaneseq
      %v4384 = vshrl.u32 %v4383, 7
      %v4385 = vsub.s32 0, %v4384
      %v4386 = vrot.slane %v4381, %v4385
      %v4389 = vsel %vm1101, %v4375, 0
      %v4392 = vsel %vm1101, %v4376, 0
      %4394 = vmatprep.subr.mxu0 0.0
      %4395 = vmatpush1.msra.mxu0 %v4377
      %4396 = vmatprep.subr.mxu0 0.0
      %4397 = vmatpush1.msra.mxu0 %v4378
      %4398 = vmatprep.subr.mxu0 0.0
      %4399 = vmatpush1.msra.mxu0 %v4379
      %4400 = vmatprep.subr.mxu0 0.0
      %4401 = vmatpush1.msra.mxu0 %v4380
      %4402 = vmatprep.subr.mxu0 0.0
      %4403 = vmatpush1.msra.mxu0 0.0
      %4404 = vmatprep.subr.mxu0 0.0
      %4405 = vmatpush1.msra.mxu0 0.0
      %4406 = vmatprep.subr.mxu0 0.0
      %4407 = vmatpush1.msra.mxu0 0.0
      %4408 = vmatprep.subr.mxu0 0.0
      %4409 = vmatpush1.msra.mxu0 0.0
      %4410 = vmatprep.subr.mxu0 0.0
      %4411 = vmatpush1.msra.mxu0 0.0
      %4412 = vmatprep.subr.mxu0 0.0
      %4413 = vmatpush1.msra.mxu0 0.0
      %4414 = vmatprep.subr.mxu0 0.0
      %4415 = vmatpush1.msra.mxu0 0.0
      %4416 = vmatprep.subr.mxu0 0.0
      %4417 = vmatpush1.msra.mxu0 0.0
      %4418 = vmatprep.subr.mxu0 0.0
      %4419 = vmatpush1.msra.mxu0 0.0
      %4420 = vmatprep.subr.mxu0 0.0
      %4421 = vmatpush1.msra.mxu0 0.0
      %4422 = vmatprep.subr.mxu0 0.0
      %4423 = vmatpush1.msra.mxu0 0.0
      %4424 = vmatprep.subr.mxu0 0.0
      %4425 = vmatpush1.msra.mxu0 0.0
      %4426 = vmatprep.subr.mxu0 0.0
      %4427 = vmatpush1.msra.mxu0 0.0
      %4428 = vmatprep.subr.mxu0 0.0
      %4429 = vmatpush1.msra.mxu0 0.0
      %4430 = vmatprep.subr.mxu0 0.0
      %4431 = vmatpush1.msra.mxu0 0.0
      %4432 = vmatprep.subr.mxu0 0.0
      %4433 = vmatpush1.msra.mxu0 0.0
      %4434 = vmatprep.subr.mxu0 0.0
      %4435 = vmatpush1.msra.mxu0 0.0
      %4436 = vmatprep.subr.mxu0 0.0
      %4437 = vmatpush1.msra.mxu0 0.0
      %4438 = vmatprep.subr.mxu0 0.0
      %4439 = vmatpush1.msra.mxu0 0.0
      %4440 = vmatprep.subr.mxu0 0.0
      %4441 = vmatpush1.msra.mxu0 0.0
      %4442 = vmatprep.subr.mxu0 0.0
      %4443 = vmatpush1.msra.mxu0 0.0
      %4444 = vmatprep.subr.mxu0 0.0
      %4445 = vmatpush1.msra.mxu0 0.0
      %4446 = vmatprep.subr.mxu0 0.0
      %4447 = vmatpush1.msra.mxu0 0.0
      %4448 = vmatprep.subr.mxu0 0.0
      %4449 = vmatpush1.msra.mxu0 0.0
      %4450 = vmatprep.subr.mxu0 0.0
      %4451 = vmatpush1.msra.mxu0 0.0
      %4452 = vmatprep.subr.mxu0 0.0
      %4453 = vmatpush1.msra.mxu0 0.0
      %4454 = vmatprep.subr.mxu0 0.0
      %4455 = vmatpush1.msra.mxu0 0.0
      %4456 = vmatprep.subr.mxu0 0.0
      %4457 = vmatpush1.msra.mxu0 0.0
      %4458 = vmatprep.mubr.f32.mxu0 0.0
      %4459 = vmatmul.mubr.f32.gmra.mrb[0].mxu0 %v4389
      %v4460 = vpop.f32.mrb[0].mxu0
      %v4461 = vadd.f32 %v4386, %v4460
      %v4462 = vpop.f32.mrb[0].mxu0
      %4463 = vmatprep.mubr.f32.mxu0 0.0
      %4464 = vmatmul.mubr.f32.gmra.mrb[0].mxu0 %v4392
      %v4465 = vpop.f32.mrb[0].mxu0
      %v4466 = vadd.f32 %v4386, %v4465
      %v4467 = vpop.f32.mrb[0].mxu0
      %4468 = vdwg.mxu0
      %v4469 = vmax.f32 %v4461, 0.0
      %v4470 = vmax.f32 %v4466, 0.0
      %v4471 = vld [vmem:[%s1069] sm:$0xff]
      %v4472 = vld [vmem:[%s1069 + $0x8] sm:$0xff]
      %v4473 = vld [vmem:[%s1069 + $0x10] sm:$0xff]
      %v4474 = vld [vmem:[%s1069 + $0x18] sm:$0xff]
      %v4475 = vld [vmem:[%s1069 + $0x20] sm:$0xff]
      %v4476 = vld [vmem:[%s1069 + $0x28] sm:$0xff]
      %v4477 = vld [vmem:[%s1069 + $0x30] sm:$0xff]
      %v4478 = vld [vmem:[%s1069 + $0x38] sm:$0xff]
      %v4479 = vld [vmem:[%s1069 + $0x40] sm:$0xff]
      %v4480 = vld [vmem:[%s1069 + $0x48] sm:$0xff]
      %v4481 = vld [vmem:[%s1069 + $0x50] sm:$0xff]
      %v4482 = vld [vmem:[%s1069 + $0x58] sm:$0xff]
      %v4483 = vld [vmem:[%s1069 + $0x60] sm:$0xff]
      %v4484 = vld [vmem:[%s1069 + $0x68] sm:$0xff]
      %v4485 = vld [vmem:[%s1069 + $0x70] sm:$0xff]
      %v4486 = vld [vmem:[%s1069 + $0x78] sm:$0xff]
      %v4487 = vld [vmem:[%s1072] sm:$0x1]
      %v4489 = vlaneseq
      %v4490 = vshrl.u32 %v4489, 7
      %v4491 = vsub.s32 0, %v4490
      %v4492 = vrot.slane %v4487, %v4491
      %4494 = vmatprep.subr.mxu0 0.0
      %4495 = vmatpush1.msra.mxu0 %v4471
      %4496 = vmatprep.subr.mxu0 0.0
      %4497 = vmatpush1.msra.mxu0 %v4472
      %4498 = vmatprep.subr.mxu0 0.0
      %4499 = vmatpush1.msra.mxu0 %v4473
      %4500 = vmatprep.subr.mxu0 0.0
      %4501 = vmatpush1.msra.mxu0 %v4474
      %4502 = vmatprep.subr.mxu0 0.0
      %4503 = vmatpush1.msra.mxu0 %v4475
      %4504 = vmatprep.subr.mxu0 0.0
      %4505 = vmatpush1.msra.mxu0 %v4476
      %4506 = vmatprep.subr.mxu0 0.0
      %4507 = vmatpush1.msra.mxu0 %v4477
      %4508 = vmatprep.subr.mxu0 0.0
      %4509 = vmatpush1.msra.mxu0 %v4478
      %4510 = vmatprep.subr.mxu0 0.0
      %4511 = vmatpush1.msra.mxu0 %v4479
      %4512 = vmatprep.subr.mxu0 0.0
      %4513 = vmatpush1.msra.mxu0 %v4480
      %4514 = vmatprep.subr.mxu0 0.0
      %4515 = vmatpush1.msra.mxu0 %v4481
      %4516 = vmatprep.subr.mxu0 0.0
      %4517 = vmatpush1.msra.mxu0 %v4482
      %4518 = vmatprep.subr.mxu0 0.0
      %4519 = vmatpush1.msra.mxu0 %v4483
      %4520 = vmatprep.subr.mxu0 0.0
      %4521 = vmatpush1.msra.mxu0 %v4484
      %4522 = vmatprep.subr.mxu0 0.0
      %4523 = vmatpush1.msra.mxu0 %v4485
      %4524 = vmatprep.subr.mxu0 0.0
      %4525 = vmatpush1.msra.mxu0 %v4486
      %4526 = vmatprep.subr.mxu0 0.0
      %4527 = vmatpush1.msra.mxu0 0.0
      %4528 = vmatprep.subr.mxu0 0.0
      %4529 = vmatpush1.msra.mxu0 0.0
      %4530 = vmatprep.subr.mxu0 0.0
      %4531 = vmatpush1.msra.mxu0 0.0
      %4532 = vmatprep.subr.mxu0 0.0
      %4533 = vmatpush1.msra.mxu0 0.0
      %4534 = vmatprep.subr.mxu0 0.0
      %4535 = vmatpush1.msra.mxu0 0.0
      %4536 = vmatprep.subr.mxu0 0.0
      %4537 = vmatpush1.msra.mxu0 0.0
      %4538 = vmatprep.subr.mxu0 0.0
      %4539 = vmatpush1.msra.mxu0 0.0
      %4540 = vmatprep.subr.mxu0 0.0
      %4541 = vmatpush1.msra.mxu0 0.0
      %4542 = vmatprep.subr.mxu0 0.0
      %4543 = vmatpush1.msra.mxu0 0.0
      %4544 = vmatprep.subr.mxu0 0.0
      %4545 = vmatpush1.msra.mxu0 0.0
      %4546 = vmatprep.subr.mxu0 0.0
      %4547 = vmatpush1.msra.mxu0 0.0
      %4548 = vmatprep.subr.mxu0 0.0
      %4549 = vmatpush1.msra.mxu0 0.0
      %4550 = vmatprep.subr.mxu0 0.0
      %4551 = vmatpush1.msra.mxu0 0.0
      %4552 = vmatprep.subr.mxu0 0.0
      %4553 = vmatpush1.msra.mxu0 0.0
      %4554 = vmatprep.subr.mxu0 0.0
      %4555 = vmatpush1.msra.mxu0 0.0
      %4556 = vmatprep.subr.mxu0 0.0
      %4557 = vmatpush1.msra.mxu0 0.0
      %4558 = vmatprep.mubr.f32.mxu0 0.0
      %4559 = vmatmul.mubr.f32.gmra.mrb[0].mxu0 %v4469
      %v4560 = vpop.f32.mrb[0].mxu0
      %v4561 = vadd.f32 %v4492, %v4560
      %v4562 = vpop.f32.mrb[0].mxu0
      %4563 = vmatprep.mubr.f32.mxu0 0.0
      %4564 = vmatmul.mubr.f32.gmra.mrb[0].mxu0 %v4470
      %v4565 = vpop.f32.mrb[0].mxu0
      %v4566 = vadd.f32 %v4492, %v4565
      %v4567 = vpop.f32.mrb[0].mxu0
      %4568 = vdwg.mxu0
      %v4569 = vadd.f32 %v4375, %v4561
      %v4570 = vadd.f32 %v4376, %v4566
      %v4571 = vld [vmem:[%s1075] sm:$0x1]
      %v4572 = vld [vmem:[%s1078] sm:$0x1]
      %v4573 = vsel %vm1101, %v4569, 0.0
      %4574 = vadd.xlane.f32.xlu0 %v4573
      %v4575 = vpop.xlane.xlu0 %4574
      %v4576 = vsel %vm1101, %v4570, 0.0
      %4577 = vadd.xlane.f32.xlu0 %v4576
      %v4578 = vpop.xlane.xlu0 %4577
      %v4579 = vmul.f32 %v4575, %v2653
      %v4580 = vmul.f32 %v4578, %v2653
      %v4581 = vsub.f32 %v4569, %v4579
      %v4582 = vsub.f32 %v4570, %v4580
      %v4583 = vmul.f32 %v4581, %v4581
      %v4584 = vmul.f32 %v4582, %v4582
      %v4585 = vsel %vm1101, %v4583, 0.0
      %4586 = vadd.xlane.f32.xlu0 %v4585
      %v4587 = vpop.xlane.xlu0 %4586
      %v4588 = vsel %vm1101, %v4584, 0.0
      %4589 = vadd.xlane.f32.xlu0 %v4588
      %v4590 = vpop.xlane.xlu0 %4589
      %v4591 = vmul.f32 %v4587, %v2653
      %v4592 = vmul.f32 %v4590, %v2653
      %v4593 = vadd.f32 %v4591, 1e-05
      %v4594 = vadd.f32 %v4592, 1e-05
      %v4595 = vrsqrt.pop %v4593
      %v4596 = vrsqrt.pop %v4594
      %v4597 = vmul.f32 %v4581, %v4595
      %v4598 = vmul.f32 %v4582, %v4596
      %v4600 = vlaneseq
      %v4601 = vshrl.u32 %v4600, 7
      %v4602 = vsub.s32 0, %v4601
      %v4603 = vrot.slane %v4571, %v4602
      %v4605 = vmul.f32 %v4597, %v4603
      %v4606 = vmul.f32 %v4598, %v4603
      %v4608 = vlaneseq
      %v4609 = vshrl.u32 %v4608, 7
      %v4610 = vsub.s32 0, %v4609
      %v4611 = vrot.slane %v4572, %v4610
      %v4613 = vadd.f32 %v4605, %v4611
      %v4614 = vadd.f32 %v4606, %v4611
      %4615 = vst.msk [vmem:[#allocation2] sm:$0xff] %vm1101, %v4613
      %4616 = vst.msk [vmem:[#allocation2 + $0x8] sm:$0xff] %vm1101, %v4614
      %p4617 = scmp.eq.s32.totalorder %s37, 1
      // Predicated region
      $region129: #{decoder_forward.1} parent=123 // pred_check
        %p4618 = pneg %p4617
      $region130: #{decoder_forward.1} parent=123 // pred_check_branch
        %4620 = sbr.rel (%p4618) target = $region132
      $region131: #{decoder_forward.1} parent=123 // pred_region
        %v4621 = vld [vmem:[%s24] sm:$0xff]
        %v4622 = vld [vmem:[%s24 + $0x8] sm:$0xff]
        %v4623 = vld [vmem:[%s24 + $0x10] sm:$0xff]
        %v4624 = vld [vmem:[%s24 + $0x18] sm:$0xff]
        %v4625 = vld [vmem:[%s25] sm:$0x1]
        %v4627 = vlaneseq
        %v4628 = vshrl.u32 %v4627, 7
        %v4629 = vsub.s32 0, %v4628
        %v4630 = vrot.slane %v4625, %v4629
        %v4633 = vsel %vm1101, %v4613, 0
        %v4636 = vsel %vm1101, %v4614, 0
        %4638 = vmatprep.subr.mxu0 0.0
        %4639 = vmatpush1.msra.mxu0 %v4621
        %4640 = vmatprep.subr.mxu0 0.0
        %4641 = vmatpush1.msra.mxu0 %v4622
        %4642 = vmatprep.subr.mxu0 0.0
        %4643 = vmatpush1.msra.mxu0 %v4623
        %4644 = vmatprep.subr.mxu0 0.0
        %4645 = vmatpush1.msra.mxu0 %v4624
        %4646 = vmatprep.subr.mxu0 0.0
        %4647 = vmatpush1.msra.mxu0 0.0
        %4648 = vmatprep.subr.mxu0 0.0
        %4649 = vmatpush1.msra.mxu0 0.0
        %4650 = vmatprep.subr.mxu0 0.0
        %4651 = vmatpush1.msra.mxu0 0.0
        %4652 = vmatprep.subr.mxu0 0.0
        %4653 = vmatpush1.msra.mxu0 0.0
        %4654 = vmatprep.subr.mxu0 0.0
        %4655 = vmatpush1.msra.mxu0 0.0
        %4656 = vmatprep.subr.mxu0 0.0
        %4657 = vmatpush1.msra.mxu0 0.0
        %4658 = vmatprep.subr.mxu0 0.0
        %4659 = vmatpush1.msra.mxu0 0.0
        %4660 = vmatprep.subr.mxu0 0.0
        %4661 = vmatpush1.msra.mxu0 0.0
        %4662 = vmatprep.subr.mxu0 0.0
        %4663 = vmatpush1.msra.mxu0 0.0
        %4664 = vmatprep.subr.mxu0 0.0
        %4665 = vmatpush1.msra.mxu0 0.0
        %4666 = vmatprep.subr.mxu0 0.0
        %4667 = vmatpush1.msra.mxu0 0.0
        %4668 = vmatprep.subr.mxu0 0.0
        %4669 = vmatpush1.msra.mxu0 0.0
        %4670 = vmatprep.subr.mxu0 0.0
        %4671 = vmatpush1.msra.mxu0 0.0
        %4672 = vmatprep.subr.mxu0 0.0
        %4673 = vmatpush1.msra.mxu0 0.0
        %4674 = vmatprep.subr.mxu0 0.0
        %4675 = vmatpush1.msra.mxu0 0.0
        %4676 = vmatprep.subr.mxu0 0.0
        %4677 = vmatpush1.msra.mxu0 0.0
        %4678 = vmatprep.subr.mxu0 0.0
        %4679 = vmatpush1.msra.mxu0 0.0
        %4680 = vmatprep.subr.mxu0 0.0
        %4681 = vmatpush1.msra.mxu0 0.0
        %4682 = vmatprep.subr.mxu0 0.0
        %4683 = vmatpush1.msra.mxu0 0.0
        %4684 = vmatprep.subr.mxu0 0.0
        %4685 = vmatpush1.msra.mxu0 0.0
        %4686 = vmatprep.subr.mxu0 0.0
        %4687 = vmatpush1.msra.mxu0 0.0
        %4688 = vmatprep.subr.mxu0 0.0
        %4689 = vmatpush1.msra.mxu0 0.0
        %4690 = vmatprep.subr.mxu0 0.0
        %4691 = vmatpush1.msra.mxu0 0.0
        %4692 = vmatprep.subr.mxu0 0.0
        %4693 = vmatpush1.msra.mxu0 0.0
        %4694 = vmatprep.subr.mxu0 0.0
        %4695 = vmatpush1.msra.mxu0 0.0
        %4696 = vmatprep.subr.mxu0 0.0
        %4697 = vmatpush1.msra.mxu0 0.0
        %4698 = vmatprep.subr.mxu0 0.0
        %4699 = vmatpush1.msra.mxu0 0.0
        %4700 = vmatprep.subr.mxu0 0.0
        %4701 = vmatpush1.msra.mxu0 0.0
        %4702 = vmatprep.mubr.f32.mxu0 0.0
        %4703 = vmatmul.mubr.f32.gmra.mrb[0].mxu0 %v4633
        %v4704 = vpop.f32.mrb[0].mxu0
        %v4705 = vadd.f32 %v4630, %v4704
        %v4706 = vpop.f32.mrb[0].mxu0
        %4707 = vmatprep.mubr.f32.mxu0 0.0
        %4708 = vmatmul.mubr.f32.gmra.mrb[0].mxu0 %v4636
        %v4709 = vpop.f32.mrb[0].mxu0
        %v4710 = vadd.f32 %v4630, %v4709
        %v4711 = vpop.f32.mrb[0].mxu0
        %4712 = vdwg.mxu0
        %4713 = vst [vmem:[%s26] sm:$0xff] %v4705
        %4714 = vst [vmem:[%s26 + $0x8] sm:$0xff] %v4710
      $region132: #{decoder_forward.1} parent=123 // pred_fallthru
        _
      // Predicated region
      $region133: #{decoder_forward.1} parent=123 // pred_check
        %p4715 = pneg %p696
      $region134: #{decoder_forward.1} parent=123 // pred_check_branch
        %4717 = sbr.rel (%p4715) target = $region136
      $region135: #{decoder_forward.1} parent=123 // pred_region
        _
      $region136: #{decoder_forward.1} parent=123 // pred_fallthru
        _
      // Predicated region
      $region137: #{decoder_forward.1} parent=123 // pred_check
        %p4718 = pneg %p696
      $region138: #{decoder_forward.1} parent=123 // pred_check_branch
        %4720 = sbr.rel (%p4718) target = $region140
      $region139: #{decoder_forward.1} parent=123 // pred_region
        _
      $region140: #{decoder_forward.1} parent=123 // pred_fallthru
        _
    $region124: #{decoder_forward.1} parent=5 // pred_fallthru
      _
    %p4721 = scmp.le.s32.totalorder 2, %s32
    // Predicated region
    $region141: #{decoder_forward.1} parent=5 // pred_check
      %p4722 = pneg %p4721
    $region142: #{decoder_forward.1} parent=5 // pred_check_branch
      %4724 = sbr.rel (%p4722) target = $region144
    $region143: #{decoder_forward.1} parent=5 // pred_region
      %s4725 = ssub.s32 %s32, 2
    $region144: #{decoder_forward.1} parent=5 // pred_fallthru
      _
  $region6: #{decoder_forward.1} parent=0 // loop_footer
    %s36 = sadd.s32 1, %s32
  $region7: #{decoder_forward.1} parent=0 // loop_footer_branch
    %31 = sbr.rel target = $region3
  $region8: #{decoder_forward.1} parent=0 // loop_exit
    _

</llo_original>
